<compile_context>
chip_gen: v6e
topology: v6e:2x2x1
jax: 0.10.0
libtpu: 0.0.40
codegen_flags: <defaults>
</compile_context>

<pallas_src>
import functools

import jax
import jax.numpy as jnp
from jax.experimental import pallas as pl
from jax.experimental.pallas import tpu as pltpu

_LANE = 128
_SUBLANE = 8
_CONV_PAD = 2   # Conv2d(..., padding=(2, 0)) along the sequence axis


def _round_up(x, m):
    return (x + m - 1) // m * m


def _textcnn_kernel(kernel_sizes, seq_len, conv_pad, ids_ref, embed_ref, *refs):
    """Fused one-hot embedding gather + conv (flat 2-D matmuls) + ReLU + max-pool + FC."""
    nK = len(kernel_sizes)
    conv_refs = refs[:2 * nK]            # (im2col weight, bias) per branch
    fc_w_ref = refs[2 * nK]              # (nK * Cop, Cp)
    fc_b_ref = refs[2 * nK + 1]          # (1, Cp)
    out_ref = refs[2 * nK + 2]           # (TB, Cp)

    L = seq_len
    Vp, Dp = embed_ref.shape
    TB = out_ref.shape[0]
    TBL = TB * L
    Lp = L + 2 * conv_pad
    w_dtype = fc_w_ref.dtype

    # --- Embedding gather: one-hot matmul against the VMEM-resident table ---
    # (small-vocab fast path; selection is exact since the one-hot is 0/1).
    ids = ids_ref[...]                                               # (TB*L, 1) int32
    vocab_iota = jax.lax.broadcasted_iota(jnp.int32, (TBL, Vp), 1)
    onehot = (vocab_iota == ids).astype(embed_ref.dtype)             # (TB*L, Vp)
    emb_flat = jnp.dot(onehot, embed_ref[...],
                       preferred_element_type=jnp.float32)           # (TB*L, Dp)
    emb = emb_flat.astype(w_dtype).reshape(TB, L, Dp)

    # Sequence padding for Conv2d(..., padding=(conv_pad, 0)).
    zpad = jnp.zeros((TB, conv_pad, Dp), w_dtype)
    emb_pad = jnp.concatenate([zpad, emb, zpad], axis=1)             # (TB, Lp, Dp)

    # --- Conv branches: flattened 2-D matmuls (M = TB*T, K = Dp, N = Cop) ---
    pooled_parts = []
    for i, f in enumerate(kernel_sizes):
        w = conv_refs[2 * i][...]                                    # (f*Dp, Cop)
        b = conv_refs[2 * i + 1][...]                                # (1, Cop) f32
        Cop = w.shape[-1]
        T = Lp - f + 1                                               # conv output length
        acc = jnp.zeros((TB * T, Cop), jnp.float32)
        for j in range(f):
            xj = emb_pad[:, j:j + T, :].reshape(TB * T, Dp)
            acc = acc + jnp.dot(xj, w[j * Dp:(j + 1) * Dp, :],
                                preferred_element_type=jnp.float32)
        acc = jnp.maximum(acc + b, 0.0)                              # bias + ReLU
        pooled_parts.append(jnp.max(acc.reshape(TB, T, Cop), axis=1))  # (TB, Cop)

    # --- Fused FC over all branches; lane-dense Cp-wide output store ---
    feat = jnp.concatenate(pooled_parts, axis=-1)                    # (TB, nK*Cop)
    logits = jnp.dot(feat.astype(w_dtype), fc_w_ref[...],
                     preferred_element_type=jnp.float32) + fc_b_ref[...]
    out_ref[...] = logits.astype(out_ref.dtype)


def _vmem_capacity_bytes():
    try:
        return int(pltpu.get_tpu_info().vmem_capacity_bytes)
    except Exception:
        return 64 * 1024 * 1024          # conservative (v7x-sized) fallback


def textcnn_forward(ids, params, kernel_sizes, kernel_num, *,
                    block_batch=None, compute_dtype=jnp.float32):
    kernel_sizes = tuple(kernel_sizes)
    nK = len(kernel_sizes)
    B, L = ids.shape
    vocab, D = params["embed"].shape
    C = params["fc_b"].shape[-1]
    Co = kernel_num

    Dp = _round_up(D, _LANE)             # lane-dense embed dim
    Cop = _round_up(Co, _LANE)           # lane-dense conv channel count
    Cp = _round_up(C, _LANE)             # lane-dense class dim (unmasked stores)
    Vp = _round_up(vocab, _LANE)         # lane-dense one-hot / vocab dim
    Lp = L + 2 * _CONV_PAD
    Tmax = Lp - min(kernel_sizes) + 1
    itemsize = jnp.dtype(compute_dtype).itemsize

    if Vp * Dp * itemsize > 8 * 1024 * 1024:
        # TODO(synk): large-vocab path: HBM table + double-buffered DMA row gather.
        raise NotImplementedError("vocabulary too large for the VMEM-resident path")

    # --- Generation-aware batch tile / VMEM budget (v7x 64 MiB vs 128 MiB) ---
    vmem_cap = _vmem_capacity_bytes()
    vmem_limit = min(int(vmem_cap * 3 // 4), 112 * 1024 * 1024)
    tb_target = 512 if vmem_cap >= 100 * 1024 * 1024 else 256
    if block_batch is not None:
        tb_target = block_batch
    # Rough per-batch-row working set: emb_pad + im2col slice + conv acc + one-hot.
    row_bytes = (itemsize * Dp * (Lp + Tmax) + 4 * Tmax * Cop * 2
                 + itemsize * L * Vp)
    tb_fit = max(_SUBLANE, (vmem_limit // 2) // max(row_bytes, 1))
    TB = max(_SUBLANE, min(tb_target, tb_fit, _round_up(B, _SUBLANE)))
    TB = _round_up(TB, _SUBLANE)
    B_pad = _round_up(B, TB)

    # --- Lane-dense, zero-padded parameter layout (padding stays exactly 0) ---
    ids_col = jnp.zeros((B_pad * L, 1), jnp.int32)
    ids_col = ids_col.at[:B * L, 0].set(ids.reshape(-1).astype(jnp.int32))

    embed_p = jnp.pad(params["embed"].astype(jnp.float32),
                      ((0, Vp - vocab), (0, Dp - D))).astype(compute_dtype)
    conv_inputs = []
    for f in kernel_sizes:
        w = jnp.pad(params[f"conv_w{f}"].astype(jnp.float32),
                    ((0, 0), (0, Dp - D), (0, Cop - Co)))
        conv_inputs.append(w.reshape(f * Dp, Cop).astype(compute_dtype))
        conv_inputs.append(jnp.pad(params[f"conv_b{f}"].astype(jnp.float32),
                                   ((0, 0), (0, Cop - Co))))
    fc_w_p = jnp.zeros((nK * Cop, Cp), jnp.float32)
    for i in range(nK):
        fc_w_p = fc_w_p.at[i * Cop:i * Cop + Co, :C].set(
            params["fc_w"][i * Co:(i + 1) * Co])
    fc_w_p = fc_w_p.astype(compute_dtype)
    fc_b_p = jnp.pad(params["fc_b"].astype(jnp.float32), ((0, 0), (0, Cp - C)))

    kernel = functools.partial(_textcnn_kernel, kernel_sizes, L, _CONV_PAD)
    full_vmem = pl.BlockSpec(memory_space=pltpu.MemorySpace.VMEM)

    grid_spec = pltpu.PrefetchScalarGridSpec(
        num_scalar_prefetch=0,
        grid=(B_pad // TB,),
        in_specs=[pl.BlockSpec((TB * L, 1), lambda i: (i, 0))]      # token ids
                 + [full_vmem] * (2 * nK + 3),                      # embed + conv + fc
        out_specs=pl.BlockSpec((TB, Cp), lambda i: (i, 0)),
    )
    out = pl.pallas_call(
        kernel,
        out_shape=jax.ShapeDtypeStruct((B_pad, Cp), jnp.float32),
        grid_spec=grid_spec,
        compiler_params=pltpu.CompilerParams(
            dimension_semantics=("parallel",),                      # megacore (v7x)
            vmem_limit_bytes=vmem_limit,
        ),
    )(ids_col, embed_p, *conv_inputs, fc_w_p, fc_b_p)
    return out[:B, :C]


def init_params(key, embed_num, embed_dim, class_num, kernel_num, kernel_sizes):
    keys = jax.random.split(key, 3 + 2 * len(kernel_sizes))
    params = {
        "embed": jax.random.normal(keys[0], (embed_num, embed_dim), jnp.float32) * 0.1
    }
    for i, f in enumerate(kernel_sizes):
        # torch Conv2d weight shape (Co, Ci=1, f, D) -> stored as (f, D, Co)
        w = jax.random.normal(keys[1 + 2 * i], (kernel_num, 1, f, embed_dim),
                              jnp.float32) * 0.1
        params[f"conv_w{f}"] = jnp.transpose(w[:, 0], (1, 2, 0))
        params[f"conv_b{f}"] = (
            jax.random.normal(keys[2 + 2 * i], (kernel_num,), jnp.float32) * 0.1
        ).reshape(1, -1)
    # torch Linear weight shape (C, Co*K) -> stored transposed (Co*K, C)
    fc_w = jax.random.normal(keys[1 + 2 * len(kernel_sizes)],
                             (class_num, kernel_num * len(kernel_sizes)),
                             jnp.float32) * 0.1
    params["fc_w"] = fc_w.T
    params["fc_b"] = (
        jax.random.normal(keys[2 + 2 * len(kernel_sizes)], (class_num,), jnp.float32)
        * 0.1
    ).reshape(1, -1)
    return params


def reference_forward(ids, params, kernel_sizes, kernel_num):
    """Pure-JAX reference mirroring the PyTorch forward (dropout = identity)."""
    emb = jnp.take(params["embed"], ids, axis=0)
    emb_pad = jnp.pad(emb, ((0, 0), (2, 2), (0, 0)))
    pooled = []
    for f in kernel_sizes:
        w = params[f"conv_w{f}"]
        T = emb_pad.shape[1] - f + 1
        conv = sum(
            jnp.einsum("btd,dc->btc", emb_pad[:, j:j + T, :], w[j]) for j in range(f)
        )
        conv = jax.nn.relu(conv + params[f"conv_b{f}"])
        pooled.append(jnp.max(conv, axis=1))
    feat = jnp.concatenate(pooled, axis=1)
    return feat @ params["fc_w"] + params["fc_b"]


if __name__ == "__main__":
    embed_num = 100     # vocab size
    embed_dim = 32
    class_num = 4
    kernel_num = 8      # Co
    kernel_sizes = (3, 4, 5)
    batch, seq_len = 2, 8

    root = jax.random.PRNGKey(0)
    k_params, k_ids = jax.random.split(root)
    params = init_params(k_params, embed_num, embed_dim, class_num,
                         kernel_num, kernel_sizes)
    ids = jax.random.randint(k_ids, (batch, seq_len), 0, embed_num, dtype=jnp.int32)

    logits = textcnn_forward(ids, params, kernel_sizes, kernel_num)
    logits = jax.block_until_ready(logits)

    ref = reference_forward(ids, params, kernel_sizes, kernel_num)
    assert logits.shape == (batch, class_num), logits.shape
    assert jnp.allclose(logits, ref, atol=2e-3, rtol=2e-3), (logits, ref)

    print("KERNEL_OK")
</pallas_src>

<mosaic_0001>
module attributes {stable_mosaic.version = 11 : i64} {
  func.func @_textcnn_kernel(%arg0: i32, %arg1: memref<64x1xi32, #tpu.memory_space<vmem>>, %arg2: memref<128x128xf32, #tpu.memory_space<vmem>>, %arg3: memref<384x128xf32, #tpu.memory_space<vmem>>, %arg4: memref<1x128xf32, #tpu.memory_space<vmem>>, %arg5: memref<512x128xf32, #tpu.memory_space<vmem>>, %arg6: memref<1x128xf32, #tpu.memory_space<vmem>>, %arg7: memref<640x128xf32, #tpu.memory_space<vmem>>, %arg8: memref<1x128xf32, #tpu.memory_space<vmem>>, %arg9: memref<384x128xf32, #tpu.memory_space<vmem>>, %arg10: memref<1x128xf32, #tpu.memory_space<vmem>>, %arg11: memref<8x128xf32, #tpu.memory_space<vmem>>) attributes {dimension_semantics = [#tpu.dimension_semantics<parallel>], iteration_bounds = array<i64: 1>, scalar_prefetch = 0 : i64, scratch_operands = 0 : i64, tpu.core_type = #tpu.core_type<tc>, window_params = [{transform_indices = @transform_0, window_bounds = array<i64: 64, 1>}, {pipeline_mode = #tpu.pipeline_mode<synchronous>, transform_indices = @transform_1, window_bounds = array<i64: 128, 128>}, {pipeline_mode = #tpu.pipeline_mode<synchronous>, transform_indices = @transform_2, window_bounds = array<i64: 384, 128>}, {pipeline_mode = #tpu.pipeline_mode<synchronous>, transform_indices = @transform_3, window_bounds = array<i64: 1, 128>}, {pipeline_mode = #tpu.pipeline_mode<synchronous>, transform_indices = @transform_4, window_bounds = array<i64: 512, 128>}, {pipeline_mode = #tpu.pipeline_mode<synchronous>, transform_indices = @transform_5, window_bounds = array<i64: 1, 128>}, {pipeline_mode = #tpu.pipeline_mode<synchronous>, transform_indices = @transform_6, window_bounds = array<i64: 640, 128>}, {pipeline_mode = #tpu.pipeline_mode<synchronous>, transform_indices = @transform_7, window_bounds = array<i64: 1, 128>}, {pipeline_mode = #tpu.pipeline_mode<synchronous>, transform_indices = @transform_8, window_bounds = array<i64: 384, 128>}, {pipeline_mode = #tpu.pipeline_mode<synchronous>, transform_indices = @transform_9, window_bounds = array<i64: 1, 128>}, {transform_indices = @transform_10, window_bounds = array<i64: 8, 128>}]} {
    %c0 = arith.constant 0 : index
    %c0_0 = arith.constant 0 : index
    %0 = vector.load %arg1[%c0, %c0_0] : memref<64x1xi32, #tpu.memory_space<vmem>>, vector<64x1xi32>
    %1 = tpu.iota {dimensions = array<i32: 1>} : vector<64x128xi32>
    %2 = vector.broadcast %0 : vector<64x1xi32> to vector<64x128xi32>
    %3 = arith.cmpi eq, %1, %2 : vector<64x128xi32>
    %4 = arith.extui %3 : vector<64x128xi1> to vector<64x128xi32>
    %5 = arith.sitofp %4 : vector<64x128xi32> to vector<64x128xf32>
    %c0_1 = arith.constant 0 : index
    %c0_2 = arith.constant 0 : index
    %6 = vector.load %arg2[%c0_1, %c0_2] : memref<128x128xf32, #tpu.memory_space<vmem>>, vector<128x128xf32>
    %cst = arith.constant dense<0.000000e+00> : vector<64x128xf32>
    %7 = tpu.matmul %5, %6, %cst {dimension_numbers = #tpu.dot_dimension_numbers<[1], [0], [0], [1], [0, 0, 1, 1], [], []>} : vector<64x128xf32>, vector<128x128xf32>, vector<64x128xf32> -> vector<64x128xf32>
    %8 = vector.shape_cast %7 : vector<64x128xf32> to vector<8x8x128xf32>
    %cst_3 = arith.constant 0.000000e+00 : f32
    %9 = vector.broadcast %cst_3 : f32 to vector<8x2x128xf32>
    %10 = tpu.concatenate %9, %8, %9 in 1 : vector<8x2x128xf32>, vector<8x8x128xf32>, vector<8x2x128xf32> -> vector<8x12x128xf32>
    %c0_4 = arith.constant 0 : index
    %c0_5 = arith.constant 0 : index
    %11 = vector.load %arg3[%c0_4, %c0_5] : memref<384x128xf32, #tpu.memory_space<vmem>>, vector<384x128xf32>
    %c0_6 = arith.constant 0 : index
    %c0_7 = arith.constant 0 : index
    %12 = vector.load %arg4[%c0_6, %c0_7] : memref<1x128xf32, #tpu.memory_space<vmem>>, vector<1x128xf32>
    %cst_8 = arith.constant 0.000000e+00 : f32
    %13 = vector.broadcast %cst_8 : f32 to vector<80x128xf32>
    %14 = vector.extract_strided_slice %10 {offsets = [0, 0, 0], sizes = [8, 10, 128], strides = [1, 1, 1]} : vector<8x12x128xf32> to vector<8x10x128xf32>
    %15 = vector.shape_cast %14 : vector<8x10x128xf32> to vector<80x128xf32>
    %16 = vector.extract_strided_slice %11 {offsets = [0, 0], sizes = [128, 128], strides = [1, 1]} : vector<384x128xf32> to vector<128x128xf32>
    %cst_9 = arith.constant dense<0.000000e+00> : vector<80x128xf32>
    %17 = tpu.matmul %15, %16, %cst_9 {dimension_numbers = #tpu.dot_dimension_numbers<[1], [0], [0], [1], [0, 0, 1, 1], [], []>} : vector<80x128xf32>, vector<128x128xf32>, vector<80x128xf32> -> vector<80x128xf32>
    %18 = arith.addf %13, %17 : vector<80x128xf32>
    %19 = vector.extract_strided_slice %10 {offsets = [0, 1, 0], sizes = [8, 10, 128], strides = [1, 1, 1]} : vector<8x12x128xf32> to vector<8x10x128xf32>
    %20 = vector.shape_cast %19 : vector<8x10x128xf32> to vector<80x128xf32>
    %21 = vector.extract_strided_slice %11 {offsets = [128, 0], sizes = [128, 128], strides = [1, 1]} : vector<384x128xf32> to vector<128x128xf32>
    %cst_10 = arith.constant dense<0.000000e+00> : vector<80x128xf32>
    %22 = tpu.matmul %20, %21, %cst_10 {dimension_numbers = #tpu.dot_dimension_numbers<[1], [0], [0], [1], [0, 0, 1, 1], [], []>} : vector<80x128xf32>, vector<128x128xf32>, vector<80x128xf32> -> vector<80x128xf32>
    %23 = arith.addf %18, %22 : vector<80x128xf32>
    %24 = vector.extract_strided_slice %10 {offsets = [0, 2, 0], sizes = [8, 10, 128], strides = [1, 1, 1]} : vector<8x12x128xf32> to vector<8x10x128xf32>
    %25 = vector.shape_cast %24 : vector<8x10x128xf32> to vector<80x128xf32>
    %26 = vector.extract_strided_slice %11 {offsets = [256, 0], sizes = [128, 128], strides = [1, 1]} : vector<384x128xf32> to vector<128x128xf32>
    %cst_11 = arith.constant dense<0.000000e+00> : vector<80x128xf32>
    %27 = tpu.matmul %25, %26, %cst_11 {dimension_numbers = #tpu.dot_dimension_numbers<[1], [0], [0], [1], [0, 0, 1, 1], [], []>} : vector<80x128xf32>, vector<128x128xf32>, vector<80x128xf32> -> vector<80x128xf32>
    %28 = arith.addf %23, %27 : vector<80x128xf32>
    %29 = vector.broadcast %12 : vector<1x128xf32> to vector<80x128xf32>
    %30 = arith.addf %28, %29 : vector<80x128xf32>
    %cst_12 = arith.constant 0.000000e+00 : f32
    %31 = vector.broadcast %cst_12 : f32 to vector<80x128xf32>
    %32 = arith.maximumf %30, %31 : vector<80x128xf32>
    %33 = vector.shape_cast %32 : vector<80x128xf32> to vector<8x10x128xf32>
    %cst_13 = arith.constant dense<0xFF800000> : vector<8x128xf32>
    %34 = vector.multi_reduction <maximumf>, %33, %cst_13 [1] : vector<8x10x128xf32> to vector<8x128xf32>
    %c0_14 = arith.constant 0 : index
    %c0_15 = arith.constant 0 : index
    %35 = vector.load %arg5[%c0_14, %c0_15] : memref<512x128xf32, #tpu.memory_space<vmem>>, vector<512x128xf32>
    %c0_16 = arith.constant 0 : index
    %c0_17 = arith.constant 0 : index
    %36 = vector.load %arg6[%c0_16, %c0_17] : memref<1x128xf32, #tpu.memory_space<vmem>>, vector<1x128xf32>
    %cst_18 = arith.constant 0.000000e+00 : f32
    %37 = vector.broadcast %cst_18 : f32 to vector<72x128xf32>
    %38 = vector.extract_strided_slice %10 {offsets = [0, 0, 0], sizes = [8, 9, 128], strides = [1, 1, 1]} : vector<8x12x128xf32> to vector<8x9x128xf32>
    %39 = vector.shape_cast %38 : vector<8x9x128xf32> to vector<72x128xf32>
    %40 = vector.extract_strided_slice %35 {offsets = [0, 0], sizes = [128, 128], strides = [1, 1]} : vector<512x128xf32> to vector<128x128xf32>
    %cst_19 = arith.constant dense<0.000000e+00> : vector<72x128xf32>
    %41 = tpu.matmul %39, %40, %cst_19 {dimension_numbers = #tpu.dot_dimension_numbers<[1], [0], [0], [1], [0, 0, 1, 1], [], []>} : vector<72x128xf32>, vector<128x128xf32>, vector<72x128xf32> -> vector<72x128xf32>
    %42 = arith.addf %37, %41 : vector<72x128xf32>
    %43 = vector.extract_strided_slice %10 {offsets = [0, 1, 0], sizes = [8, 9, 128], strides = [1, 1, 1]} : vector<8x12x128xf32> to vector<8x9x128xf32>
    %44 = vector.shape_cast %43 : vector<8x9x128xf32> to vector<72x128xf32>
    %45 = vector.extract_strided_slice %35 {offsets = [128, 0], sizes = [128, 128], strides = [1, 1]} : vector<512x128xf32> to vector<128x128xf32>
    %cst_20 = arith.constant dense<0.000000e+00> : vector<72x128xf32>
    %46 = tpu.matmul %44, %45, %cst_20 {dimension_numbers = #tpu.dot_dimension_numbers<[1], [0], [0], [1], [0, 0, 1, 1], [], []>} : vector<72x128xf32>, vector<128x128xf32>, vector<72x128xf32> -> vector<72x128xf32>
    %47 = arith.addf %42, %46 : vector<72x128xf32>
    %48 = vector.extract_strided_slice %10 {offsets = [0, 2, 0], sizes = [8, 9, 128], strides = [1, 1, 1]} : vector<8x12x128xf32> to vector<8x9x128xf32>
    %49 = vector.shape_cast %48 : vector<8x9x128xf32> to vector<72x128xf32>
    %50 = vector.extract_strided_slice %35 {offsets = [256, 0], sizes = [128, 128], strides = [1, 1]} : vector<512x128xf32> to vector<128x128xf32>
    %cst_21 = arith.constant dense<0.000000e+00> : vector<72x128xf32>
    %51 = tpu.matmul %49, %50, %cst_21 {dimension_numbers = #tpu.dot_dimension_numbers<[1], [0], [0], [1], [0, 0, 1, 1], [], []>} : vector<72x128xf32>, vector<128x128xf32>, vector<72x128xf32> -> vector<72x128xf32>
    %52 = arith.addf %47, %51 : vector<72x128xf32>
    %53 = vector.extract_strided_slice %10 {offsets = [0, 3, 0], sizes = [8, 9, 128], strides = [1, 1, 1]} : vector<8x12x128xf32> to vector<8x9x128xf32>
    %54 = vector.shape_cast %53 : vector<8x9x128xf32> to vector<72x128xf32>
    %55 = vector.extract_strided_slice %35 {offsets = [384, 0], sizes = [128, 128], strides = [1, 1]} : vector<512x128xf32> to vector<128x128xf32>
    %cst_22 = arith.constant dense<0.000000e+00> : vector<72x128xf32>
    %56 = tpu.matmul %54, %55, %cst_22 {dimension_numbers = #tpu.dot_dimension_numbers<[1], [0], [0], [1], [0, 0, 1, 1], [], []>} : vector<72x128xf32>, vector<128x128xf32>, vector<72x128xf32> -> vector<72x128xf32>
    %57 = arith.addf %52, %56 : vector<72x128xf32>
    %58 = vector.broadcast %36 : vector<1x128xf32> to vector<72x128xf32>
    %59 = arith.addf %57, %58 : vector<72x128xf32>
    %cst_23 = arith.constant 0.000000e+00 : f32
    %60 = vector.broadcast %cst_23 : f32 to vector<72x128xf32>
    %61 = arith.maximumf %59, %60 : vector<72x128xf32>
    %62 = vector.shape_cast %61 : vector<72x128xf32> to vector<8x9x128xf32>
    %cst_24 = arith.constant dense<0xFF800000> : vector<8x128xf32>
    %63 = vector.multi_reduction <maximumf>, %62, %cst_24 [1] : vector<8x9x128xf32> to vector<8x128xf32>
    %c0_25 = arith.constant 0 : index
    %c0_26 = arith.constant 0 : index
    %64 = vector.load %arg7[%c0_25, %c0_26] : memref<640x128xf32, #tpu.memory_space<vmem>>, vector<640x128xf32>
    %c0_27 = arith.constant 0 : index
    %c0_28 = arith.constant 0 : index
    %65 = vector.load %arg8[%c0_27, %c0_28] : memref<1x128xf32, #tpu.memory_space<vmem>>, vector<1x128xf32>
    %cst_29 = arith.constant 0.000000e+00 : f32
    %66 = vector.broadcast %cst_29 : f32 to vector<64x128xf32>
    %67 = vector.extract_strided_slice %10 {offsets = [0, 0, 0], sizes = [8, 8, 128], strides = [1, 1, 1]} : vector<8x12x128xf32> to vector<8x8x128xf32>
    %68 = vector.shape_cast %67 : vector<8x8x128xf32> to vector<64x128xf32>
    %69 = vector.extract_strided_slice %64 {offsets = [0, 0], sizes = [128, 128], strides = [1, 1]} : vector<640x128xf32> to vector<128x128xf32>
    %cst_30 = arith.constant dense<0.000000e+00> : vector<64x128xf32>
    %70 = tpu.matmul %68, %69, %cst_30 {dimension_numbers = #tpu.dot_dimension_numbers<[1], [0], [0], [1], [0, 0, 1, 1], [], []>} : vector<64x128xf32>, vector<128x128xf32>, vector<64x128xf32> -> vector<64x128xf32>
    %71 = arith.addf %66, %70 : vector<64x128xf32>
    %72 = vector.extract_strided_slice %10 {offsets = [0, 1, 0], sizes = [8, 8, 128], strides = [1, 1, 1]} : vector<8x12x128xf32> to vector<8x8x128xf32>
    %73 = vector.shape_cast %72 : vector<8x8x128xf32> to vector<64x128xf32>
    %74 = vector.extract_strided_slice %64 {offsets = [128, 0], sizes = [128, 128], strides = [1, 1]} : vector<640x128xf32> to vector<128x128xf32>
    %cst_31 = arith.constant dense<0.000000e+00> : vector<64x128xf32>
    %75 = tpu.matmul %73, %74, %cst_31 {dimension_numbers = #tpu.dot_dimension_numbers<[1], [0], [0], [1], [0, 0, 1, 1], [], []>} : vector<64x128xf32>, vector<128x128xf32>, vector<64x128xf32> -> vector<64x128xf32>
    %76 = arith.addf %71, %75 : vector<64x128xf32>
    %77 = vector.extract_strided_slice %10 {offsets = [0, 2, 0], sizes = [8, 8, 128], strides = [1, 1, 1]} : vector<8x12x128xf32> to vector<8x8x128xf32>
    %78 = vector.shape_cast %77 : vector<8x8x128xf32> to vector<64x128xf32>
    %79 = vector.extract_strided_slice %64 {offsets = [256, 0], sizes = [128, 128], strides = [1, 1]} : vector<640x128xf32> to vector<128x128xf32>
    %cst_32 = arith.constant dense<0.000000e+00> : vector<64x128xf32>
    %80 = tpu.matmul %78, %79, %cst_32 {dimension_numbers = #tpu.dot_dimension_numbers<[1], [0], [0], [1], [0, 0, 1, 1], [], []>} : vector<64x128xf32>, vector<128x128xf32>, vector<64x128xf32> -> vector<64x128xf32>
    %81 = arith.addf %76, %80 : vector<64x128xf32>
    %82 = vector.extract_strided_slice %10 {offsets = [0, 3, 0], sizes = [8, 8, 128], strides = [1, 1, 1]} : vector<8x12x128xf32> to vector<8x8x128xf32>
    %83 = vector.shape_cast %82 : vector<8x8x128xf32> to vector<64x128xf32>
    %84 = vector.extract_strided_slice %64 {offsets = [384, 0], sizes = [128, 128], strides = [1, 1]} : vector<640x128xf32> to vector<128x128xf32>
    %cst_33 = arith.constant dense<0.000000e+00> : vector<64x128xf32>
    %85 = tpu.matmul %83, %84, %cst_33 {dimension_numbers = #tpu.dot_dimension_numbers<[1], [0], [0], [1], [0, 0, 1, 1], [], []>} : vector<64x128xf32>, vector<128x128xf32>, vector<64x128xf32> -> vector<64x128xf32>
    %86 = arith.addf %81, %85 : vector<64x128xf32>
    %87 = vector.extract_strided_slice %10 {offsets = [0, 4, 0], sizes = [8, 8, 128], strides = [1, 1, 1]} : vector<8x12x128xf32> to vector<8x8x128xf32>
    %88 = vector.shape_cast %87 : vector<8x8x128xf32> to vector<64x128xf32>
    %89 = vector.extract_strided_slice %64 {offsets = [512, 0], sizes = [128, 128], strides = [1, 1]} : vector<640x128xf32> to vector<128x128xf32>
    %cst_34 = arith.constant dense<0.000000e+00> : vector<64x128xf32>
    %90 = tpu.matmul %88, %89, %cst_34 {dimension_numbers = #tpu.dot_dimension_numbers<[1], [0], [0], [1], [0, 0, 1, 1], [], []>} : vector<64x128xf32>, vector<128x128xf32>, vector<64x128xf32> -> vector<64x128xf32>
    %91 = arith.addf %86, %90 : vector<64x128xf32>
    %92 = vector.broadcast %65 : vector<1x128xf32> to vector<64x128xf32>
    %93 = arith.addf %91, %92 : vector<64x128xf32>
    %cst_35 = arith.constant 0.000000e+00 : f32
    %94 = vector.broadcast %cst_35 : f32 to vector<64x128xf32>
    %95 = arith.maximumf %93, %94 : vector<64x128xf32>
    %96 = vector.shape_cast %95 : vector<64x128xf32> to vector<8x8x128xf32>
    %cst_36 = arith.constant dense<0xFF800000> : vector<8x128xf32>
    %97 = vector.multi_reduction <maximumf>, %96, %cst_36 [1] : vector<8x8x128xf32> to vector<8x128xf32>
    %98 = tpu.concatenate %34, %63, %97 in 1 : vector<8x128xf32>, vector<8x128xf32>, vector<8x128xf32> -> vector<8x384xf32>
    %c0_37 = arith.constant 0 : index
    %c0_38 = arith.constant 0 : index
    %99 = vector.load %arg9[%c0_37, %c0_38] : memref<384x128xf32, #tpu.memory_space<vmem>>, vector<384x128xf32>
    %cst_39 = arith.constant dense<0.000000e+00> : vector<8x128xf32>
    %100 = tpu.matmul %98, %99, %cst_39 {dimension_numbers = #tpu.dot_dimension_numbers<[1], [0], [0], [1], [0, 0, 1, 1], [], []>} : vector<8x384xf32>, vector<384x128xf32>, vector<8x128xf32> -> vector<8x128xf32>
    %c0_40 = arith.constant 0 : index
    %c0_41 = arith.constant 0 : index
    %101 = vector.load %arg10[%c0_40, %c0_41] : memref<1x128xf32, #tpu.memory_space<vmem>>, vector<1x128xf32>
    %102 = vector.broadcast %101 : vector<1x128xf32> to vector<8x128xf32>
    %103 = arith.addf %100, %102 : vector<8x128xf32>
    %c0_42 = arith.constant 0 : index
    %c0_43 = arith.constant 0 : index
    %104 = vector.load %arg11[%c0_42, %c0_43] : memref<8x128xf32, #tpu.memory_space<vmem>>, vector<8x128xf32>
    tpu.vector_store %arg11[%c0_42, %c0_43], %103 {strides = array<i32>} : memref<8x128xf32, #tpu.memory_space<vmem>>, vector<8x128xf32>,
    return
  }
  func.func @transform_0(%arg0: i32) -> (i32, i32) {
    %c0_i32 = arith.constant 0 : i32
    %c0_i32_0 = arith.constant 0 : i32
    return %arg0, %c0_i32 : i32, i32
  }
  func.func @transform_1(%arg0: i32) -> (i32, i32) {
    %c0_i32 = arith.constant 0 : i32
    %c0_i32_0 = arith.constant 0 : i32
    %c0_i32_1 = arith.constant 0 : i32
    return %c0_i32, %c0_i32_0 : i32, i32
  }
  func.func @transform_2(%arg0: i32) -> (i32, i32) {
    %c0_i32 = arith.constant 0 : i32
    %c0_i32_0 = arith.constant 0 : i32
    %c0_i32_1 = arith.constant 0 : i32
    return %c0_i32, %c0_i32_0 : i32, i32
  }
  func.func @transform_3(%arg0: i32) -> (i32, i32) {
    %c0_i32 = arith.constant 0 : i32
    %c0_i32_0 = arith.constant 0 : i32
    %c0_i32_1 = arith.constant 0 : i32
    return %c0_i32, %c0_i32_0 : i32, i32
  }
  func.func @transform_4(%arg0: i32) -> (i32, i32) {
    %c0_i32 = arith.constant 0 : i32
    %c0_i32_0 = arith.constant 0 : i32
    %c0_i32_1 = arith.constant 0 : i32
    return %c0_i32, %c0_i32_0 : i32, i32
  }
  func.func @transform_5(%arg0: i32) -> (i32, i32) {
    %c0_i32 = arith.constant 0 : i32
    %c0_i32_0 = arith.constant 0 : i32
    %c0_i32_1 = arith.constant 0 : i32
    return %c0_i32, %c0_i32_0 : i32, i32
  }
  func.func @transform_6(%arg0: i32) -> (i32, i32) {
    %c0_i32 = arith.constant 0 : i32
    %c0_i32_0 = arith.constant 0 : i32
    %c0_i32_1 = arith.constant 0 : i32
    return %c0_i32, %c0_i32_0 : i32, i32
  }
  func.func @transform_7(%arg0: i32) -> (i32, i32) {
    %c0_i32 = arith.constant 0 : i32
    %c0_i32_0 = arith.constant 0 : i32
    %c0_i32_1 = arith.constant 0 : i32
    return %c0_i32, %c0_i32_0 : i32, i32
  }
  func.func @transform_8(%arg0: i32) -> (i32, i32) {
    %c0_i32 = arith.constant 0 : i32
    %c0_i32_0 = arith.constant 0 : i32
    %c0_i32_1 = arith.constant 0 : i32
    return %c0_i32, %c0_i32_0 : i32, i32
  }
  func.func @transform_9(%arg0: i32) -> (i32, i32) {
    %c0_i32 = arith.constant 0 : i32
    %c0_i32_0 = arith.constant 0 : i32
    %c0_i32_1 = arith.constant 0 : i32
    return %c0_i32, %c0_i32_0 : i32, i32
  }
  func.func @transform_10(%arg0: i32) -> (i32, i32) {
    %c0_i32 = arith.constant 0 : i32
    %c0_i32_0 = arith.constant 0 : i32
    return %arg0, %c0_i32 : i32, i32
  }
}

</mosaic_0001>

<llo_original>
// kernel: tpu_custom_call.1
$region0: #{tpu_custom_call.1}
  #allocation0 [shape = 'u32[]', space=smem, size = 0x4, offset = 0x4, fixed_abs, tag = 'smem constant byte address 0x4 - core index']
  #allocation1 [shape = 'u32[144,128]{1,0:T(1,128)}', space=vmem, size = 0x12000, scoped, tag = 'internal scratch']
  %s0 = inlined_call_operand.vmem [shape: s32[64,1], index: 0, kind: input, shape index: {}]
  %s1 = inlined_call_operand.hbm [shape: f32[128,128], index: 1, kind: input, shape index: {}]
  %s2 = inlined_call_operand.hbm [shape: f32[384,128], index: 2, kind: input, shape index: {}]
  %s3 = inlined_call_operand.vmem [shape: f32[1,128], index: 3, kind: input, shape index: {}]
  %s4 = inlined_call_operand.hbm [shape: f32[512,128], index: 4, kind: input, shape index: {}]
  %s5 = inlined_call_operand.vmem [shape: f32[1,128], index: 5, kind: input, shape index: {}]
  %s6 = inlined_call_operand.hbm [shape: f32[640,128], index: 6, kind: input, shape index: {}]
  %s7 = inlined_call_operand.vmem [shape: f32[1,128], index: 7, kind: input, shape index: {}]
  %s8 = inlined_call_operand.hbm [shape: f32[384,128], index: 8, kind: input, shape index: {}]
  %s9 = inlined_call_operand.vmem [shape: f32[1,128], index: 9, kind: input, shape index: {}]
  %s10 = inlined_call_operand.hbm [shape: f32[8,128], index: 10, kind: output, shape index: {}]
  %s11 = sld [smem:[#allocation0]]
  $region70: #{tpu_custom_call.1} parent=0
    _
  %s13 = ssub.s32 1, %s11
  %s14 = scalar_select 0, %s13, %s11
  $region1: #{tpu_custom_call.1} parent=0
    #allocation2 [shape = 'u8[65536]{0}', space=vmem, size = 0x10000, scoped, tag = 'input window, operand 1, single buffered']
    #allocation3 [shape = 's32[1]{0}', space=sflag, size = 0x4, scoped, tag = 'scoped memory for tpu_custom_call.1']
    #allocation4 [shape = 's32[1]{0}', space=sflag, size = 0x4, scoped, tag = 'scoped memory for tpu_custom_call.1']
    #allocation5 [shape = 'u8[196608]{0}', space=vmem, size = 0x30000, scoped, tag = 'input window, operand 2, single buffered']
    #allocation6 [shape = 's32[1]{0}', space=sflag, size = 0x4, scoped, tag = 'scoped memory for tpu_custom_call.1']
    #allocation7 [shape = 'u8[262144]{0}', space=vmem, size = 0x40000, scoped, tag = 'input window, operand 4, single buffered']
    #allocation8 [shape = 'u8[327680]{0}', space=vmem, size = 0x50000, scoped, tag = 'input window, operand 6, single buffered']
    #allocation9 [shape = 's32[1]{0}', space=sflag, size = 0x4, scoped, tag = 'scoped memory for tpu_custom_call.1']
    #allocation10 [shape = 'u8[196608]{0}', space=vmem, size = 0x30000, scoped, tag = 'input window, operand 8, single buffered']
    #allocation11 [shape = 'u8[4096]{0}', space=vmem, size = 0x1000, scoped, tag = 'output window, operand 0, single buffered']
    %15 = vsyncpa [#allocation3], 0
    %16 = vsyncpa [#allocation6], 0
    %17 = vsyncpa [#allocation9], 0
    %18 = vsyncpa [#allocation4], 0
    // Predicated region
    $region2: #{tpu_custom_call.1} parent=1 // pred_check
      _
    $region3: #{tpu_custom_call.1} parent=1 // pred_check_branch
      %20 = sbr.rel (0) target = $region5
    $region4: #{tpu_custom_call.1} parent=1 // pred_region
      _
    $region5: #{tpu_custom_call.1} parent=1 // pred_fallthru
      _
    // Predicated region
    $region6: #{tpu_custom_call.1} parent=1 // pred_check
      _
    $region7: #{tpu_custom_call.1} parent=1 // pred_check_branch
      %22 = sbr.rel (0) target = $region9
    $region8: #{tpu_custom_call.1} parent=1 // pred_region
      %s24 = ssub.s32 2048, 2048
      %25 = vsyncadd [#allocation3], %s24
      %s26 = sshll.u32 [#allocation2], 4
      %s27 = int_to_ptr.vmem [resolvable:$true] %s26
      %32 = dma.hbm_to_vmem [thread:$0]  %s1, 2048, %s27, [#allocation3], 128, 128, 8
    $region9: #{tpu_custom_call.1} parent=1 // pred_fallthru
      _
    // Predicated region
    $region10: #{tpu_custom_call.1} parent=1 // pred_check
      _
    $region11: #{tpu_custom_call.1} parent=1 // pred_check_branch
      %34 = sbr.rel (0) target = $region13
    $region12: #{tpu_custom_call.1} parent=1 // pred_region
      %s36 = ssub.s32 6144, 6144
      %37 = vsyncadd [#allocation6], %s36
      %s38 = sshll.u32 [#allocation5], 4
      %s39 = int_to_ptr.vmem [resolvable:$true] %s38
      %44 = dma.hbm_to_vmem [thread:$0]  %s2, 6144, %s39, [#allocation6], 128, 128, 8
    $region13: #{tpu_custom_call.1} parent=1 // pred_fallthru
      _
    // Predicated region
    $region14: #{tpu_custom_call.1} parent=1 // pred_check
      _
    $region15: #{tpu_custom_call.1} parent=1 // pred_check_branch
      %46 = sbr.rel (0) target = $region17
    $region16: #{tpu_custom_call.1} parent=1 // pred_region
      _
    $region17: #{tpu_custom_call.1} parent=1 // pred_fallthru
      _
    // Predicated region
    $region18: #{tpu_custom_call.1} parent=1 // pred_check
      _
    $region19: #{tpu_custom_call.1} parent=1 // pred_check_branch
      %48 = sbr.rel (0) target = $region21
    $region20: #{tpu_custom_call.1} parent=1 // pred_region
      %s50 = ssub.s32 8192, 8192
      %51 = vsyncadd [#allocation6], %s50
      %s52 = sshll.u32 [#allocation7], 4
      %s53 = int_to_ptr.vmem [resolvable:$true] %s52
      %58 = dma.hbm_to_vmem [thread:$0]  %s4, 8192, %s53, [#allocation6], 128, 128, 8
    $region21: #{tpu_custom_call.1} parent=1 // pred_fallthru
      _
    // Predicated region
    $region22: #{tpu_custom_call.1} parent=1 // pred_check
      _
    $region23: #{tpu_custom_call.1} parent=1 // pred_check_branch
      %60 = sbr.rel (0) target = $region25
    $region24: #{tpu_custom_call.1} parent=1 // pred_region
      _
    $region25: #{tpu_custom_call.1} parent=1 // pred_fallthru
      _
    // Predicated region
    $region26: #{tpu_custom_call.1} parent=1 // pred_check
      _
    $region27: #{tpu_custom_call.1} parent=1 // pred_check_branch
      %62 = sbr.rel (0) target = $region29
    $region28: #{tpu_custom_call.1} parent=1 // pred_region
      %s64 = ssub.s32 10240, 10240
      %65 = vsyncadd [#allocation9], %s64
      %s66 = sshll.u32 [#allocation8], 4
      %s67 = int_to_ptr.vmem [resolvable:$true] %s66
      %72 = dma.hbm_to_vmem [thread:$0]  %s6, 10240, %s67, [#allocation9], 128, 128, 8
    $region29: #{tpu_custom_call.1} parent=1 // pred_fallthru
      _
    // Predicated region
    $region30: #{tpu_custom_call.1} parent=1 // pred_check
      _
    $region31: #{tpu_custom_call.1} parent=1 // pred_check_branch
      %74 = sbr.rel (0) target = $region33
    $region32: #{tpu_custom_call.1} parent=1 // pred_region
      _
    $region33: #{tpu_custom_call.1} parent=1 // pred_fallthru
      _
    // Predicated region
    $region34: #{tpu_custom_call.1} parent=1 // pred_check
      _
    $region35: #{tpu_custom_call.1} parent=1 // pred_check_branch
      %76 = sbr.rel (0) target = $region37
    $region36: #{tpu_custom_call.1} parent=1 // pred_region
      %s78 = ssub.s32 6144, 6144
      %79 = vsyncadd [#allocation9], %s78
      %s80 = sshll.u32 [#allocation10], 4
      %s81 = int_to_ptr.vmem [resolvable:$true] %s80
      %86 = dma.hbm_to_vmem [thread:$0]  %s8, 6144, %s81, [#allocation9], 128, 128, 8
    $region37: #{tpu_custom_call.1} parent=1 // pred_fallthru
      _
    // Predicated region
    $region38: #{tpu_custom_call.1} parent=1 // pred_check
      _
    $region39: #{tpu_custom_call.1} parent=1 // pred_check_branch
      %88 = sbr.rel (0) target = $region41
    $region40: #{tpu_custom_call.1} parent=1 // pred_region
      _
    $region41: #{tpu_custom_call.1} parent=1 // pred_fallthru
      _
    // Predicated region
    $region42: #{tpu_custom_call.1} parent=1 // pred_check
      _
    $region43: #{tpu_custom_call.1} parent=1 // pred_check_branch
      %90 = sbr.rel (0) target = $region45
    $region44: #{tpu_custom_call.1} parent=1 // pred_region
      %91 = dma.done [#allocation3], 2048
    $region45: #{tpu_custom_call.1} parent=1 // pred_fallthru
      _
    // Predicated region
    $region46: #{tpu_custom_call.1} parent=1 // pred_check
      _
    $region47: #{tpu_custom_call.1} parent=1 // pred_check_branch
      %93 = sbr.rel (0) target = $region49
    $region48: #{tpu_custom_call.1} parent=1 // pred_region
      %94 = dma.done [#allocation6], 6144
    $region49: #{tpu_custom_call.1} parent=1 // pred_fallthru
      _
    // Predicated region
    $region50: #{tpu_custom_call.1} parent=1 // pred_check
      _
    $region51: #{tpu_custom_call.1} parent=1 // pred_check_branch
      %96 = sbr.rel (0) target = $region53
    $region52: #{tpu_custom_call.1} parent=1 // pred_region
      %97 = dma.done [#allocation6], 8192
    $region53: #{tpu_custom_call.1} parent=1 // pred_fallthru
      _
    // Predicated region
    $region54: #{tpu_custom_call.1} parent=1 // pred_check
      _
    $region55: #{tpu_custom_call.1} parent=1 // pred_check_branch
      %99 = sbr.rel (0) target = $region57
    $region56: #{tpu_custom_call.1} parent=1 // pred_region
      %100 = dma.done [#allocation9], 10240
    $region57: #{tpu_custom_call.1} parent=1 // pred_fallthru
      _
    // Predicated region
    $region58: #{tpu_custom_call.1} parent=1 // pred_check
      _
    $region59: #{tpu_custom_call.1} parent=1 // pred_check_branch
      %102 = sbr.rel (0) target = $region61
    $region60: #{tpu_custom_call.1} parent=1 // pred_region
      %103 = dma.done [#allocation9], 6144
    $region61: #{tpu_custom_call.1} parent=1 // pred_fallthru
      _
    %v104 = vld [vmem:[%s0] sm:$0xff]
    %v105 = vld [vmem:[%s0 + $0x8] sm:$0xff]
    %v106 = vld [vmem:[%s0 + $0x10] sm:$0xff]
    %v107 = vld [vmem:[%s0 + $0x18] sm:$0xff]
    %v108 = vld [vmem:[%s0 + $0x20] sm:$0xff]
    %v109 = vld [vmem:[%s0 + $0x28] sm:$0xff]
    %v110 = vld [vmem:[%s0 + $0x30] sm:$0xff]
    %v111 = vld [vmem:[%s0 + $0x38] sm:$0xff]
    %v112 = vlaneseq
    %v113 = vand.u32 %v112, 127
    %114 = vset.pattern.permute.xlu0 0
    %115 = vperm.xlu0 %114, %v104
    %v116 = vpop.permute.xlu0 %115
    %117 = vset.pattern.permute.xlu0 0
    %118 = vperm.xlu0 %117, %v105
    %v119 = vpop.permute.xlu0 %118
    %120 = vset.pattern.permute.xlu0 0
    %121 = vperm.xlu0 %120, %v106
    %v122 = vpop.permute.xlu0 %121
    %123 = vset.pattern.permute.xlu0 0
    %124 = vperm.xlu0 %123, %v107
    %v125 = vpop.permute.xlu0 %124
    %126 = vset.pattern.permute.xlu0 0
    %127 = vperm.xlu0 %126, %v108
    %v128 = vpop.permute.xlu0 %127
    %129 = vset.pattern.permute.xlu0 0
    %130 = vperm.xlu0 %129, %v109
    %v131 = vpop.permute.xlu0 %130
    %132 = vset.pattern.permute.xlu0 0
    %133 = vperm.xlu0 %132, %v110
    %v134 = vpop.permute.xlu0 %133
    %135 = vset.pattern.permute.xlu0 0
    %136 = vperm.xlu0 %135, %v111
    %v137 = vpop.permute.xlu0 %136
    %vm138 = vcmp.eq.s32.totalorder %v113, %v116
    %vm139 = vcmp.eq.s32.totalorder %v113, %v119
    %vm140 = vcmp.eq.s32.totalorder %v113, %v122
    %vm141 = vcmp.eq.s32.totalorder %v113, %v125
    %vm142 = vcmp.eq.s32.totalorder %v113, %v128
    %vm143 = vcmp.eq.s32.totalorder %v113, %v131
    %vm144 = vcmp.eq.s32.totalorder %v113, %v134
    %vm145 = vcmp.eq.s32.totalorder %v113, %v137
    %v146 = vsel %vm138, 1, 0
    %v147 = vsel %vm139, 1, 0
    %v148 = vsel %vm140, 1, 0
    %v149 = vsel %vm141, 1, 0
    %v150 = vsel %vm142, 1, 0
    %v151 = vsel %vm143, 1, 0
    %v152 = vsel %vm144, 1, 0
    %v153 = vsel %vm145, 1, 0
    %v154 = vcvt.s32.f32 %v146
    %v155 = vcvt.s32.f32 %v147
    %v156 = vcvt.s32.f32 %v148
    %v157 = vcvt.s32.f32 %v149
    %v158 = vcvt.s32.f32 %v150
    %v159 = vcvt.s32.f32 %v151
    %v160 = vcvt.s32.f32 %v152
    %v161 = vcvt.s32.f32 %v153
    %v162 = vld [vmem:[#allocation2] sm:$0xff]
    %v163 = vld [vmem:[#allocation2 + $0x8] sm:$0xff]
    %v164 = vld [vmem:[#allocation2 + $0x10] sm:$0xff]
    %v165 = vld [vmem:[#allocation2 + $0x18] sm:$0xff]
    %v166 = vld [vmem:[#allocation2 + $0x20] sm:$0xff]
    %v167 = vld [vmem:[#allocation2 + $0x28] sm:$0xff]
    %v168 = vld [vmem:[#allocation2 + $0x30] sm:$0xff]
    %v169 = vld [vmem:[#allocation2 + $0x38] sm:$0xff]
    %v170 = vld [vmem:[#allocation2 + $0x40] sm:$0xff]
    %v171 = vld [vmem:[#allocation2 + $0x48] sm:$0xff]
    %v172 = vld [vmem:[#allocation2 + $0x50] sm:$0xff]
    %v173 = vld [vmem:[#allocation2 + $0x58] sm:$0xff]
    %v174 = vld [vmem:[#allocation2 + $0x60] sm:$0xff]
    %v175 = vld [vmem:[#allocation2 + $0x68] sm:$0xff]
    %v176 = vld [vmem:[#allocation2 + $0x70] sm:$0xff]
    %v177 = vld [vmem:[#allocation2 + $0x78] sm:$0xff]
    %178 = vmatprep.subr.mxu0 0.0
    %179 = vmatpush1.msra.mxu0 %v177
    %180 = vmatprep.subr.mxu0 0.0
    %181 = vmatpush1.msra.mxu0 %v176
    %182 = vmatprep.subr.mxu0 0.0
    %183 = vmatpush1.msra.mxu0 %v175
    %184 = vmatprep.subr.mxu0 0.0
    %185 = vmatpush1.msra.mxu0 %v174
    %186 = vmatprep.subr.mxu0 0.0
    %187 = vmatpush1.msra.mxu0 %v173
    %188 = vmatprep.subr.mxu0 0.0
    %189 = vmatpush1.msra.mxu0 %v172
    %190 = vmatprep.subr.mxu0 0.0
    %191 = vmatpush1.msra.mxu0 %v171
    %192 = vmatprep.subr.mxu0 0.0
    %193 = vmatpush1.msra.mxu0 %v170
    %194 = vmatprep.subr.mxu0 0.0
    %195 = vmatpush1.msra.mxu0 %v169
    %196 = vmatprep.subr.mxu0 0.0
    %197 = vmatpush1.msra.mxu0 %v168
    %198 = vmatprep.subr.mxu0 0.0
    %199 = vmatpush1.msra.mxu0 %v167
    %200 = vmatprep.subr.mxu0 0.0
    %201 = vmatpush1.msra.mxu0 %v166
    %202 = vmatprep.subr.mxu0 0.0
    %203 = vmatpush1.msra.mxu0 %v165
    %204 = vmatprep.subr.mxu0 0.0
    %205 = vmatpush1.msra.mxu0 %v164
    %206 = vmatprep.subr.mxu0 0.0
    %207 = vmatpush1.msra.mxu0 %v163
    %208 = vmatprep.subr.mxu0 0.0
    %209 = vmatpush1.msra.mxu0 %v162
    %210 = vmatprep.subr.mxu0 0.0
    %211 = vmatpush2.msra.mxu0 0.0
    %212 = vmatprep.subr.mxu0 0.0
    %213 = vmatpush2.msra.mxu0 0.0
    %214 = vmatprep.subr.mxu0 0.0
    %215 = vmatpush2.msra.mxu0 0.0
    %216 = vmatprep.subr.mxu0 0.0
    %217 = vmatpush2.msra.mxu0 0.0
    %218 = vmatprep.subr.mxu0 0.0
    %219 = vmatpush2.msra.mxu0 0.0
    %220 = vmatprep.subr.mxu0 0.0
    %221 = vmatpush2.msra.mxu0 0.0
    %222 = vmatprep.subr.mxu0 0.0
    %223 = vmatpush2.msra.mxu0 0.0
    %224 = vmatprep.subr.mxu0 0.0
    %225 = vmatpush2.msra.mxu0 0.0
    %226 = vmatprep.subr.mxu0 0.0
    %227 = vmatpush2.msra.mxu0 0.0
    %228 = vmatprep.subr.mxu0 0.0
    %229 = vmatpush2.msra.mxu0 0.0
    %230 = vmatprep.subr.mxu0 0.0
    %231 = vmatpush2.msra.mxu0 0.0
    %232 = vmatprep.subr.mxu0 0.0
    %233 = vmatpush2.msra.mxu0 0.0
    %234 = vmatprep.subr.mxu0 0.0
    %235 = vmatpush2.msra.mxu0 0.0
    %236 = vmatprep.subr.mxu0 0.0
    %237 = vmatpush2.msra.mxu0 0.0
    %238 = vmatprep.subr.mxu0 0.0
    %239 = vmatpush2.msra.mxu0 0.0
    %240 = vmatprep.subr.mxu0 0.0
    %241 = vmatpush2.msra.mxu0 0.0
    %242 = vmatprep.mubr.f32.mxu0 0.0
    %243 = vmatmul.mubr.f32.gmra.mxu0 %v154
    %v244 = vpop.f32.mrf.mxu0
    %v245 = vadd.f32 0.0, %v244
    %v246 = vpop.f32.mrf.mxu0
    %247 = vmatprep.mubr.f32.mxu0 0.0
    %248 = vmatmul.mubr.f32.gmra.mxu0 %v155
    %v249 = vpop.f32.mrf.mxu0
    %v250 = vadd.f32 0.0, %v249
    %v251 = vpop.f32.mrf.mxu0
    %252 = vmatprep.mubr.f32.mxu0 0.0
    %253 = vmatmul.mubr.f32.gmra.mxu0 %v156
    %v254 = vpop.f32.mrf.mxu0
    %v255 = vadd.f32 0.0, %v254
    %v256 = vpop.f32.mrf.mxu0
    %257 = vmatprep.mubr.f32.mxu0 0.0
    %258 = vmatmul.mubr.f32.gmra.mxu0 %v157
    %v259 = vpop.f32.mrf.mxu0
    %v260 = vadd.f32 0.0, %v259
    %v261 = vpop.f32.mrf.mxu0
    %262 = vmatprep.mubr.f32.mxu0 0.0
    %263 = vmatmul.mubr.f32.gmra.mxu0 %v158
    %v264 = vpop.f32.mrf.mxu0
    %v265 = vadd.f32 0.0, %v264
    %v266 = vpop.f32.mrf.mxu0
    %267 = vmatprep.mubr.f32.mxu0 0.0
    %268 = vmatmul.mubr.f32.gmra.mxu0 %v159
    %v269 = vpop.f32.mrf.mxu0
    %v270 = vadd.f32 0.0, %v269
    %v271 = vpop.f32.mrf.mxu0
    %272 = vmatprep.mubr.f32.mxu0 0.0
    %273 = vmatmul.mubr.f32.gmra.mxu0 %v160
    %v274 = vpop.f32.mrf.mxu0
    %v275 = vadd.f32 0.0, %v274
    %v276 = vpop.f32.mrf.mxu0
    %277 = vmatprep.mubr.f32.mxu0 0.0
    %278 = vmatmul.mubr.f32.gmra.mxu0 %v161
    %v279 = vpop.f32.mrf.mxu0
    %v280 = vadd.f32 0.0, %v279
    %v281 = vpop.f32.mrf.mxu0
    %282 = vdwg.mxu0
    %v291 = vrot.slane %v245, 6
    %v292 = vrot.slane %v250, 6
    %v293 = vrot.slane %v255, 6
    %v294 = vrot.slane %v260, 6
    %v295 = vrot.slane %v265, 6
    %v296 = vrot.slane %v270, 6
    %v297 = vrot.slane %v275, 6
    %v298 = vrot.slane %v280, 6
    %vm307 = vcmask 1041408
    %v308 = vsel %vm307, 0.0, %v291
    %v309 = vsel %vm307, 0.0, %v292
    %v310 = vsel %vm307, 0.0, %v293
    %v311 = vsel %vm307, 0.0, %v294
    %v312 = vsel %vm307, 0.0, %v295
    %v313 = vsel %vm307, 0.0, %v296
    %v314 = vsel %vm307, 0.0, %v297
    %v315 = vsel %vm307, 0.0, %v298
    %v316 = vsel %vm307, %v291, 0.0
    %v317 = vsel %vm307, %v292, 0.0
    %v318 = vsel %vm307, %v293, 0.0
    %v319 = vsel %vm307, %v294, 0.0
    %v320 = vsel %vm307, %v295, 0.0
    %v321 = vsel %vm307, %v296, 0.0
    %v322 = vsel %vm307, %v297, 0.0
    %v323 = vsel %vm307, %v298, 0.0
    %v324 = vld [vmem:[#allocation5] sm:$0xff]
    %v325 = vld [vmem:[#allocation5 + $0x8] sm:$0xff]
    %v326 = vld [vmem:[#allocation5 + $0x10] sm:$0xff]
    %v327 = vld [vmem:[#allocation5 + $0x18] sm:$0xff]
    %v328 = vld [vmem:[#allocation5 + $0x20] sm:$0xff]
    %v329 = vld [vmem:[#allocation5 + $0x28] sm:$0xff]
    %v330 = vld [vmem:[#allocation5 + $0x30] sm:$0xff]
    %v331 = vld [vmem:[#allocation5 + $0x38] sm:$0xff]
    %v332 = vld [vmem:[#allocation5 + $0x40] sm:$0xff]
    %v333 = vld [vmem:[#allocation5 + $0x48] sm:$0xff]
    %v334 = vld [vmem:[#allocation5 + $0x50] sm:$0xff]
    %v335 = vld [vmem:[#allocation5 + $0x58] sm:$0xff]
    %v336 = vld [vmem:[#allocation5 + $0x60] sm:$0xff]
    %v337 = vld [vmem:[#allocation5 + $0x68] sm:$0xff]
    %v338 = vld [vmem:[#allocation5 + $0x70] sm:$0xff]
    %v339 = vld [vmem:[#allocation5 + $0x78] sm:$0xff]
    %v340 = vld [vmem:[#allocation5 + $0x80] sm:$0xff]
    %v341 = vld [vmem:[#allocation5 + $0x88] sm:$0xff]
    %v342 = vld [vmem:[#allocation5 + $0x90] sm:$0xff]
    %v343 = vld [vmem:[#allocation5 + $0x98] sm:$0xff]
    %v344 = vld [vmem:[#allocation5 + $0xa0] sm:$0xff]
    %v345 = vld [vmem:[#allocation5 + $0xa8] sm:$0xff]
    %v346 = vld [vmem:[#allocation5 + $0xb0] sm:$0xff]
    %v347 = vld [vmem:[#allocation5 + $0xb8] sm:$0xff]
    %v348 = vld [vmem:[#allocation5 + $0xc0] sm:$0xff]
    %v349 = vld [vmem:[#allocation5 + $0xc8] sm:$0xff]
    %v350 = vld [vmem:[#allocation5 + $0xd0] sm:$0xff]
    %v351 = vld [vmem:[#allocation5 + $0xd8] sm:$0xff]
    %v352 = vld [vmem:[#allocation5 + $0xe0] sm:$0xff]
    %v353 = vld [vmem:[#allocation5 + $0xe8] sm:$0xff]
    %v354 = vld [vmem:[#allocation5 + $0xf0] sm:$0xff]
    %v355 = vld [vmem:[#allocation5 + $0xf8] sm:$0xff]
    %v356 = vld [vmem:[#allocation5 + $0x100] sm:$0xff]
    %v357 = vld [vmem:[#allocation5 + $0x108] sm:$0xff]
    %v358 = vld [vmem:[#allocation5 + $0x110] sm:$0xff]
    %v359 = vld [vmem:[#allocation5 + $0x118] sm:$0xff]
    %v360 = vld [vmem:[#allocation5 + $0x120] sm:$0xff]
    %v361 = vld [vmem:[#allocation5 + $0x128] sm:$0xff]
    %v362 = vld [vmem:[#allocation5 + $0x130] sm:$0xff]
    %v363 = vld [vmem:[#allocation5 + $0x138] sm:$0xff]
    %v364 = vld [vmem:[#allocation5 + $0x140] sm:$0xff]
    %v365 = vld [vmem:[#allocation5 + $0x148] sm:$0xff]
    %v366 = vld [vmem:[#allocation5 + $0x150] sm:$0xff]
    %v367 = vld [vmem:[#allocation5 + $0x158] sm:$0xff]
    %v368 = vld [vmem:[#allocation5 + $0x160] sm:$0xff]
    %v369 = vld [vmem:[#allocation5 + $0x168] sm:$0xff]
    %v370 = vld [vmem:[#allocation5 + $0x170] sm:$0xff]
    %v371 = vld [vmem:[#allocation5 + $0x178] sm:$0xff]
    %v372 = vld [vmem:[%s3] sm:$0x1]
    %v389 = vcombine.high %v308, %v308
    %v391 = vunpack.c.l.s4 1983009808
    %v392 = vunpack.c.0.s8 %v391
    %v393 = vlaneseq
    %v394 = vshrl.u32 %v393, 7
    %v395 = vsub.s32 %v392, %v394
    %v396 = vrot.slane %v308, %v395
    %v398 = vunpack.c.l.s4 1983009808
    %v399 = vunpack.c.0.s8 %v398
    %v400 = vlaneseq
    %v401 = vshrl.u32 %v400, 7
    %v402 = vsub.s32 %v399, %v401
    %v403 = vrot.slane %v389, %v402
    %v404 = vcombine.high %v396, %v396
    %v405 = vcombine.high %v403, %v403
    %v407 = vunpack.c.l.s4 1983009808
    %v408 = vunpack.c.0.s8 %v407
    %v409 = vlaneseq
    %v410 = vshrl.u32 %v409, 7
    %v411 = vsub.s32 %v408, %v410
    %v412 = vrot.slane %v316, %v411
    %v413 = vcombine.high %v309, %v309
    %v415 = vunpack.c.l.s4 1983009808
    %v416 = vunpack.c.0.s8 %v415
    %v417 = vlaneseq
    %v418 = vshrl.u32 %v417, 7
    %v419 = vsub.s32 %v416, %v418
    %v420 = vrot.slane %v309, %v419
    %v422 = vunpack.c.l.s4 1983009808
    %v423 = vunpack.c.0.s8 %v422
    %v424 = vlaneseq
    %v425 = vshrl.u32 %v424, 7
    %v426 = vsub.s32 %v423, %v425
    %v427 = vrot.slane %v413, %v426
    %v428 = vcombine.high %v420, %v420
    %v429 = vcombine.high %v427, %v427
    %v431 = vunpack.c.l.s4 1983009808
    %v432 = vunpack.c.0.s8 %v431
    %v433 = vlaneseq
    %v434 = vshrl.u32 %v433, 7
    %v435 = vsub.s32 %v432, %v434
    %v436 = vrot.slane %v317, %v435
    %v437 = vcombine.high %v310, %v310
    %v439 = vunpack.c.l.s4 1983009808
    %v440 = vunpack.c.0.s8 %v439
    %v441 = vlaneseq
    %v442 = vshrl.u32 %v441, 7
    %v443 = vsub.s32 %v440, %v442
    %v444 = vrot.slane %v310, %v443
    %v446 = vunpack.c.l.s4 1983009808
    %v447 = vunpack.c.0.s8 %v446
    %v448 = vlaneseq
    %v449 = vshrl.u32 %v448, 7
    %v450 = vsub.s32 %v447, %v449
    %v451 = vrot.slane %v437, %v450
    %v452 = vcombine.high %v444, %v444
    %v453 = vcombine.high %v451, %v451
    %v455 = vunpack.c.l.s4 1983009808
    %v456 = vunpack.c.0.s8 %v455
    %v457 = vlaneseq
    %v458 = vshrl.u32 %v457, 7
    %v459 = vsub.s32 %v456, %v458
    %v460 = vrot.slane %v318, %v459
    %v461 = vcombine.high %v311, %v311
    %v463 = vunpack.c.l.s4 1983009808
    %v464 = vunpack.c.0.s8 %v463
    %v465 = vlaneseq
    %v466 = vshrl.u32 %v465, 7
    %v467 = vsub.s32 %v464, %v466
    %v468 = vrot.slane %v311, %v467
    %v470 = vunpack.c.l.s4 1983009808
    %v471 = vunpack.c.0.s8 %v470
    %v472 = vlaneseq
    %v473 = vshrl.u32 %v472, 7
    %v474 = vsub.s32 %v471, %v473
    %v475 = vrot.slane %v461, %v474
    %v476 = vcombine.high %v468, %v468
    %v477 = vcombine.high %v475, %v475
    %v479 = vunpack.c.l.s4 1983009808
    %v480 = vunpack.c.0.s8 %v479
    %v481 = vlaneseq
    %v482 = vshrl.u32 %v481, 7
    %v483 = vsub.s32 %v480, %v482
    %v484 = vrot.slane %v319, %v483
    %v485 = vcombine.high %v312, %v312
    %v487 = vunpack.c.l.s4 1983009808
    %v488 = vunpack.c.0.s8 %v487
    %v489 = vlaneseq
    %v490 = vshrl.u32 %v489, 7
    %v491 = vsub.s32 %v488, %v490
    %v492 = vrot.slane %v312, %v491
    %v494 = vunpack.c.l.s4 1983009808
    %v495 = vunpack.c.0.s8 %v494
    %v496 = vlaneseq
    %v497 = vshrl.u32 %v496, 7
    %v498 = vsub.s32 %v495, %v497
    %v499 = vrot.slane %v485, %v498
    %v500 = vcombine.high %v492, %v492
    %v501 = vcombine.high %v499, %v499
    %v503 = vunpack.c.l.s4 1983009808
    %v504 = vunpack.c.0.s8 %v503
    %v505 = vlaneseq
    %v506 = vshrl.u32 %v505, 7
    %v507 = vsub.s32 %v504, %v506
    %v508 = vrot.slane %v320, %v507
    %v509 = vcombine.high %v313, %v313
    %v511 = vunpack.c.l.s4 1983009808
    %v512 = vunpack.c.0.s8 %v511
    %v513 = vlaneseq
    %v514 = vshrl.u32 %v513, 7
    %v515 = vsub.s32 %v512, %v514
    %v516 = vrot.slane %v313, %v515
    %v518 = vunpack.c.l.s4 1983009808
    %v519 = vunpack.c.0.s8 %v518
    %v520 = vlaneseq
    %v521 = vshrl.u32 %v520, 7
    %v522 = vsub.s32 %v519, %v521
    %v523 = vrot.slane %v509, %v522
    %v524 = vcombine.high %v516, %v516
    %v525 = vcombine.high %v523, %v523
    %v527 = vunpack.c.l.s4 1983009808
    %v528 = vunpack.c.0.s8 %v527
    %v529 = vlaneseq
    %v530 = vshrl.u32 %v529, 7
    %v531 = vsub.s32 %v528, %v530
    %v532 = vrot.slane %v321, %v531
    %v533 = vcombine.high %v314, %v314
    %v535 = vunpack.c.l.s4 1983009808
    %v536 = vunpack.c.0.s8 %v535
    %v537 = vlaneseq
    %v538 = vshrl.u32 %v537, 7
    %v539 = vsub.s32 %v536, %v538
    %v540 = vrot.slane %v314, %v539
    %v542 = vunpack.c.l.s4 1983009808
    %v543 = vunpack.c.0.s8 %v542
    %v544 = vlaneseq
    %v545 = vshrl.u32 %v544, 7
    %v546 = vsub.s32 %v543, %v545
    %v547 = vrot.slane %v533, %v546
    %v548 = vcombine.high %v540, %v540
    %v549 = vcombine.high %v547, %v547
    %v551 = vunpack.c.l.s4 1983009808
    %v552 = vunpack.c.0.s8 %v551
    %v553 = vlaneseq
    %v554 = vshrl.u32 %v553, 7
    %v555 = vsub.s32 %v552, %v554
    %v556 = vrot.slane %v322, %v555
    %v557 = vcombine.high %v315, %v315
    %v559 = vunpack.c.l.s4 1983009808
    %v560 = vunpack.c.0.s8 %v559
    %v561 = vlaneseq
    %v562 = vshrl.u32 %v561, 7
    %v563 = vsub.s32 %v560, %v562
    %v564 = vrot.slane %v315, %v563
    %v566 = vunpack.c.l.s4 1983009808
    %v567 = vunpack.c.0.s8 %v566
    %v568 = vlaneseq
    %v569 = vshrl.u32 %v568, 7
    %v570 = vsub.s32 %v567, %v569
    %v571 = vrot.slane %v557, %v570
    %v572 = vcombine.high %v564, %v564
    %v573 = vcombine.high %v571, %v571
    %v575 = vunpack.c.l.s4 1983009808
    %v576 = vunpack.c.0.s8 %v575
    %v577 = vlaneseq
    %v578 = vshrl.u32 %v577, 7
    %v579 = vsub.s32 %v576, %v578
    %v580 = vrot.slane %v323, %v579
    %v581 = vcombine.high %v412, %v412
    %v582 = vcombine.high %v436, %v436
    %v583 = vcombine.high %v460, %v460
    %v584 = vcombine.high %v484, %v484
    %v585 = vcombine.high %v508, %v508
    %v586 = vcombine.high %v532, %v532
    %v587 = vcombine.high %v556, %v556
    %v588 = vcombine.high %v580, %v580
    %vm589 = vcmask 1040384
    %vm590 = vcmask 1042434
    %vm591 = vmor %vm589, %vm590
    %vm592 = vcmask 1044484
    %vm593 = vmor %vm591, %vm592
    %vm594 = vcmask 1046534
    %vm595 = vmor %vm593, %vm594
    %v596 = vrot.slane %v396, 7
    %v597 = vrot.slane %v596, 2
    %v598 = vrot.slane %v404, 7
    %v599 = vsel %vm595, %v597, %v598
    %v600 = vrot.slane %v598, 2
    %v601 = vrot.slane %v403, 7
    %v602 = vsel %vm595, %v600, %v601
    %v603 = vrot.slane %v601, 2
    %v604 = vrot.slane %v405, 7
    %v605 = vsel %vm595, %v603, %v604
    %v606 = vrot.slane %v604, 2
    %v607 = vrot.slane %v412, 7
    %v608 = vsel %vm595, %v606, %v607
    %v609 = vrot.slane %v607, 2
    %v610 = vrot.slane %v581, 7
    %v611 = vsel %vm595, %v609, %v610
    %v612 = vrot.slane %v420, 7
    %v613 = vrot.slane %v612, 2
    %v614 = vrot.slane %v428, 7
    %v615 = vsel %vm595, %v613, %v614
    %v616 = vrot.slane %v614, 2
    %v617 = vrot.slane %v427, 7
    %v618 = vsel %vm595, %v616, %v617
    %v619 = vrot.slane %v617, 2
    %v620 = vrot.slane %v429, 7
    %v621 = vsel %vm595, %v619, %v620
    %v622 = vrot.slane %v620, 2
    %v623 = vrot.slane %v436, 7
    %v624 = vsel %vm595, %v622, %v623
    %v625 = vrot.slane %v623, 2
    %v626 = vrot.slane %v582, 7
    %v627 = vsel %vm595, %v625, %v626
    %v628 = vrot.slane %v444, 7
    %v629 = vrot.slane %v628, 2
    %v630 = vrot.slane %v452, 7
    %v631 = vsel %vm595, %v629, %v630
    %v632 = vrot.slane %v630, 2
    %v633 = vrot.slane %v451, 7
    %v634 = vsel %vm595, %v632, %v633
    %v635 = vrot.slane %v633, 2
    %v636 = vrot.slane %v453, 7
    %v637 = vsel %vm595, %v635, %v636
    %v638 = vrot.slane %v636, 2
    %v639 = vrot.slane %v460, 7
    %v640 = vsel %vm595, %v638, %v639
    %v641 = vrot.slane %v639, 2
    %v642 = vrot.slane %v583, 7
    %v643 = vsel %vm595, %v641, %v642
    %v644 = vrot.slane %v468, 7
    %v645 = vrot.slane %v644, 2
    %v646 = vrot.slane %v476, 7
    %v647 = vsel %vm595, %v645, %v646
    %v648 = vrot.slane %v646, 2
    %v649 = vrot.slane %v475, 7
    %v650 = vsel %vm595, %v648, %v649
    %v651 = vrot.slane %v649, 2
    %v652 = vrot.slane %v477, 7
    %v653 = vsel %vm595, %v651, %v652
    %v654 = vrot.slane %v652, 2
    %v655 = vrot.slane %v484, 7
    %v656 = vsel %vm595, %v654, %v655
    %v657 = vrot.slane %v655, 2
    %v658 = vrot.slane %v584, 7
    %v659 = vsel %vm595, %v657, %v658
    %v660 = vrot.slane %v492, 7
    %v661 = vrot.slane %v660, 2
    %v662 = vrot.slane %v500, 7
    %v663 = vsel %vm595, %v661, %v662
    %v664 = vrot.slane %v662, 2
    %v665 = vrot.slane %v499, 7
    %v666 = vsel %vm595, %v664, %v665
    %v667 = vrot.slane %v665, 2
    %v668 = vrot.slane %v501, 7
    %v669 = vsel %vm595, %v667, %v668
    %v670 = vrot.slane %v668, 2
    %v671 = vrot.slane %v508, 7
    %v672 = vsel %vm595, %v670, %v671
    %v673 = vrot.slane %v671, 2
    %v674 = vrot.slane %v585, 7
    %v675 = vsel %vm595, %v673, %v674
    %v676 = vrot.slane %v516, 7
    %v677 = vrot.slane %v676, 2
    %v678 = vrot.slane %v524, 7
    %v679 = vsel %vm595, %v677, %v678
    %v680 = vrot.slane %v678, 2
    %v681 = vrot.slane %v523, 7
    %v682 = vsel %vm595, %v680, %v681
    %v683 = vrot.slane %v681, 2
    %v684 = vrot.slane %v525, 7
    %v685 = vsel %vm595, %v683, %v684
    %v686 = vrot.slane %v684, 2
    %v687 = vrot.slane %v532, 7
    %v688 = vsel %vm595, %v686, %v687
    %v689 = vrot.slane %v687, 2
    %v690 = vrot.slane %v586, 7
    %v691 = vsel %vm595, %v689, %v690
    %v692 = vrot.slane %v540, 7
    %v693 = vrot.slane %v692, 2
    %v694 = vrot.slane %v548, 7
    %v695 = vsel %vm595, %v693, %v694
    %v696 = vrot.slane %v694, 2
    %v697 = vrot.slane %v547, 7
    %v698 = vsel %vm595, %v696, %v697
    %v699 = vrot.slane %v697, 2
    %v700 = vrot.slane %v549, 7
    %v701 = vsel %vm595, %v699, %v700
    %v702 = vrot.slane %v700, 2
    %v703 = vrot.slane %v556, 7
    %v704 = vsel %vm595, %v702, %v703
    %v705 = vrot.slane %v703, 2
    %v706 = vrot.slane %v587, 7
    %v707 = vsel %vm595, %v705, %v706
    %v708 = vrot.slane %v564, 7
    %v709 = vrot.slane %v708, 2
    %v710 = vrot.slane %v572, 7
    %v711 = vsel %vm595, %v709, %v710
    %v712 = vrot.slane %v710, 2
    %v713 = vrot.slane %v571, 7
    %v714 = vsel %vm595, %v712, %v713
    %v715 = vrot.slane %v713, 2
    %v716 = vrot.slane %v573, 7
    %v717 = vsel %vm595, %v715, %v716
    %v718 = vrot.slane %v716, 2
    %v719 = vrot.slane %v580, 7
    %v720 = vsel %vm595, %v718, %v719
    %v721 = vrot.slane %v719, 2
    %v722 = vrot.slane %v588, 7
    %v723 = vsel %vm595, %v721, %v722
    %v724 = vcombine.low %v599, %v602
    %v725 = vcombine.low %v605, %v608
    %v727 = vunpack.c.l.s4 1983009808
    %v728 = vunpack.c.0.s8 %v727
    %v729 = vlaneseq
    %v730 = vshrl.u32 %v729, 7
    %v731 = vsub.s32 %v728, %v730
    %v732 = vrot.slane %v724, %v731
    %v734 = vunpack.c.l.s4 1983009808
    %v735 = vunpack.c.0.s8 %v734
    %v736 = vlaneseq
    %v737 = vshrl.u32 %v736, 7
    %v738 = vsub.s32 %v735, %v737
    %v739 = vrot.slane %v725, %v738
    %v740 = vcombine.low %v732, %v739
    %v741 = vcombine.low %v611, %v615
    %v742 = vcombine.low %v618, %v621
    %v744 = vunpack.c.l.s4 1983009808
    %v745 = vunpack.c.0.s8 %v744
    %v746 = vlaneseq
    %v747 = vshrl.u32 %v746, 7
    %v748 = vsub.s32 %v745, %v747
    %v749 = vrot.slane %v741, %v748
    %v751 = vunpack.c.l.s4 1983009808
    %v752 = vunpack.c.0.s8 %v751
    %v753 = vlaneseq
    %v754 = vshrl.u32 %v753, 7
    %v755 = vsub.s32 %v752, %v754
    %v756 = vrot.slane %v742, %v755
    %v757 = vcombine.low %v749, %v756
    %v758 = vcombine.low %v624, %v627
    %v759 = vcombine.low %v631, %v634
    %v761 = vunpack.c.l.s4 1983009808
    %v762 = vunpack.c.0.s8 %v761
    %v763 = vlaneseq
    %v764 = vshrl.u32 %v763, 7
    %v765 = vsub.s32 %v762, %v764
    %v766 = vrot.slane %v758, %v765
    %v768 = vunpack.c.l.s4 1983009808
    %v769 = vunpack.c.0.s8 %v768
    %v770 = vlaneseq
    %v771 = vshrl.u32 %v770, 7
    %v772 = vsub.s32 %v769, %v771
    %v773 = vrot.slane %v759, %v772
    %v774 = vcombine.low %v766, %v773
    %v775 = vcombine.low %v637, %v640
    %v776 = vcombine.low %v643, %v647
    %v778 = vunpack.c.l.s4 1983009808
    %v779 = vunpack.c.0.s8 %v778
    %v780 = vlaneseq
    %v781 = vshrl.u32 %v780, 7
    %v782 = vsub.s32 %v779, %v781
    %v783 = vrot.slane %v775, %v782
    %v785 = vunpack.c.l.s4 1983009808
    %v786 = vunpack.c.0.s8 %v785
    %v787 = vlaneseq
    %v788 = vshrl.u32 %v787, 7
    %v789 = vsub.s32 %v786, %v788
    %v790 = vrot.slane %v776, %v789
    %v791 = vcombine.low %v783, %v790
    %v792 = vcombine.low %v650, %v653
    %v793 = vcombine.low %v656, %v659
    %v795 = vunpack.c.l.s4 1983009808
    %v796 = vunpack.c.0.s8 %v795
    %v797 = vlaneseq
    %v798 = vshrl.u32 %v797, 7
    %v799 = vsub.s32 %v796, %v798
    %v800 = vrot.slane %v792, %v799
    %v802 = vunpack.c.l.s4 1983009808
    %v803 = vunpack.c.0.s8 %v802
    %v804 = vlaneseq
    %v805 = vshrl.u32 %v804, 7
    %v806 = vsub.s32 %v803, %v805
    %v807 = vrot.slane %v793, %v806
    %v808 = vcombine.low %v800, %v807
    %v809 = vcombine.low %v663, %v666
    %v810 = vcombine.low %v669, %v672
    %v812 = vunpack.c.l.s4 1983009808
    %v813 = vunpack.c.0.s8 %v812
    %v814 = vlaneseq
    %v815 = vshrl.u32 %v814, 7
    %v816 = vsub.s32 %v813, %v815
    %v817 = vrot.slane %v809, %v816
    %v819 = vunpack.c.l.s4 1983009808
    %v820 = vunpack.c.0.s8 %v819
    %v821 = vlaneseq
    %v822 = vshrl.u32 %v821, 7
    %v823 = vsub.s32 %v820, %v822
    %v824 = vrot.slane %v810, %v823
    %v825 = vcombine.low %v817, %v824
    %v826 = vcombine.low %v675, %v679
    %v827 = vcombine.low %v682, %v685
    %v829 = vunpack.c.l.s4 1983009808
    %v830 = vunpack.c.0.s8 %v829
    %v831 = vlaneseq
    %v832 = vshrl.u32 %v831, 7
    %v833 = vsub.s32 %v830, %v832
    %v834 = vrot.slane %v826, %v833
    %v836 = vunpack.c.l.s4 1983009808
    %v837 = vunpack.c.0.s8 %v836
    %v838 = vlaneseq
    %v839 = vshrl.u32 %v838, 7
    %v840 = vsub.s32 %v837, %v839
    %v841 = vrot.slane %v827, %v840
    %v842 = vcombine.low %v834, %v841
    %v843 = vcombine.low %v688, %v691
    %v844 = vcombine.low %v695, %v698
    %v846 = vunpack.c.l.s4 1983009808
    %v847 = vunpack.c.0.s8 %v846
    %v848 = vlaneseq
    %v849 = vshrl.u32 %v848, 7
    %v850 = vsub.s32 %v847, %v849
    %v851 = vrot.slane %v843, %v850
    %v853 = vunpack.c.l.s4 1983009808
    %v854 = vunpack.c.0.s8 %v853
    %v855 = vlaneseq
    %v856 = vshrl.u32 %v855, 7
    %v857 = vsub.s32 %v854, %v856
    %v858 = vrot.slane %v844, %v857
    %v859 = vcombine.low %v851, %v858
    %v860 = vcombine.low %v701, %v704
    %v861 = vcombine.low %v707, %v711
    %v863 = vunpack.c.l.s4 1983009808
    %v864 = vunpack.c.0.s8 %v863
    %v865 = vlaneseq
    %v866 = vshrl.u32 %v865, 7
    %v867 = vsub.s32 %v864, %v866
    %v868 = vrot.slane %v860, %v867
    %v870 = vunpack.c.l.s4 1983009808
    %v871 = vunpack.c.0.s8 %v870
    %v872 = vlaneseq
    %v873 = vshrl.u32 %v872, 7
    %v874 = vsub.s32 %v871, %v873
    %v875 = vrot.slane %v861, %v874
    %v876 = vcombine.low %v868, %v875
    %v877 = vcombine.low %v714, %v717
    %v878 = vcombine.low %v720, %v723
    %v880 = vunpack.c.l.s4 1983009808
    %v881 = vunpack.c.0.s8 %v880
    %v882 = vlaneseq
    %v883 = vshrl.u32 %v882, 7
    %v884 = vsub.s32 %v881, %v883
    %v885 = vrot.slane %v877, %v884
    %v887 = vunpack.c.l.s4 1983009808
    %v888 = vunpack.c.0.s8 %v887
    %v889 = vlaneseq
    %v890 = vshrl.u32 %v889, 7
    %v891 = vsub.s32 %v888, %v890
    %v892 = vrot.slane %v878, %v891
    %v893 = vcombine.low %v885, %v892
    %904 = vmatprep.subr.mxu0 0.0
    %905 = vmatpush1.msra.mxu0 %v355
    %906 = vmatprep.subr.mxu0 0.0
    %907 = vmatpush1.msra.mxu0 %v354
    %908 = vmatprep.subr.mxu0 0.0
    %909 = vmatpush1.msra.mxu0 %v353
    %910 = vmatprep.subr.mxu0 0.0
    %911 = vmatpush1.msra.mxu0 %v352
    %912 = vmatprep.subr.mxu0 0.0
    %913 = vmatpush1.msra.mxu0 %v351
    %914 = vmatprep.subr.mxu0 0.0
    %915 = vmatpush1.msra.mxu0 %v350
    %916 = vmatprep.subr.mxu0 0.0
    %917 = vmatpush1.msra.mxu0 %v349
    %918 = vmatprep.subr.mxu0 0.0
    %919 = vmatpush1.msra.mxu0 %v348
    %920 = vmatprep.subr.mxu0 0.0
    %921 = vmatpush1.msra.mxu0 %v347
    %922 = vmatprep.subr.mxu0 0.0
    %923 = vmatpush1.msra.mxu0 %v346
    %924 = vmatprep.subr.mxu0 0.0
    %925 = vmatpush1.msra.mxu0 %v345
    %926 = vmatprep.subr.mxu0 0.0
    %927 = vmatpush1.msra.mxu0 %v344
    %928 = vmatprep.subr.mxu0 0.0
    %929 = vmatpush1.msra.mxu0 %v343
    %930 = vmatprep.subr.mxu0 0.0
    %931 = vmatpush1.msra.mxu0 %v342
    %932 = vmatprep.subr.mxu0 0.0
    %933 = vmatpush1.msra.mxu0 %v341
    %934 = vmatprep.subr.mxu0 0.0
    %935 = vmatpush1.msra.mxu0 %v340
    %936 = vmatprep.subr.mxu0 0.0
    %937 = vmatpush2.msra.mxu0 0.0
    %938 = vmatprep.subr.mxu0 0.0
    %939 = vmatpush2.msra.mxu0 0.0
    %940 = vmatprep.subr.mxu0 0.0
    %941 = vmatpush2.msra.mxu0 0.0
    %942 = vmatprep.subr.mxu0 0.0
    %943 = vmatpush2.msra.mxu0 0.0
    %944 = vmatprep.subr.mxu0 0.0
    %945 = vmatpush2.msra.mxu0 0.0
    %946 = vmatprep.subr.mxu0 0.0
    %947 = vmatpush2.msra.mxu0 0.0
    %948 = vmatprep.subr.mxu0 0.0
    %949 = vmatpush2.msra.mxu0 0.0
    %950 = vmatprep.subr.mxu0 0.0
    %951 = vmatpush2.msra.mxu0 0.0
    %952 = vmatprep.subr.mxu0 0.0
    %953 = vmatpush2.msra.mxu0 0.0
    %954 = vmatprep.subr.mxu0 0.0
    %955 = vmatpush2.msra.mxu0 0.0
    %956 = vmatprep.subr.mxu0 0.0
    %957 = vmatpush2.msra.mxu0 0.0
    %958 = vmatprep.subr.mxu0 0.0
    %959 = vmatpush2.msra.mxu0 0.0
    %960 = vmatprep.subr.mxu0 0.0
    %961 = vmatpush2.msra.mxu0 0.0
    %962 = vmatprep.subr.mxu0 0.0
    %963 = vmatpush2.msra.mxu0 0.0
    %964 = vmatprep.subr.mxu0 0.0
    %965 = vmatpush2.msra.mxu0 0.0
    %966 = vmatprep.subr.mxu0 0.0
    %967 = vmatpush2.msra.mxu0 0.0
    %968 = vmatprep.mubr.f32.mxu0 0.0
    %969 = vmatmul.mubr.f32.gmra.mxu0 %v740
    %v970 = vpop.f32.mrf.mxu0
    %v971 = vadd.f32 0.0, %v970
    %v972 = vpop.f32.mrf.mxu0
    %973 = vmatprep.mubr.f32.mxu0 0.0
    %974 = vmatmul.mubr.f32.gmra.mxu0 %v757
    %v975 = vpop.f32.mrf.mxu0
    %v976 = vadd.f32 0.0, %v975
    %v977 = vpop.f32.mrf.mxu0
    %978 = vmatprep.mubr.f32.mxu0 0.0
    %979 = vmatmul.mubr.f32.gmra.mxu0 %v774
    %v980 = vpop.f32.mrf.mxu0
    %v981 = vadd.f32 0.0, %v980
    %v982 = vpop.f32.mrf.mxu0
    %983 = vmatprep.mubr.f32.mxu0 0.0
    %984 = vmatmul.mubr.f32.gmra.mxu0 %v791
    %v985 = vpop.f32.mrf.mxu0
    %v986 = vadd.f32 0.0, %v985
    %v987 = vpop.f32.mrf.mxu0
    %988 = vmatprep.mubr.f32.mxu0 0.0
    %989 = vmatmul.mubr.f32.gmra.mxu0 %v808
    %v990 = vpop.f32.mrf.mxu0
    %v991 = vadd.f32 0.0, %v990
    %v992 = vpop.f32.mrf.mxu0
    %993 = vmatprep.mubr.f32.mxu0 0.0
    %994 = vmatmul.mubr.f32.gmra.mxu0 %v825
    %v995 = vpop.f32.mrf.mxu0
    %v996 = vadd.f32 0.0, %v995
    %v997 = vpop.f32.mrf.mxu0
    %998 = vmatprep.mubr.f32.mxu0 0.0
    %999 = vmatmul.mubr.f32.gmra.mxu0 %v842
    %v1000 = vpop.f32.mrf.mxu0
    %v1001 = vadd.f32 0.0, %v1000
    %v1002 = vpop.f32.mrf.mxu0
    %1003 = vmatprep.mubr.f32.mxu0 0.0
    %1004 = vmatmul.mubr.f32.gmra.mxu0 %v859
    %v1005 = vpop.f32.mrf.mxu0
    %v1006 = vadd.f32 0.0, %v1005
    %v1007 = vpop.f32.mrf.mxu0
    %1008 = vmatprep.mubr.f32.mxu0 0.0
    %1009 = vmatmul.mubr.f32.gmra.mxu0 %v876
    %v1010 = vpop.f32.mrf.mxu0
    %v1011 = vadd.f32 0.0, %v1010
    %v1012 = vpop.f32.mrf.mxu0
    %1013 = vmatprep.mubr.f32.mxu0 0.0
    %1014 = vmatmul.mubr.f32.gmra.mxu0 %v893
    %v1015 = vpop.f32.mrf.mxu0
    %v1016 = vadd.f32 0.0, %v1015
    %v1017 = vpop.f32.mrf.mxu0
    %1018 = vdwg.mxu0
    %v1019 = vcombine.low %v396, %v404
    %v1020 = vcombine.low %v403, %v405
    %v1022 = vunpack.c.l.s4 1983009808
    %v1023 = vunpack.c.0.s8 %v1022
    %v1024 = vlaneseq
    %v1025 = vshrl.u32 %v1024, 7
    %v1026 = vsub.s32 %v1023, %v1025
    %v1027 = vrot.slane %v1019, %v1026
    %v1029 = vunpack.c.l.s4 1983009808
    %v1030 = vunpack.c.0.s8 %v1029
    %v1031 = vlaneseq
    %v1032 = vshrl.u32 %v1031, 7
    %v1033 = vsub.s32 %v1030, %v1032
    %v1034 = vrot.slane %v1020, %v1033
    %v1035 = vcombine.low %v1027, %v1034
    %v1036 = vcombine.low %v412, %v420
    %v1037 = vcombine.low %v428, %v427
    %v1039 = vunpack.c.l.s4 1983009808
    %v1040 = vunpack.c.0.s8 %v1039
    %v1041 = vlaneseq
    %v1042 = vshrl.u32 %v1041, 7
    %v1043 = vsub.s32 %v1040, %v1042
    %v1044 = vrot.slane %v1036, %v1043
    %v1046 = vunpack.c.l.s4 1983009808
    %v1047 = vunpack.c.0.s8 %v1046
    %v1048 = vlaneseq
    %v1049 = vshrl.u32 %v1048, 7
    %v1050 = vsub.s32 %v1047, %v1049
    %v1051 = vrot.slane %v1037, %v1050
    %v1052 = vcombine.low %v1044, %v1051
    %v1053 = vcombine.low %v429, %v436
    %v1054 = vcombine.low %v444, %v452
    %v1056 = vunpack.c.l.s4 1983009808
    %v1057 = vunpack.c.0.s8 %v1056
    %v1058 = vlaneseq
    %v1059 = vshrl.u32 %v1058, 7
    %v1060 = vsub.s32 %v1057, %v1059
    %v1061 = vrot.slane %v1053, %v1060
    %v1063 = vunpack.c.l.s4 1983009808
    %v1064 = vunpack.c.0.s8 %v1063
    %v1065 = vlaneseq
    %v1066 = vshrl.u32 %v1065, 7
    %v1067 = vsub.s32 %v1064, %v1066
    %v1068 = vrot.slane %v1054, %v1067
    %v1069 = vcombine.low %v1061, %v1068
    %v1070 = vcombine.low %v451, %v453
    %v1071 = vcombine.low %v460, %v468
    %v1073 = vunpack.c.l.s4 1983009808
    %v1074 = vunpack.c.0.s8 %v1073
    %v1075 = vlaneseq
    %v1076 = vshrl.u32 %v1075, 7
    %v1077 = vsub.s32 %v1074, %v1076
    %v1078 = vrot.slane %v1070, %v1077
    %v1080 = vunpack.c.l.s4 1983009808
    %v1081 = vunpack.c.0.s8 %v1080
    %v1082 = vlaneseq
    %v1083 = vshrl.u32 %v1082, 7
    %v1084 = vsub.s32 %v1081, %v1083
    %v1085 = vrot.slane %v1071, %v1084
    %v1086 = vcombine.low %v1078, %v1085
    %v1087 = vcombine.low %v476, %v475
    %v1088 = vcombine.low %v477, %v484
    %v1090 = vunpack.c.l.s4 1983009808
    %v1091 = vunpack.c.0.s8 %v1090
    %v1092 = vlaneseq
    %v1093 = vshrl.u32 %v1092, 7
    %v1094 = vsub.s32 %v1091, %v1093
    %v1095 = vrot.slane %v1087, %v1094
    %v1097 = vunpack.c.l.s4 1983009808
    %v1098 = vunpack.c.0.s8 %v1097
    %v1099 = vlaneseq
    %v1100 = vshrl.u32 %v1099, 7
    %v1101 = vsub.s32 %v1098, %v1100
    %v1102 = vrot.slane %v1088, %v1101
    %v1103 = vcombine.low %v1095, %v1102
    %v1104 = vcombine.low %v492, %v500
    %v1105 = vcombine.low %v499, %v501
    %v1107 = vunpack.c.l.s4 1983009808
    %v1108 = vunpack.c.0.s8 %v1107
    %v1109 = vlaneseq
    %v1110 = vshrl.u32 %v1109, 7
    %v1111 = vsub.s32 %v1108, %v1110
    %v1112 = vrot.slane %v1104, %v1111
    %v1114 = vunpack.c.l.s4 1983009808
    %v1115 = vunpack.c.0.s8 %v1114
    %v1116 = vlaneseq
    %v1117 = vshrl.u32 %v1116, 7
    %v1118 = vsub.s32 %v1115, %v1117
    %v1119 = vrot.slane %v1105, %v1118
    %v1120 = vcombine.low %v1112, %v1119
    %v1121 = vcombine.low %v508, %v516
    %v1122 = vcombine.low %v524, %v523
    %v1124 = vunpack.c.l.s4 1983009808
    %v1125 = vunpack.c.0.s8 %v1124
    %v1126 = vlaneseq
    %v1127 = vshrl.u32 %v1126, 7
    %v1128 = vsub.s32 %v1125, %v1127
    %v1129 = vrot.slane %v1121, %v1128
    %v1131 = vunpack.c.l.s4 1983009808
    %v1132 = vunpack.c.0.s8 %v1131
    %v1133 = vlaneseq
    %v1134 = vshrl.u32 %v1133, 7
    %v1135 = vsub.s32 %v1132, %v1134
    %v1136 = vrot.slane %v1122, %v1135
    %v1137 = vcombine.low %v1129, %v1136
    %v1138 = vcombine.low %v525, %v532
    %v1139 = vcombine.low %v540, %v548
    %v1141 = vunpack.c.l.s4 1983009808
    %v1142 = vunpack.c.0.s8 %v1141
    %v1143 = vlaneseq
    %v1144 = vshrl.u32 %v1143, 7
    %v1145 = vsub.s32 %v1142, %v1144
    %v1146 = vrot.slane %v1138, %v1145
    %v1148 = vunpack.c.l.s4 1983009808
    %v1149 = vunpack.c.0.s8 %v1148
    %v1150 = vlaneseq
    %v1151 = vshrl.u32 %v1150, 7
    %v1152 = vsub.s32 %v1149, %v1151
    %v1153 = vrot.slane %v1139, %v1152
    %v1154 = vcombine.low %v1146, %v1153
    %v1155 = vcombine.low %v547, %v549
    %v1156 = vcombine.low %v556, %v564
    %v1158 = vunpack.c.l.s4 1983009808
    %v1159 = vunpack.c.0.s8 %v1158
    %v1160 = vlaneseq
    %v1161 = vshrl.u32 %v1160, 7
    %v1162 = vsub.s32 %v1159, %v1161
    %v1163 = vrot.slane %v1155, %v1162
    %v1165 = vunpack.c.l.s4 1983009808
    %v1166 = vunpack.c.0.s8 %v1165
    %v1167 = vlaneseq
    %v1168 = vshrl.u32 %v1167, 7
    %v1169 = vsub.s32 %v1166, %v1168
    %v1170 = vrot.slane %v1156, %v1169
    %v1171 = vcombine.low %v1163, %v1170
    %v1172 = vcombine.low %v572, %v571
    %v1173 = vcombine.low %v573, %v580
    %v1175 = vunpack.c.l.s4 1983009808
    %v1176 = vunpack.c.0.s8 %v1175
    %v1177 = vlaneseq
    %v1178 = vshrl.u32 %v1177, 7
    %v1179 = vsub.s32 %v1176, %v1178
    %v1180 = vrot.slane %v1172, %v1179
    %v1182 = vunpack.c.l.s4 1983009808
    %v1183 = vunpack.c.0.s8 %v1182
    %v1184 = vlaneseq
    %v1185 = vshrl.u32 %v1184, 7
    %v1186 = vsub.s32 %v1183, %v1185
    %v1187 = vrot.slane %v1173, %v1186
    %v1188 = vcombine.low %v1180, %v1187
    %1199 = vmatprep.subr.mxu0 0.0
    %1200 = vmatpush1.msra.mxu0 %v339
    %1201 = vmatprep.subr.mxu0 0.0
    %1202 = vmatpush1.msra.mxu0 %v338
    %1203 = vmatprep.subr.mxu0 0.0
    %1204 = vmatpush1.msra.mxu0 %v337
    %1205 = vmatprep.subr.mxu0 0.0
    %1206 = vmatpush1.msra.mxu0 %v336
    %1207 = vmatprep.subr.mxu0 0.0
    %1208 = vmatpush1.msra.mxu0 %v335
    %1209 = vmatprep.subr.mxu0 0.0
    %1210 = vmatpush1.msra.mxu0 %v334
    %1211 = vmatprep.subr.mxu0 0.0
    %1212 = vmatpush1.msra.mxu0 %v333
    %1213 = vmatprep.subr.mxu0 0.0
    %1214 = vmatpush1.msra.mxu0 %v332
    %1215 = vmatprep.subr.mxu0 0.0
    %1216 = vmatpush1.msra.mxu0 %v331
    %1217 = vmatprep.subr.mxu0 0.0
    %1218 = vmatpush1.msra.mxu0 %v330
    %1219 = vmatprep.subr.mxu0 0.0
    %1220 = vmatpush1.msra.mxu0 %v329
    %1221 = vmatprep.subr.mxu0 0.0
    %1222 = vmatpush1.msra.mxu0 %v328
    %1223 = vmatprep.subr.mxu0 0.0
    %1224 = vmatpush1.msra.mxu0 %v327
    %1225 = vmatprep.subr.mxu0 0.0
    %1226 = vmatpush1.msra.mxu0 %v326
    %1227 = vmatprep.subr.mxu0 0.0
    %1228 = vmatpush1.msra.mxu0 %v325
    %1229 = vmatprep.subr.mxu0 0.0
    %1230 = vmatpush1.msra.mxu0 %v324
    %1231 = vmatprep.subr.mxu0 0.0
    %1232 = vmatpush2.msra.mxu0 0.0
    %1233 = vmatprep.subr.mxu0 0.0
    %1234 = vmatpush2.msra.mxu0 0.0
    %1235 = vmatprep.subr.mxu0 0.0
    %1236 = vmatpush2.msra.mxu0 0.0
    %1237 = vmatprep.subr.mxu0 0.0
    %1238 = vmatpush2.msra.mxu0 0.0
    %1239 = vmatprep.subr.mxu0 0.0
    %1240 = vmatpush2.msra.mxu0 0.0
    %1241 = vmatprep.subr.mxu0 0.0
    %1242 = vmatpush2.msra.mxu0 0.0
    %1243 = vmatprep.subr.mxu0 0.0
    %1244 = vmatpush2.msra.mxu0 0.0
    %1245 = vmatprep.subr.mxu0 0.0
    %1246 = vmatpush2.msra.mxu0 0.0
    %1247 = vmatprep.subr.mxu0 0.0
    %1248 = vmatpush2.msra.mxu0 0.0
    %1249 = vmatprep.subr.mxu0 0.0
    %1250 = vmatpush2.msra.mxu0 0.0
    %1251 = vmatprep.subr.mxu0 0.0
    %1252 = vmatpush2.msra.mxu0 0.0
    %1253 = vmatprep.subr.mxu0 0.0
    %1254 = vmatpush2.msra.mxu0 0.0
    %1255 = vmatprep.subr.mxu0 0.0
    %1256 = vmatpush2.msra.mxu0 0.0
    %1257 = vmatprep.subr.mxu0 0.0
    %1258 = vmatpush2.msra.mxu0 0.0
    %1259 = vmatprep.subr.mxu0 0.0
    %1260 = vmatpush2.msra.mxu0 0.0
    %1261 = vmatprep.subr.mxu0 0.0
    %1262 = vmatpush2.msra.mxu0 0.0
    %1263 = vmatprep.mubr.f32.mxu0 0.0
    %1264 = vmatmul.mubr.f32.gmra.mxu0 %v1035
    %v1265 = vpop.f32.mrf.mxu0
    %v1266 = vadd.f32 %v971, %v1265
    %v1267 = vpop.f32.mrf.mxu0
    %1268 = vmatprep.mubr.f32.mxu0 0.0
    %1269 = vmatmul.mubr.f32.gmra.mxu0 %v1052
    %v1270 = vpop.f32.mrf.mxu0
    %v1271 = vadd.f32 %v976, %v1270
    %v1272 = vpop.f32.mrf.mxu0
    %1273 = vmatprep.mubr.f32.mxu0 0.0
    %1274 = vmatmul.mubr.f32.gmra.mxu0 %v1069
    %v1275 = vpop.f32.mrf.mxu0
    %v1276 = vadd.f32 %v981, %v1275
    %v1277 = vpop.f32.mrf.mxu0
    %1278 = vmatprep.mubr.f32.mxu0 0.0
    %1279 = vmatmul.mubr.f32.gmra.mxu0 %v1086
    %v1280 = vpop.f32.mrf.mxu0
    %v1281 = vadd.f32 %v986, %v1280
    %v1282 = vpop.f32.mrf.mxu0
    %1283 = vmatprep.mubr.f32.mxu0 0.0
    %1284 = vmatmul.mubr.f32.gmra.mxu0 %v1103
    %v1285 = vpop.f32.mrf.mxu0
    %v1286 = vadd.f32 %v991, %v1285
    %v1287 = vpop.f32.mrf.mxu0
    %1288 = vmatprep.mubr.f32.mxu0 0.0
    %1289 = vmatmul.mubr.f32.gmra.mxu0 %v1120
    %v1290 = vpop.f32.mrf.mxu0
    %v1291 = vadd.f32 %v996, %v1290
    %v1292 = vpop.f32.mrf.mxu0
    %1293 = vmatprep.mubr.f32.mxu0 0.0
    %1294 = vmatmul.mubr.f32.gmra.mxu0 %v1137
    %v1295 = vpop.f32.mrf.mxu0
    %v1296 = vadd.f32 %v1001, %v1295
    %v1297 = vpop.f32.mrf.mxu0
    %1298 = vmatprep.mubr.f32.mxu0 0.0
    %1299 = vmatmul.mubr.f32.gmra.mxu0 %v1154
    %v1300 = vpop.f32.mrf.mxu0
    %v1301 = vadd.f32 %v1006, %v1300
    %v1302 = vpop.f32.mrf.mxu0
    %1303 = vmatprep.mubr.f32.mxu0 0.0
    %1304 = vmatmul.mubr.f32.gmra.mxu0 %v1171
    %v1305 = vpop.f32.mrf.mxu0
    %v1306 = vadd.f32 %v1011, %v1305
    %v1307 = vpop.f32.mrf.mxu0
    %1308 = vmatprep.mubr.f32.mxu0 0.0
    %1309 = vmatmul.mubr.f32.gmra.mxu0 %v1188
    %v1310 = vpop.f32.mrf.mxu0
    %v1311 = vadd.f32 %v1016, %v1310
    %v1312 = vpop.f32.mrf.mxu0
    %1313 = vdwg.mxu0
    %v1314 = vcombine.low %v404, %v403
    %v1315 = vcombine.low %v405, %v412
    %v1317 = vunpack.c.l.s4 1983009808
    %v1318 = vunpack.c.0.s8 %v1317
    %v1319 = vlaneseq
    %v1320 = vshrl.u32 %v1319, 7
    %v1321 = vsub.s32 %v1318, %v1320
    %v1322 = vrot.slane %v1314, %v1321
    %v1324 = vunpack.c.l.s4 1983009808
    %v1325 = vunpack.c.0.s8 %v1324
    %v1326 = vlaneseq
    %v1327 = vshrl.u32 %v1326, 7
    %v1328 = vsub.s32 %v1325, %v1327
    %v1329 = vrot.slane %v1315, %v1328
    %v1330 = vcombine.low %v1322, %v1329
    %v1331 = vcombine.low %v581, %v428
    %v1332 = vcombine.low %v427, %v429
    %v1334 = vunpack.c.l.s4 1983009808
    %v1335 = vunpack.c.0.s8 %v1334
    %v1336 = vlaneseq
    %v1337 = vshrl.u32 %v1336, 7
    %v1338 = vsub.s32 %v1335, %v1337
    %v1339 = vrot.slane %v1331, %v1338
    %v1341 = vunpack.c.l.s4 1983009808
    %v1342 = vunpack.c.0.s8 %v1341
    %v1343 = vlaneseq
    %v1344 = vshrl.u32 %v1343, 7
    %v1345 = vsub.s32 %v1342, %v1344
    %v1346 = vrot.slane %v1332, %v1345
    %v1347 = vcombine.low %v1339, %v1346
    %v1348 = vcombine.low %v436, %v582
    %v1349 = vcombine.low %v452, %v451
    %v1351 = vunpack.c.l.s4 1983009808
    %v1352 = vunpack.c.0.s8 %v1351
    %v1353 = vlaneseq
    %v1354 = vshrl.u32 %v1353, 7
    %v1355 = vsub.s32 %v1352, %v1354
    %v1356 = vrot.slane %v1348, %v1355
    %v1358 = vunpack.c.l.s4 1983009808
    %v1359 = vunpack.c.0.s8 %v1358
    %v1360 = vlaneseq
    %v1361 = vshrl.u32 %v1360, 7
    %v1362 = vsub.s32 %v1359, %v1361
    %v1363 = vrot.slane %v1349, %v1362
    %v1364 = vcombine.low %v1356, %v1363
    %v1365 = vcombine.low %v453, %v460
    %v1366 = vcombine.low %v583, %v476
    %v1368 = vunpack.c.l.s4 1983009808
    %v1369 = vunpack.c.0.s8 %v1368
    %v1370 = vlaneseq
    %v1371 = vshrl.u32 %v1370, 7
    %v1372 = vsub.s32 %v1369, %v1371
    %v1373 = vrot.slane %v1365, %v1372
    %v1375 = vunpack.c.l.s4 1983009808
    %v1376 = vunpack.c.0.s8 %v1375
    %v1377 = vlaneseq
    %v1378 = vshrl.u32 %v1377, 7
    %v1379 = vsub.s32 %v1376, %v1378
    %v1380 = vrot.slane %v1366, %v1379
    %v1381 = vcombine.low %v1373, %v1380
    %v1382 = vcombine.low %v475, %v477
    %v1383 = vcombine.low %v484, %v584
    %v1385 = vunpack.c.l.s4 1983009808
    %v1386 = vunpack.c.0.s8 %v1385
    %v1387 = vlaneseq
    %v1388 = vshrl.u32 %v1387, 7
    %v1389 = vsub.s32 %v1386, %v1388
    %v1390 = vrot.slane %v1382, %v1389
    %v1392 = vunpack.c.l.s4 1983009808
    %v1393 = vunpack.c.0.s8 %v1392
    %v1394 = vlaneseq
    %v1395 = vshrl.u32 %v1394, 7
    %v1396 = vsub.s32 %v1393, %v1395
    %v1397 = vrot.slane %v1383, %v1396
    %v1398 = vcombine.low %v1390, %v1397
    %v1399 = vcombine.low %v500, %v499
    %v1400 = vcombine.low %v501, %v508
    %v1402 = vunpack.c.l.s4 1983009808
    %v1403 = vunpack.c.0.s8 %v1402
    %v1404 = vlaneseq
    %v1405 = vshrl.u32 %v1404, 7
    %v1406 = vsub.s32 %v1403, %v1405
    %v1407 = vrot.slane %v1399, %v1406
    %v1409 = vunpack.c.l.s4 1983009808
    %v1410 = vunpack.c.0.s8 %v1409
    %v1411 = vlaneseq
    %v1412 = vshrl.u32 %v1411, 7
    %v1413 = vsub.s32 %v1410, %v1412
    %v1414 = vrot.slane %v1400, %v1413
    %v1415 = vcombine.low %v1407, %v1414
    %v1416 = vcombine.low %v585, %v524
    %v1417 = vcombine.low %v523, %v525
    %v1419 = vunpack.c.l.s4 1983009808
    %v1420 = vunpack.c.0.s8 %v1419
    %v1421 = vlaneseq
    %v1422 = vshrl.u32 %v1421, 7
    %v1423 = vsub.s32 %v1420, %v1422
    %v1424 = vrot.slane %v1416, %v1423
    %v1426 = vunpack.c.l.s4 1983009808
    %v1427 = vunpack.c.0.s8 %v1426
    %v1428 = vlaneseq
    %v1429 = vshrl.u32 %v1428, 7
    %v1430 = vsub.s32 %v1427, %v1429
    %v1431 = vrot.slane %v1417, %v1430
    %v1432 = vcombine.low %v1424, %v1431
    %v1433 = vcombine.low %v532, %v586
    %v1434 = vcombine.low %v548, %v547
    %v1436 = vunpack.c.l.s4 1983009808
    %v1437 = vunpack.c.0.s8 %v1436
    %v1438 = vlaneseq
    %v1439 = vshrl.u32 %v1438, 7
    %v1440 = vsub.s32 %v1437, %v1439
    %v1441 = vrot.slane %v1433, %v1440
    %v1443 = vunpack.c.l.s4 1983009808
    %v1444 = vunpack.c.0.s8 %v1443
    %v1445 = vlaneseq
    %v1446 = vshrl.u32 %v1445, 7
    %v1447 = vsub.s32 %v1444, %v1446
    %v1448 = vrot.slane %v1434, %v1447
    %v1449 = vcombine.low %v1441, %v1448
    %v1450 = vcombine.low %v549, %v556
    %v1451 = vcombine.low %v587, %v572
    %v1453 = vunpack.c.l.s4 1983009808
    %v1454 = vunpack.c.0.s8 %v1453
    %v1455 = vlaneseq
    %v1456 = vshrl.u32 %v1455, 7
    %v1457 = vsub.s32 %v1454, %v1456
    %v1458 = vrot.slane %v1450, %v1457
    %v1460 = vunpack.c.l.s4 1983009808
    %v1461 = vunpack.c.0.s8 %v1460
    %v1462 = vlaneseq
    %v1463 = vshrl.u32 %v1462, 7
    %v1464 = vsub.s32 %v1461, %v1463
    %v1465 = vrot.slane %v1451, %v1464
    %v1466 = vcombine.low %v1458, %v1465
    %v1467 = vcombine.low %v571, %v573
    %v1468 = vcombine.low %v580, %v588
    %v1470 = vunpack.c.l.s4 1983009808
    %v1471 = vunpack.c.0.s8 %v1470
    %v1472 = vlaneseq
    %v1473 = vshrl.u32 %v1472, 7
    %v1474 = vsub.s32 %v1471, %v1473
    %v1475 = vrot.slane %v1467, %v1474
    %v1477 = vunpack.c.l.s4 1983009808
    %v1478 = vunpack.c.0.s8 %v1477
    %v1479 = vlaneseq
    %v1480 = vshrl.u32 %v1479, 7
    %v1481 = vsub.s32 %v1478, %v1480
    %v1482 = vrot.slane %v1468, %v1481
    %v1483 = vcombine.low %v1475, %v1482
    %1494 = vmatprep.subr.mxu0 0.0
    %1495 = vmatpush1.msra.mxu0 %v371
    %1496 = vmatprep.subr.mxu0 0.0
    %1497 = vmatpush1.msra.mxu0 %v370
    %1498 = vmatprep.subr.mxu0 0.0
    %1499 = vmatpush1.msra.mxu0 %v369
    %1500 = vmatprep.subr.mxu0 0.0
    %1501 = vmatpush1.msra.mxu0 %v368
    %1502 = vmatprep.subr.mxu0 0.0
    %1503 = vmatpush1.msra.mxu0 %v367
    %1504 = vmatprep.subr.mxu0 0.0
    %1505 = vmatpush1.msra.mxu0 %v366
    %1506 = vmatprep.subr.mxu0 0.0
    %1507 = vmatpush1.msra.mxu0 %v365
    %1508 = vmatprep.subr.mxu0 0.0
    %1509 = vmatpush1.msra.mxu0 %v364
    %1510 = vmatprep.subr.mxu0 0.0
    %1511 = vmatpush1.msra.mxu0 %v363
    %1512 = vmatprep.subr.mxu0 0.0
    %1513 = vmatpush1.msra.mxu0 %v362
    %1514 = vmatprep.subr.mxu0 0.0
    %1515 = vmatpush1.msra.mxu0 %v361
    %1516 = vmatprep.subr.mxu0 0.0
    %1517 = vmatpush1.msra.mxu0 %v360
    %1518 = vmatprep.subr.mxu0 0.0
    %1519 = vmatpush1.msra.mxu0 %v359
    %1520 = vmatprep.subr.mxu0 0.0
    %1521 = vmatpush1.msra.mxu0 %v358
    %1522 = vmatprep.subr.mxu0 0.0
    %1523 = vmatpush1.msra.mxu0 %v357
    %1524 = vmatprep.subr.mxu0 0.0
    %1525 = vmatpush1.msra.mxu0 %v356
    %1526 = vmatprep.subr.mxu0 0.0
    %1527 = vmatpush2.msra.mxu0 0.0
    %1528 = vmatprep.subr.mxu0 0.0
    %1529 = vmatpush2.msra.mxu0 0.0
    %1530 = vmatprep.subr.mxu0 0.0
    %1531 = vmatpush2.msra.mxu0 0.0
    %1532 = vmatprep.subr.mxu0 0.0
    %1533 = vmatpush2.msra.mxu0 0.0
    %1534 = vmatprep.subr.mxu0 0.0
    %1535 = vmatpush2.msra.mxu0 0.0
    %1536 = vmatprep.subr.mxu0 0.0
    %1537 = vmatpush2.msra.mxu0 0.0
    %1538 = vmatprep.subr.mxu0 0.0
    %1539 = vmatpush2.msra.mxu0 0.0
    %1540 = vmatprep.subr.mxu0 0.0
    %1541 = vmatpush2.msra.mxu0 0.0
    %1542 = vmatprep.subr.mxu0 0.0
    %1543 = vmatpush2.msra.mxu0 0.0
    %1544 = vmatprep.subr.mxu0 0.0
    %1545 = vmatpush2.msra.mxu0 0.0
    %1546 = vmatprep.subr.mxu0 0.0
    %1547 = vmatpush2.msra.mxu0 0.0
    %1548 = vmatprep.subr.mxu0 0.0
    %1549 = vmatpush2.msra.mxu0 0.0
    %1550 = vmatprep.subr.mxu0 0.0
    %1551 = vmatpush2.msra.mxu0 0.0
    %1552 = vmatprep.subr.mxu0 0.0
    %1553 = vmatpush2.msra.mxu0 0.0
    %1554 = vmatprep.subr.mxu0 0.0
    %1555 = vmatpush2.msra.mxu0 0.0
    %1556 = vmatprep.subr.mxu0 0.0
    %1557 = vmatpush2.msra.mxu0 0.0
    %1558 = vmatprep.mubr.f32.mxu0 0.0
    %1559 = vmatmul.mubr.f32.gmra.mxu0 %v1330
    %v1560 = vpop.f32.mrf.mxu0
    %v1561 = vadd.f32 0.0, %v1560
    %v1562 = vpop.f32.mrf.mxu0
    %1563 = vmatprep.mubr.f32.mxu0 0.0
    %1564 = vmatmul.mubr.f32.gmra.mxu0 %v1347
    %v1565 = vpop.f32.mrf.mxu0
    %v1566 = vadd.f32 0.0, %v1565
    %v1567 = vpop.f32.mrf.mxu0
    %1568 = vmatprep.mubr.f32.mxu0 0.0
    %1569 = vmatmul.mubr.f32.gmra.mxu0 %v1364
    %v1570 = vpop.f32.mrf.mxu0
    %v1571 = vadd.f32 0.0, %v1570
    %v1572 = vpop.f32.mrf.mxu0
    %1573 = vmatprep.mubr.f32.mxu0 0.0
    %1574 = vmatmul.mubr.f32.gmra.mxu0 %v1381
    %v1575 = vpop.f32.mrf.mxu0
    %v1576 = vadd.f32 0.0, %v1575
    %v1577 = vpop.f32.mrf.mxu0
    %1578 = vmatprep.mubr.f32.mxu0 0.0
    %1579 = vmatmul.mubr.f32.gmra.mxu0 %v1398
    %v1580 = vpop.f32.mrf.mxu0
    %v1581 = vadd.f32 0.0, %v1580
    %v1582 = vpop.f32.mrf.mxu0
    %1583 = vmatprep.mubr.f32.mxu0 0.0
    %1584 = vmatmul.mubr.f32.gmra.mxu0 %v1415
    %v1585 = vpop.f32.mrf.mxu0
    %v1586 = vadd.f32 0.0, %v1585
    %v1587 = vpop.f32.mrf.mxu0
    %1588 = vmatprep.mubr.f32.mxu0 0.0
    %1589 = vmatmul.mubr.f32.gmra.mxu0 %v1432
    %v1590 = vpop.f32.mrf.mxu0
    %v1591 = vadd.f32 0.0, %v1590
    %v1592 = vpop.f32.mrf.mxu0
    %1593 = vmatprep.mubr.f32.mxu0 0.0
    %1594 = vmatmul.mubr.f32.gmra.mxu0 %v1449
    %v1595 = vpop.f32.mrf.mxu0
    %v1596 = vadd.f32 0.0, %v1595
    %v1597 = vpop.f32.mrf.mxu0
    %1598 = vmatprep.mubr.f32.mxu0 0.0
    %1599 = vmatmul.mubr.f32.gmra.mxu0 %v1466
    %v1600 = vpop.f32.mrf.mxu0
    %v1601 = vadd.f32 0.0, %v1600
    %v1602 = vpop.f32.mrf.mxu0
    %1603 = vmatprep.mubr.f32.mxu0 0.0
    %1604 = vmatmul.mubr.f32.gmra.mxu0 %v1483
    %v1605 = vpop.f32.mrf.mxu0
    %v1606 = vadd.f32 0.0, %v1605
    %v1607 = vpop.f32.mrf.mxu0
    %1608 = vdwg.mxu0
    %v1609 = vadd.f32 %v1266, %v1561
    %v1610 = vadd.f32 %v1271, %v1566
    %v1611 = vadd.f32 %v1276, %v1571
    %v1612 = vadd.f32 %v1281, %v1576
    %v1613 = vadd.f32 %v1286, %v1581
    %v1614 = vadd.f32 %v1291, %v1586
    %v1615 = vadd.f32 %v1296, %v1591
    %v1616 = vadd.f32 %v1301, %v1596
    %v1617 = vadd.f32 %v1306, %v1601
    %v1618 = vadd.f32 %v1311, %v1606
    %v1620 = vlaneseq
    %v1621 = vshrl.u32 %v1620, 7
    %v1622 = vsub.s32 0, %v1621
    %v1623 = vrot.slane %v372, %v1622
    %v1625 = vadd.f32 %v1609, %v1623
    %v1626 = vadd.f32 %v1610, %v1623
    %v1627 = vadd.f32 %v1611, %v1623
    %v1628 = vadd.f32 %v1612, %v1623
    %v1629 = vadd.f32 %v1613, %v1623
    %v1630 = vadd.f32 %v1614, %v1623
    %v1631 = vadd.f32 %v1615, %v1623
    %v1632 = vadd.f32 %v1616, %v1623
    %v1633 = vadd.f32 %v1617, %v1623
    %v1634 = vadd.f32 %v1618, %v1623
    %v1635 = vmax.f32 %v1625, 0.0
    %v1636 = vmax.f32 %v1626, 0.0
    %v1637 = vmax.f32 %v1627, 0.0
    %v1638 = vmax.f32 %v1628, 0.0
    %v1639 = vmax.f32 %v1629, 0.0
    %v1640 = vmax.f32 %v1630, 0.0
    %v1641 = vmax.f32 %v1631, 0.0
    %v1642 = vmax.f32 %v1632, 0.0
    %v1643 = vmax.f32 %v1633, 0.0
    %v1644 = vmax.f32 %v1634, 0.0
    %v1655 = vcombine.high %v1635, %v1635
    %v1657 = vunpack.c.l.s4 1983009808
    %v1658 = vunpack.c.0.s8 %v1657
    %v1659 = vlaneseq
    %v1660 = vshrl.u32 %v1659, 7
    %v1661 = vsub.s32 %v1658, %v1660
    %v1662 = vrot.slane %v1635, %v1661
    %v1664 = vunpack.c.l.s4 1983009808
    %v1665 = vunpack.c.0.s8 %v1664
    %v1666 = vlaneseq
    %v1667 = vshrl.u32 %v1666, 7
    %v1668 = vsub.s32 %v1665, %v1667
    %v1669 = vrot.slane %v1655, %v1668
    %v1670 = vcombine.high %v1662, %v1662
    %v1671 = vcombine.high %v1669, %v1669
    %v1672 = vcombine.high %v1636, %v1636
    %v1674 = vunpack.c.l.s4 1983009808
    %v1675 = vunpack.c.0.s8 %v1674
    %v1676 = vlaneseq
    %v1677 = vshrl.u32 %v1676, 7
    %v1678 = vsub.s32 %v1675, %v1677
    %v1679 = vrot.slane %v1636, %v1678
    %v1681 = vunpack.c.l.s4 1983009808
    %v1682 = vunpack.c.0.s8 %v1681
    %v1683 = vlaneseq
    %v1684 = vshrl.u32 %v1683, 7
    %v1685 = vsub.s32 %v1682, %v1684
    %v1686 = vrot.slane %v1672, %v1685
    %v1687 = vcombine.high %v1679, %v1679
    %v1688 = vcombine.high %v1686, %v1686
    %v1689 = vcombine.high %v1637, %v1637
    %v1691 = vunpack.c.l.s4 1983009808
    %v1692 = vunpack.c.0.s8 %v1691
    %v1693 = vlaneseq
    %v1694 = vshrl.u32 %v1693, 7
    %v1695 = vsub.s32 %v1692, %v1694
    %v1696 = vrot.slane %v1637, %v1695
    %v1698 = vunpack.c.l.s4 1983009808
    %v1699 = vunpack.c.0.s8 %v1698
    %v1700 = vlaneseq
    %v1701 = vshrl.u32 %v1700, 7
    %v1702 = vsub.s32 %v1699, %v1701
    %v1703 = vrot.slane %v1689, %v1702
    %v1704 = vcombine.high %v1696, %v1696
    %v1705 = vcombine.high %v1703, %v1703
    %v1706 = vcombine.high %v1638, %v1638
    %v1708 = vunpack.c.l.s4 1983009808
    %v1709 = vunpack.c.0.s8 %v1708
    %v1710 = vlaneseq
    %v1711 = vshrl.u32 %v1710, 7
    %v1712 = vsub.s32 %v1709, %v1711
    %v1713 = vrot.slane %v1638, %v1712
    %v1715 = vunpack.c.l.s4 1983009808
    %v1716 = vunpack.c.0.s8 %v1715
    %v1717 = vlaneseq
    %v1718 = vshrl.u32 %v1717, 7
    %v1719 = vsub.s32 %v1716, %v1718
    %v1720 = vrot.slane %v1706, %v1719
    %v1721 = vcombine.high %v1713, %v1713
    %v1722 = vcombine.high %v1720, %v1720
    %v1723 = vcombine.high %v1639, %v1639
    %v1725 = vunpack.c.l.s4 1983009808
    %v1726 = vunpack.c.0.s8 %v1725
    %v1727 = vlaneseq
    %v1728 = vshrl.u32 %v1727, 7
    %v1729 = vsub.s32 %v1726, %v1728
    %v1730 = vrot.slane %v1639, %v1729
    %v1732 = vunpack.c.l.s4 1983009808
    %v1733 = vunpack.c.0.s8 %v1732
    %v1734 = vlaneseq
    %v1735 = vshrl.u32 %v1734, 7
    %v1736 = vsub.s32 %v1733, %v1735
    %v1737 = vrot.slane %v1723, %v1736
    %v1738 = vcombine.high %v1730, %v1730
    %v1739 = vcombine.high %v1737, %v1737
    %v1740 = vcombine.high %v1640, %v1640
    %v1742 = vunpack.c.l.s4 1983009808
    %v1743 = vunpack.c.0.s8 %v1742
    %v1744 = vlaneseq
    %v1745 = vshrl.u32 %v1744, 7
    %v1746 = vsub.s32 %v1743, %v1745
    %v1747 = vrot.slane %v1640, %v1746
    %v1749 = vunpack.c.l.s4 1983009808
    %v1750 = vunpack.c.0.s8 %v1749
    %v1751 = vlaneseq
    %v1752 = vshrl.u32 %v1751, 7
    %v1753 = vsub.s32 %v1750, %v1752
    %v1754 = vrot.slane %v1740, %v1753
    %v1755 = vcombine.high %v1747, %v1747
    %v1756 = vcombine.high %v1754, %v1754
    %v1757 = vcombine.high %v1641, %v1641
    %v1759 = vunpack.c.l.s4 1983009808
    %v1760 = vunpack.c.0.s8 %v1759
    %v1761 = vlaneseq
    %v1762 = vshrl.u32 %v1761, 7
    %v1763 = vsub.s32 %v1760, %v1762
    %v1764 = vrot.slane %v1641, %v1763
    %v1766 = vunpack.c.l.s4 1983009808
    %v1767 = vunpack.c.0.s8 %v1766
    %v1768 = vlaneseq
    %v1769 = vshrl.u32 %v1768, 7
    %v1770 = vsub.s32 %v1767, %v1769
    %v1771 = vrot.slane %v1757, %v1770
    %v1772 = vcombine.high %v1764, %v1764
    %v1773 = vcombine.high %v1771, %v1771
    %v1774 = vcombine.high %v1642, %v1642
    %v1776 = vunpack.c.l.s4 1983009808
    %v1777 = vunpack.c.0.s8 %v1776
    %v1778 = vlaneseq
    %v1779 = vshrl.u32 %v1778, 7
    %v1780 = vsub.s32 %v1777, %v1779
    %v1781 = vrot.slane %v1642, %v1780
    %v1783 = vunpack.c.l.s4 1983009808
    %v1784 = vunpack.c.0.s8 %v1783
    %v1785 = vlaneseq
    %v1786 = vshrl.u32 %v1785, 7
    %v1787 = vsub.s32 %v1784, %v1786
    %v1788 = vrot.slane %v1774, %v1787
    %v1789 = vcombine.high %v1781, %v1781
    %v1790 = vcombine.high %v1788, %v1788
    %v1791 = vcombine.high %v1643, %v1643
    %v1793 = vunpack.c.l.s4 1983009808
    %v1794 = vunpack.c.0.s8 %v1793
    %v1795 = vlaneseq
    %v1796 = vshrl.u32 %v1795, 7
    %v1797 = vsub.s32 %v1794, %v1796
    %v1798 = vrot.slane %v1643, %v1797
    %v1800 = vunpack.c.l.s4 1983009808
    %v1801 = vunpack.c.0.s8 %v1800
    %v1802 = vlaneseq
    %v1803 = vshrl.u32 %v1802, 7
    %v1804 = vsub.s32 %v1801, %v1803
    %v1805 = vrot.slane %v1791, %v1804
    %v1806 = vcombine.high %v1798, %v1798
    %v1807 = vcombine.high %v1805, %v1805
    %v1808 = vcombine.high %v1644, %v1644
    %v1810 = vunpack.c.l.s4 1983009808
    %v1811 = vunpack.c.0.s8 %v1810
    %v1812 = vlaneseq
    %v1813 = vshrl.u32 %v1812, 7
    %v1814 = vsub.s32 %v1811, %v1813
    %v1815 = vrot.slane %v1644, %v1814
    %v1817 = vunpack.c.l.s4 1983009808
    %v1818 = vunpack.c.0.s8 %v1817
    %v1819 = vlaneseq
    %v1820 = vshrl.u32 %v1819, 7
    %v1821 = vsub.s32 %v1818, %v1820
    %v1822 = vrot.slane %v1808, %v1821
    %v1823 = vcombine.high %v1815, %v1815
    %v1824 = vcombine.high %v1822, %v1822
    %v1825 = vcombine.low %v1662, %v1670
    %v1826 = vcombine.low %v1669, %v1671
    %v1828 = vunpack.c.l.s4 1983009808
    %v1829 = vunpack.c.0.s8 %v1828
    %v1830 = vlaneseq
    %v1831 = vshrl.u32 %v1830, 7
    %v1832 = vsub.s32 %v1829, %v1831
    %v1833 = vrot.slane %v1825, %v1832
    %v1835 = vunpack.c.l.s4 1983009808
    %v1836 = vunpack.c.0.s8 %v1835
    %v1837 = vlaneseq
    %v1838 = vshrl.u32 %v1837, 7
    %v1839 = vsub.s32 %v1836, %v1838
    %v1840 = vrot.slane %v1826, %v1839
    %v1841 = vcombine.low %v1833, %v1840
    %v1843 = vunpack.c.l.s4 1983009808
    %v1844 = vunpack.c.0.s8 %v1843
    %v1845 = vlaneseq
    %v1846 = vshrl.u32 %v1845, 7
    %v1847 = vsub.s32 %v1844, %v1846
    %v1848 = vrot.slane %v1679, %v1847
    %v1849 = vcombine.low %v1687, %v1686
    %v1850 = vcombine.low %v1688, %v1696
    %v1852 = vunpack.c.l.s4 1983009808
    %v1853 = vunpack.c.0.s8 %v1852
    %v1854 = vlaneseq
    %v1855 = vshrl.u32 %v1854, 7
    %v1856 = vsub.s32 %v1853, %v1855
    %v1857 = vrot.slane %v1849, %v1856
    %v1859 = vunpack.c.l.s4 1983009808
    %v1860 = vunpack.c.0.s8 %v1859
    %v1861 = vlaneseq
    %v1862 = vshrl.u32 %v1861, 7
    %v1863 = vsub.s32 %v1860, %v1862
    %v1864 = vrot.slane %v1850, %v1863
    %v1865 = vcombine.low %v1857, %v1864
    %v1867 = vunpack.c.l.s4 1983009808
    %v1868 = vunpack.c.0.s8 %v1867
    %v1869 = vlaneseq
    %v1870 = vshrl.u32 %v1869, 7
    %v1871 = vsub.s32 %v1868, %v1870
    %v1872 = vrot.slane %v1704, %v1871
    %v1873 = vcombine.low %v1703, %v1705
    %v1874 = vcombine.low %v1713, %v1721
    %v1876 = vunpack.c.l.s4 1983009808
    %v1877 = vunpack.c.0.s8 %v1876
    %v1878 = vlaneseq
    %v1879 = vshrl.u32 %v1878, 7
    %v1880 = vsub.s32 %v1877, %v1879
    %v1881 = vrot.slane %v1873, %v1880
    %v1883 = vunpack.c.l.s4 1983009808
    %v1884 = vunpack.c.0.s8 %v1883
    %v1885 = vlaneseq
    %v1886 = vshrl.u32 %v1885, 7
    %v1887 = vsub.s32 %v1884, %v1886
    %v1888 = vrot.slane %v1874, %v1887
    %v1889 = vcombine.low %v1881, %v1888
    %v1891 = vunpack.c.l.s4 1983009808
    %v1892 = vunpack.c.0.s8 %v1891
    %v1893 = vlaneseq
    %v1894 = vshrl.u32 %v1893, 7
    %v1895 = vsub.s32 %v1892, %v1894
    %v1896 = vrot.slane %v1720, %v1895
    %v1897 = vcombine.low %v1722, %v1730
    %v1898 = vcombine.low %v1738, %v1737
    %v1900 = vunpack.c.l.s4 1983009808
    %v1901 = vunpack.c.0.s8 %v1900
    %v1902 = vlaneseq
    %v1903 = vshrl.u32 %v1902, 7
    %v1904 = vsub.s32 %v1901, %v1903
    %v1905 = vrot.slane %v1897, %v1904
    %v1907 = vunpack.c.l.s4 1983009808
    %v1908 = vunpack.c.0.s8 %v1907
    %v1909 = vlaneseq
    %v1910 = vshrl.u32 %v1909, 7
    %v1911 = vsub.s32 %v1908, %v1910
    %v1912 = vrot.slane %v1898, %v1911
    %v1913 = vcombine.low %v1905, %v1912
    %v1915 = vunpack.c.l.s4 1983009808
    %v1916 = vunpack.c.0.s8 %v1915
    %v1917 = vlaneseq
    %v1918 = vshrl.u32 %v1917, 7
    %v1919 = vsub.s32 %v1916, %v1918
    %v1920 = vrot.slane %v1739, %v1919
    %v1921 = vcombine.low %v1747, %v1755
    %v1922 = vcombine.low %v1754, %v1756
    %v1924 = vunpack.c.l.s4 1983009808
    %v1925 = vunpack.c.0.s8 %v1924
    %v1926 = vlaneseq
    %v1927 = vshrl.u32 %v1926, 7
    %v1928 = vsub.s32 %v1925, %v1927
    %v1929 = vrot.slane %v1921, %v1928
    %v1931 = vunpack.c.l.s4 1983009808
    %v1932 = vunpack.c.0.s8 %v1931
    %v1933 = vlaneseq
    %v1934 = vshrl.u32 %v1933, 7
    %v1935 = vsub.s32 %v1932, %v1934
    %v1936 = vrot.slane %v1922, %v1935
    %v1937 = vcombine.low %v1929, %v1936
    %v1939 = vunpack.c.l.s4 1983009808
    %v1940 = vunpack.c.0.s8 %v1939
    %v1941 = vlaneseq
    %v1942 = vshrl.u32 %v1941, 7
    %v1943 = vsub.s32 %v1940, %v1942
    %v1944 = vrot.slane %v1764, %v1943
    %v1945 = vcombine.low %v1772, %v1771
    %v1946 = vcombine.low %v1773, %v1781
    %v1948 = vunpack.c.l.s4 1983009808
    %v1949 = vunpack.c.0.s8 %v1948
    %v1950 = vlaneseq
    %v1951 = vshrl.u32 %v1950, 7
    %v1952 = vsub.s32 %v1949, %v1951
    %v1953 = vrot.slane %v1945, %v1952
    %v1955 = vunpack.c.l.s4 1983009808
    %v1956 = vunpack.c.0.s8 %v1955
    %v1957 = vlaneseq
    %v1958 = vshrl.u32 %v1957, 7
    %v1959 = vsub.s32 %v1956, %v1958
    %v1960 = vrot.slane %v1946, %v1959
    %v1961 = vcombine.low %v1953, %v1960
    %v1963 = vunpack.c.l.s4 1983009808
    %v1964 = vunpack.c.0.s8 %v1963
    %v1965 = vlaneseq
    %v1966 = vshrl.u32 %v1965, 7
    %v1967 = vsub.s32 %v1964, %v1966
    %v1968 = vrot.slane %v1789, %v1967
    %v1969 = vcombine.low %v1788, %v1790
    %v1970 = vcombine.low %v1798, %v1806
    %v1972 = vunpack.c.l.s4 1983009808
    %v1973 = vunpack.c.0.s8 %v1972
    %v1974 = vlaneseq
    %v1975 = vshrl.u32 %v1974, 7
    %v1976 = vsub.s32 %v1973, %v1975
    %v1977 = vrot.slane %v1969, %v1976
    %v1979 = vunpack.c.l.s4 1983009808
    %v1980 = vunpack.c.0.s8 %v1979
    %v1981 = vlaneseq
    %v1982 = vshrl.u32 %v1981, 7
    %v1983 = vsub.s32 %v1980, %v1982
    %v1984 = vrot.slane %v1970, %v1983
    %v1985 = vcombine.low %v1977, %v1984
    %v1987 = vunpack.c.l.s4 1983009808
    %v1988 = vunpack.c.0.s8 %v1987
    %v1989 = vlaneseq
    %v1990 = vshrl.u32 %v1989, 7
    %v1991 = vsub.s32 %v1988, %v1990
    %v1992 = vrot.slane %v1805, %v1991
    %v1993 = vcombine.low %v1807, %v1815
    %v1994 = vcombine.low %v1823, %v1822
    %v1996 = vunpack.c.l.s4 1983009808
    %v1997 = vunpack.c.0.s8 %v1996
    %v1998 = vlaneseq
    %v1999 = vshrl.u32 %v1998, 7
    %v2000 = vsub.s32 %v1997, %v1999
    %v2001 = vrot.slane %v1993, %v2000
    %v2003 = vunpack.c.l.s4 1983009808
    %v2004 = vunpack.c.0.s8 %v2003
    %v2005 = vlaneseq
    %v2006 = vshrl.u32 %v2005, 7
    %v2007 = vsub.s32 %v2004, %v2006
    %v2008 = vrot.slane %v1994, %v2007
    %v2009 = vcombine.low %v2001, %v2008
    %v2011 = vunpack.c.l.s4 1983009808
    %v2012 = vunpack.c.0.s8 %v2011
    %v2013 = vlaneseq
    %v2014 = vshrl.u32 %v2013, 7
    %v2015 = vsub.s32 %v2012, %v2014
    %v2016 = vrot.slane %v1824, %v2015
    %v2033 = vsel %vm307, %v1848, -inf
    %v2034 = vmax.f32 %v1841, %v2033
    %v2035 = vrot.slane %v2034, 4
    %v2036 = vmax.f32 %v2034, %v2035
    %v2037 = vrot.slane %v2036, 2
    %v2038 = vmax.f32 %v2036, %v2037
    %v2039 = vrot.slane %v2038, 1
    %v2040 = vmax.f32 %v2038, %v2039
    %v2041 = vsel %vm307, %v1872, -inf
    %v2042 = vmax.f32 %v1865, %v2041
    %v2043 = vrot.slane %v2042, 4
    %v2044 = vmax.f32 %v2042, %v2043
    %v2045 = vrot.slane %v2044, 2
    %v2046 = vmax.f32 %v2044, %v2045
    %v2047 = vrot.slane %v2046, 1
    %v2048 = vmax.f32 %v2046, %v2047
    %v2049 = vsel %vm307, %v1896, -inf
    %v2050 = vmax.f32 %v1889, %v2049
    %v2051 = vrot.slane %v2050, 4
    %v2052 = vmax.f32 %v2050, %v2051
    %v2053 = vrot.slane %v2052, 2
    %v2054 = vmax.f32 %v2052, %v2053
    %v2055 = vrot.slane %v2054, 1
    %v2056 = vmax.f32 %v2054, %v2055
    %v2057 = vsel %vm307, %v1920, -inf
    %v2058 = vmax.f32 %v1913, %v2057
    %v2059 = vrot.slane %v2058, 4
    %v2060 = vmax.f32 %v2058, %v2059
    %v2061 = vrot.slane %v2060, 2
    %v2062 = vmax.f32 %v2060, %v2061
    %v2063 = vrot.slane %v2062, 1
    %v2064 = vmax.f32 %v2062, %v2063
    %v2065 = vsel %vm307, %v1944, -inf
    %v2066 = vmax.f32 %v1937, %v2065
    %v2067 = vrot.slane %v2066, 4
    %v2068 = vmax.f32 %v2066, %v2067
    %v2069 = vrot.slane %v2068, 2
    %v2070 = vmax.f32 %v2068, %v2069
    %v2071 = vrot.slane %v2070, 1
    %v2072 = vmax.f32 %v2070, %v2071
    %v2073 = vsel %vm307, %v1968, -inf
    %v2074 = vmax.f32 %v1961, %v2073
    %v2075 = vrot.slane %v2074, 4
    %v2076 = vmax.f32 %v2074, %v2075
    %v2077 = vrot.slane %v2076, 2
    %v2078 = vmax.f32 %v2076, %v2077
    %v2079 = vrot.slane %v2078, 1
    %v2080 = vmax.f32 %v2078, %v2079
    %v2081 = vsel %vm307, %v1992, -inf
    %v2082 = vmax.f32 %v1985, %v2081
    %v2083 = vrot.slane %v2082, 4
    %v2084 = vmax.f32 %v2082, %v2083
    %v2085 = vrot.slane %v2084, 2
    %v2086 = vmax.f32 %v2084, %v2085
    %v2087 = vrot.slane %v2086, 1
    %v2088 = vmax.f32 %v2086, %v2087
    %v2089 = vsel %vm307, %v2016, -inf
    %v2090 = vmax.f32 %v2009, %v2089
    %v2091 = vrot.slane %v2090, 4
    %v2092 = vmax.f32 %v2090, %v2091
    %v2093 = vrot.slane %v2092, 2
    %v2094 = vmax.f32 %v2092, %v2093
    %v2095 = vrot.slane %v2094, 1
    %v2096 = vmax.f32 %v2094, %v2095
    %v2097 = vld [vmem:[#allocation7] sm:$0xff]
    %v2098 = vld [vmem:[#allocation7 + $0x8] sm:$0xff]
    %v2099 = vld [vmem:[#allocation7 + $0x10] sm:$0xff]
    %v2100 = vld [vmem:[#allocation7 + $0x18] sm:$0xff]
    %v2101 = vld [vmem:[#allocation7 + $0x20] sm:$0xff]
    %v2102 = vld [vmem:[#allocation7 + $0x28] sm:$0xff]
    %v2103 = vld [vmem:[#allocation7 + $0x30] sm:$0xff]
    %v2104 = vld [vmem:[#allocation7 + $0x38] sm:$0xff]
    %v2105 = vld [vmem:[#allocation7 + $0x40] sm:$0xff]
    %v2106 = vld [vmem:[#allocation7 + $0x48] sm:$0xff]
    %v2107 = vld [vmem:[#allocation7 + $0x50] sm:$0xff]
    %v2108 = vld [vmem:[#allocation7 + $0x58] sm:$0xff]
    %v2109 = vld [vmem:[#allocation7 + $0x60] sm:$0xff]
    %v2110 = vld [vmem:[#allocation7 + $0x68] sm:$0xff]
    %v2111 = vld [vmem:[#allocation7 + $0x70] sm:$0xff]
    %v2112 = vld [vmem:[#allocation7 + $0x78] sm:$0xff]
    %v2113 = vld [vmem:[#allocation7 + $0x80] sm:$0xff]
    %v2114 = vld [vmem:[#allocation7 + $0x88] sm:$0xff]
    %v2115 = vld [vmem:[#allocation7 + $0x90] sm:$0xff]
    %v2116 = vld [vmem:[#allocation7 + $0x98] sm:$0xff]
    %v2117 = vld [vmem:[#allocation7 + $0xa0] sm:$0xff]
    %v2118 = vld [vmem:[#allocation7 + $0xa8] sm:$0xff]
    %v2119 = vld [vmem:[#allocation7 + $0xb0] sm:$0xff]
    %v2120 = vld [vmem:[#allocation7 + $0xb8] sm:$0xff]
    %v2121 = vld [vmem:[#allocation7 + $0xc0] sm:$0xff]
    %v2122 = vld [vmem:[#allocation7 + $0xc8] sm:$0xff]
    %v2123 = vld [vmem:[#allocation7 + $0xd0] sm:$0xff]
    %v2124 = vld [vmem:[#allocation7 + $0xd8] sm:$0xff]
    %v2125 = vld [vmem:[#allocation7 + $0xe0] sm:$0xff]
    %v2126 = vld [vmem:[#allocation7 + $0xe8] sm:$0xff]
    %v2127 = vld [vmem:[#allocation7 + $0xf0] sm:$0xff]
    %v2128 = vld [vmem:[#allocation7 + $0xf8] sm:$0xff]
    %v2129 = vld [vmem:[#allocation7 + $0x100] sm:$0xff]
    %v2130 = vld [vmem:[#allocation7 + $0x108] sm:$0xff]
    %v2131 = vld [vmem:[#allocation7 + $0x110] sm:$0xff]
    %v2132 = vld [vmem:[#allocation7 + $0x118] sm:$0xff]
    %v2133 = vld [vmem:[#allocation7 + $0x120] sm:$0xff]
    %v2134 = vld [vmem:[#allocation7 + $0x128] sm:$0xff]
    %v2135 = vld [vmem:[#allocation7 + $0x130] sm:$0xff]
    %v2136 = vld [vmem:[#allocation7 + $0x138] sm:$0xff]
    %v2137 = vld [vmem:[#allocation7 + $0x140] sm:$0xff]
    %v2138 = vld [vmem:[#allocation7 + $0x148] sm:$0xff]
    %v2139 = vld [vmem:[#allocation7 + $0x150] sm:$0xff]
    %v2140 = vld [vmem:[#allocation7 + $0x158] sm:$0xff]
    %v2141 = vld [vmem:[#allocation7 + $0x160] sm:$0xff]
    %v2142 = vld [vmem:[#allocation7 + $0x168] sm:$0xff]
    %v2143 = vld [vmem:[#allocation7 + $0x170] sm:$0xff]
    %v2144 = vld [vmem:[#allocation7 + $0x178] sm:$0xff]
    %v2145 = vld [vmem:[#allocation7 + $0x180] sm:$0xff]
    %v2146 = vld [vmem:[#allocation7 + $0x188] sm:$0xff]
    %v2147 = vld [vmem:[#allocation7 + $0x190] sm:$0xff]
    %v2148 = vld [vmem:[#allocation7 + $0x198] sm:$0xff]
    %v2149 = vld [vmem:[#allocation7 + $0x1a0] sm:$0xff]
    %v2150 = vld [vmem:[#allocation7 + $0x1a8] sm:$0xff]
    %v2151 = vld [vmem:[#allocation7 + $0x1b0] sm:$0xff]
    %v2152 = vld [vmem:[#allocation7 + $0x1b8] sm:$0xff]
    %v2153 = vld [vmem:[#allocation7 + $0x1c0] sm:$0xff]
    %v2154 = vld [vmem:[#allocation7 + $0x1c8] sm:$0xff]
    %v2155 = vld [vmem:[#allocation7 + $0x1d0] sm:$0xff]
    %v2156 = vld [vmem:[#allocation7 + $0x1d8] sm:$0xff]
    %v2157 = vld [vmem:[#allocation7 + $0x1e0] sm:$0xff]
    %v2158 = vld [vmem:[#allocation7 + $0x1e8] sm:$0xff]
    %v2159 = vld [vmem:[#allocation7 + $0x1f0] sm:$0xff]
    %v2160 = vld [vmem:[#allocation7 + $0x1f8] sm:$0xff]
    %v2161 = vld [vmem:[%s5] sm:$0x1]
    %v2163 = vunpack.c.l.s4 1966171168
    %v2164 = vunpack.c.0.s8 %v2163
    %v2165 = vlaneseq
    %v2166 = vshrl.u32 %v2165, 7
    %v2167 = vsub.s32 %v2164, %v2166
    %v2168 = vrot.slane %v308, %v2167
    %v2170 = vunpack.c.l.s4 1966171168
    %v2171 = vunpack.c.0.s8 %v2170
    %v2172 = vlaneseq
    %v2173 = vshrl.u32 %v2172, 7
    %v2174 = vsub.s32 %v2171, %v2173
    %v2175 = vrot.slane %v389, %v2174
    %v2176 = vcombine.high %v2168, %v2168
    %v2177 = vcombine.high %v2175, %v2175
    %v2179 = vunpack.c.l.s4 1966171168
    %v2180 = vunpack.c.0.s8 %v2179
    %v2181 = vlaneseq
    %v2182 = vshrl.u32 %v2181, 7
    %v2183 = vsub.s32 %v2180, %v2182
    %v2184 = vrot.slane %v2168, %v2183
    %v2186 = vunpack.c.l.s4 1966171168
    %v2187 = vunpack.c.0.s8 %v2186
    %v2188 = vlaneseq
    %v2189 = vshrl.u32 %v2188, 7
    %v2190 = vsub.s32 %v2187, %v2189
    %v2191 = vrot.slane %v2175, %v2190
    %v2193 = vunpack.c.l.s4 1966171168
    %v2194 = vunpack.c.0.s8 %v2193
    %v2195 = vlaneseq
    %v2196 = vshrl.u32 %v2195, 7
    %v2197 = vsub.s32 %v2194, %v2196
    %v2198 = vrot.slane %v2176, %v2197
    %v2200 = vunpack.c.l.s4 1966171168
    %v2201 = vunpack.c.0.s8 %v2200
    %v2202 = vlaneseq
    %v2203 = vshrl.u32 %v2202, 7
    %v2204 = vsub.s32 %v2201, %v2203
    %v2205 = vrot.slane %v2177, %v2204
    %v2206 = vcombine.high %v2184, %v2184
    %v2207 = vcombine.high %v2191, %v2191
    %v2208 = vcombine.high %v2198, %v2198
    %v2209 = vcombine.high %v2205, %v2205
    %v2211 = vunpack.c.l.s4 1966171168
    %v2212 = vunpack.c.0.s8 %v2211
    %v2213 = vlaneseq
    %v2214 = vshrl.u32 %v2213, 7
    %v2215 = vsub.s32 %v2212, %v2214
    %v2216 = vrot.slane %v316, %v2215
    %v2218 = vunpack.c.l.s4 1966171168
    %v2219 = vunpack.c.0.s8 %v2218
    %v2220 = vlaneseq
    %v2221 = vshrl.u32 %v2220, 7
    %v2222 = vsub.s32 %v2219, %v2221
    %v2223 = vrot.slane %v2216, %v2222
    %v2225 = vunpack.c.l.s4 1966171168
    %v2226 = vunpack.c.0.s8 %v2225
    %v2227 = vlaneseq
    %v2228 = vshrl.u32 %v2227, 7
    %v2229 = vsub.s32 %v2226, %v2228
    %v2230 = vrot.slane %v309, %v2229
    %v2232 = vunpack.c.l.s4 1966171168
    %v2233 = vunpack.c.0.s8 %v2232
    %v2234 = vlaneseq
    %v2235 = vshrl.u32 %v2234, 7
    %v2236 = vsub.s32 %v2233, %v2235
    %v2237 = vrot.slane %v413, %v2236
    %v2238 = vcombine.high %v2230, %v2230
    %v2239 = vcombine.high %v2237, %v2237
    %v2241 = vunpack.c.l.s4 1966171168
    %v2242 = vunpack.c.0.s8 %v2241
    %v2243 = vlaneseq
    %v2244 = vshrl.u32 %v2243, 7
    %v2245 = vsub.s32 %v2242, %v2244
    %v2246 = vrot.slane %v2230, %v2245
    %v2248 = vunpack.c.l.s4 1966171168
    %v2249 = vunpack.c.0.s8 %v2248
    %v2250 = vlaneseq
    %v2251 = vshrl.u32 %v2250, 7
    %v2252 = vsub.s32 %v2249, %v2251
    %v2253 = vrot.slane %v2237, %v2252
    %v2255 = vunpack.c.l.s4 1966171168
    %v2256 = vunpack.c.0.s8 %v2255
    %v2257 = vlaneseq
    %v2258 = vshrl.u32 %v2257, 7
    %v2259 = vsub.s32 %v2256, %v2258
    %v2260 = vrot.slane %v2238, %v2259
    %v2262 = vunpack.c.l.s4 1966171168
    %v2263 = vunpack.c.0.s8 %v2262
    %v2264 = vlaneseq
    %v2265 = vshrl.u32 %v2264, 7
    %v2266 = vsub.s32 %v2263, %v2265
    %v2267 = vrot.slane %v2239, %v2266
    %v2268 = vcombine.high %v2246, %v2246
    %v2269 = vcombine.high %v2253, %v2253
    %v2270 = vcombine.high %v2260, %v2260
    %v2271 = vcombine.high %v2267, %v2267
    %v2273 = vunpack.c.l.s4 1966171168
    %v2274 = vunpack.c.0.s8 %v2273
    %v2275 = vlaneseq
    %v2276 = vshrl.u32 %v2275, 7
    %v2277 = vsub.s32 %v2274, %v2276
    %v2278 = vrot.slane %v317, %v2277
    %v2280 = vunpack.c.l.s4 1966171168
    %v2281 = vunpack.c.0.s8 %v2280
    %v2282 = vlaneseq
    %v2283 = vshrl.u32 %v2282, 7
    %v2284 = vsub.s32 %v2281, %v2283
    %v2285 = vrot.slane %v2278, %v2284
    %v2287 = vunpack.c.l.s4 1966171168
    %v2288 = vunpack.c.0.s8 %v2287
    %v2289 = vlaneseq
    %v2290 = vshrl.u32 %v2289, 7
    %v2291 = vsub.s32 %v2288, %v2290
    %v2292 = vrot.slane %v310, %v2291
    %v2294 = vunpack.c.l.s4 1966171168
    %v2295 = vunpack.c.0.s8 %v2294
    %v2296 = vlaneseq
    %v2297 = vshrl.u32 %v2296, 7
    %v2298 = vsub.s32 %v2295, %v2297
    %v2299 = vrot.slane %v437, %v2298
    %v2300 = vcombine.high %v2292, %v2292
    %v2301 = vcombine.high %v2299, %v2299
    %v2303 = vunpack.c.l.s4 1966171168
    %v2304 = vunpack.c.0.s8 %v2303
    %v2305 = vlaneseq
    %v2306 = vshrl.u32 %v2305, 7
    %v2307 = vsub.s32 %v2304, %v2306
    %v2308 = vrot.slane %v2292, %v2307
    %v2310 = vunpack.c.l.s4 1966171168
    %v2311 = vunpack.c.0.s8 %v2310
    %v2312 = vlaneseq
    %v2313 = vshrl.u32 %v2312, 7
    %v2314 = vsub.s32 %v2311, %v2313
    %v2315 = vrot.slane %v2299, %v2314
    %v2317 = vunpack.c.l.s4 1966171168
    %v2318 = vunpack.c.0.s8 %v2317
    %v2319 = vlaneseq
    %v2320 = vshrl.u32 %v2319, 7
    %v2321 = vsub.s32 %v2318, %v2320
    %v2322 = vrot.slane %v2300, %v2321
    %v2324 = vunpack.c.l.s4 1966171168
    %v2325 = vunpack.c.0.s8 %v2324
    %v2326 = vlaneseq
    %v2327 = vshrl.u32 %v2326, 7
    %v2328 = vsub.s32 %v2325, %v2327
    %v2329 = vrot.slane %v2301, %v2328
    %v2330 = vcombine.high %v2308, %v2308
    %v2331 = vcombine.high %v2315, %v2315
    %v2332 = vcombine.high %v2322, %v2322
    %v2333 = vcombine.high %v2329, %v2329
    %v2335 = vunpack.c.l.s4 1966171168
    %v2336 = vunpack.c.0.s8 %v2335
    %v2337 = vlaneseq
    %v2338 = vshrl.u32 %v2337, 7
    %v2339 = vsub.s32 %v2336, %v2338
    %v2340 = vrot.slane %v318, %v2339
    %v2342 = vunpack.c.l.s4 1966171168
    %v2343 = vunpack.c.0.s8 %v2342
    %v2344 = vlaneseq
    %v2345 = vshrl.u32 %v2344, 7
    %v2346 = vsub.s32 %v2343, %v2345
    %v2347 = vrot.slane %v2340, %v2346
    %v2349 = vunpack.c.l.s4 1966171168
    %v2350 = vunpack.c.0.s8 %v2349
    %v2351 = vlaneseq
    %v2352 = vshrl.u32 %v2351, 7
    %v2353 = vsub.s32 %v2350, %v2352
    %v2354 = vrot.slane %v311, %v2353
    %v2356 = vunpack.c.l.s4 1966171168
    %v2357 = vunpack.c.0.s8 %v2356
    %v2358 = vlaneseq
    %v2359 = vshrl.u32 %v2358, 7
    %v2360 = vsub.s32 %v2357, %v2359
    %v2361 = vrot.slane %v461, %v2360
    %v2362 = vcombine.high %v2354, %v2354
    %v2363 = vcombine.high %v2361, %v2361
    %v2365 = vunpack.c.l.s4 1966171168
    %v2366 = vunpack.c.0.s8 %v2365
    %v2367 = vlaneseq
    %v2368 = vshrl.u32 %v2367, 7
    %v2369 = vsub.s32 %v2366, %v2368
    %v2370 = vrot.slane %v2354, %v2369
    %v2372 = vunpack.c.l.s4 1966171168
    %v2373 = vunpack.c.0.s8 %v2372
    %v2374 = vlaneseq
    %v2375 = vshrl.u32 %v2374, 7
    %v2376 = vsub.s32 %v2373, %v2375
    %v2377 = vrot.slane %v2361, %v2376
    %v2379 = vunpack.c.l.s4 1966171168
    %v2380 = vunpack.c.0.s8 %v2379
    %v2381 = vlaneseq
    %v2382 = vshrl.u32 %v2381, 7
    %v2383 = vsub.s32 %v2380, %v2382
    %v2384 = vrot.slane %v2362, %v2383
    %v2386 = vunpack.c.l.s4 1966171168
    %v2387 = vunpack.c.0.s8 %v2386
    %v2388 = vlaneseq
    %v2389 = vshrl.u32 %v2388, 7
    %v2390 = vsub.s32 %v2387, %v2389
    %v2391 = vrot.slane %v2363, %v2390
    %v2392 = vcombine.high %v2370, %v2370
    %v2393 = vcombine.high %v2377, %v2377
    %v2394 = vcombine.high %v2384, %v2384
    %v2395 = vcombine.high %v2391, %v2391
    %v2397 = vunpack.c.l.s4 1966171168
    %v2398 = vunpack.c.0.s8 %v2397
    %v2399 = vlaneseq
    %v2400 = vshrl.u32 %v2399, 7
    %v2401 = vsub.s32 %v2398, %v2400
    %v2402 = vrot.slane %v319, %v2401
    %v2404 = vunpack.c.l.s4 1966171168
    %v2405 = vunpack.c.0.s8 %v2404
    %v2406 = vlaneseq
    %v2407 = vshrl.u32 %v2406, 7
    %v2408 = vsub.s32 %v2405, %v2407
    %v2409 = vrot.slane %v2402, %v2408
    %v2411 = vunpack.c.l.s4 1966171168
    %v2412 = vunpack.c.0.s8 %v2411
    %v2413 = vlaneseq
    %v2414 = vshrl.u32 %v2413, 7
    %v2415 = vsub.s32 %v2412, %v2414
    %v2416 = vrot.slane %v312, %v2415
    %v2418 = vunpack.c.l.s4 1966171168
    %v2419 = vunpack.c.0.s8 %v2418
    %v2420 = vlaneseq
    %v2421 = vshrl.u32 %v2420, 7
    %v2422 = vsub.s32 %v2419, %v2421
    %v2423 = vrot.slane %v485, %v2422
    %v2424 = vcombine.high %v2416, %v2416
    %v2425 = vcombine.high %v2423, %v2423
    %v2427 = vunpack.c.l.s4 1966171168
    %v2428 = vunpack.c.0.s8 %v2427
    %v2429 = vlaneseq
    %v2430 = vshrl.u32 %v2429, 7
    %v2431 = vsub.s32 %v2428, %v2430
    %v2432 = vrot.slane %v2416, %v2431
    %v2434 = vunpack.c.l.s4 1966171168
    %v2435 = vunpack.c.0.s8 %v2434
    %v2436 = vlaneseq
    %v2437 = vshrl.u32 %v2436, 7
    %v2438 = vsub.s32 %v2435, %v2437
    %v2439 = vrot.slane %v2423, %v2438
    %v2441 = vunpack.c.l.s4 1966171168
    %v2442 = vunpack.c.0.s8 %v2441
    %v2443 = vlaneseq
    %v2444 = vshrl.u32 %v2443, 7
    %v2445 = vsub.s32 %v2442, %v2444
    %v2446 = vrot.slane %v2424, %v2445
    %v2448 = vunpack.c.l.s4 1966171168
    %v2449 = vunpack.c.0.s8 %v2448
    %v2450 = vlaneseq
    %v2451 = vshrl.u32 %v2450, 7
    %v2452 = vsub.s32 %v2449, %v2451
    %v2453 = vrot.slane %v2425, %v2452
    %v2454 = vcombine.high %v2432, %v2432
    %v2455 = vcombine.high %v2439, %v2439
    %v2456 = vcombine.high %v2446, %v2446
    %v2457 = vcombine.high %v2453, %v2453
    %v2459 = vunpack.c.l.s4 1966171168
    %v2460 = vunpack.c.0.s8 %v2459
    %v2461 = vlaneseq
    %v2462 = vshrl.u32 %v2461, 7
    %v2463 = vsub.s32 %v2460, %v2462
    %v2464 = vrot.slane %v320, %v2463
    %v2466 = vunpack.c.l.s4 1966171168
    %v2467 = vunpack.c.0.s8 %v2466
    %v2468 = vlaneseq
    %v2469 = vshrl.u32 %v2468, 7
    %v2470 = vsub.s32 %v2467, %v2469
    %v2471 = vrot.slane %v2464, %v2470
    %v2473 = vunpack.c.l.s4 1966171168
    %v2474 = vunpack.c.0.s8 %v2473
    %v2475 = vlaneseq
    %v2476 = vshrl.u32 %v2475, 7
    %v2477 = vsub.s32 %v2474, %v2476
    %v2478 = vrot.slane %v313, %v2477
    %v2480 = vunpack.c.l.s4 1966171168
    %v2481 = vunpack.c.0.s8 %v2480
    %v2482 = vlaneseq
    %v2483 = vshrl.u32 %v2482, 7
    %v2484 = vsub.s32 %v2481, %v2483
    %v2485 = vrot.slane %v509, %v2484
    %v2486 = vcombine.high %v2478, %v2478
    %v2487 = vcombine.high %v2485, %v2485
    %v2489 = vunpack.c.l.s4 1966171168
    %v2490 = vunpack.c.0.s8 %v2489
    %v2491 = vlaneseq
    %v2492 = vshrl.u32 %v2491, 7
    %v2493 = vsub.s32 %v2490, %v2492
    %v2494 = vrot.slane %v2478, %v2493
    %v2496 = vunpack.c.l.s4 1966171168
    %v2497 = vunpack.c.0.s8 %v2496
    %v2498 = vlaneseq
    %v2499 = vshrl.u32 %v2498, 7
    %v2500 = vsub.s32 %v2497, %v2499
    %v2501 = vrot.slane %v2485, %v2500
    %v2503 = vunpack.c.l.s4 1966171168
    %v2504 = vunpack.c.0.s8 %v2503
    %v2505 = vlaneseq
    %v2506 = vshrl.u32 %v2505, 7
    %v2507 = vsub.s32 %v2504, %v2506
    %v2508 = vrot.slane %v2486, %v2507
    %v2510 = vunpack.c.l.s4 1966171168
    %v2511 = vunpack.c.0.s8 %v2510
    %v2512 = vlaneseq
    %v2513 = vshrl.u32 %v2512, 7
    %v2514 = vsub.s32 %v2511, %v2513
    %v2515 = vrot.slane %v2487, %v2514
    %v2516 = vcombine.high %v2494, %v2494
    %v2517 = vcombine.high %v2501, %v2501
    %v2518 = vcombine.high %v2508, %v2508
    %v2519 = vcombine.high %v2515, %v2515
    %v2521 = vunpack.c.l.s4 1966171168
    %v2522 = vunpack.c.0.s8 %v2521
    %v2523 = vlaneseq
    %v2524 = vshrl.u32 %v2523, 7
    %v2525 = vsub.s32 %v2522, %v2524
    %v2526 = vrot.slane %v321, %v2525
    %v2528 = vunpack.c.l.s4 1966171168
    %v2529 = vunpack.c.0.s8 %v2528
    %v2530 = vlaneseq
    %v2531 = vshrl.u32 %v2530, 7
    %v2532 = vsub.s32 %v2529, %v2531
    %v2533 = vrot.slane %v2526, %v2532
    %v2535 = vunpack.c.l.s4 1966171168
    %v2536 = vunpack.c.0.s8 %v2535
    %v2537 = vlaneseq
    %v2538 = vshrl.u32 %v2537, 7
    %v2539 = vsub.s32 %v2536, %v2538
    %v2540 = vrot.slane %v314, %v2539
    %v2542 = vunpack.c.l.s4 1966171168
    %v2543 = vunpack.c.0.s8 %v2542
    %v2544 = vlaneseq
    %v2545 = vshrl.u32 %v2544, 7
    %v2546 = vsub.s32 %v2543, %v2545
    %v2547 = vrot.slane %v533, %v2546
    %v2548 = vcombine.high %v2540, %v2540
    %v2549 = vcombine.high %v2547, %v2547
    %v2551 = vunpack.c.l.s4 1966171168
    %v2552 = vunpack.c.0.s8 %v2551
    %v2553 = vlaneseq
    %v2554 = vshrl.u32 %v2553, 7
    %v2555 = vsub.s32 %v2552, %v2554
    %v2556 = vrot.slane %v2540, %v2555
    %v2558 = vunpack.c.l.s4 1966171168
    %v2559 = vunpack.c.0.s8 %v2558
    %v2560 = vlaneseq
    %v2561 = vshrl.u32 %v2560, 7
    %v2562 = vsub.s32 %v2559, %v2561
    %v2563 = vrot.slane %v2547, %v2562
    %v2565 = vunpack.c.l.s4 1966171168
    %v2566 = vunpack.c.0.s8 %v2565
    %v2567 = vlaneseq
    %v2568 = vshrl.u32 %v2567, 7
    %v2569 = vsub.s32 %v2566, %v2568
    %v2570 = vrot.slane %v2548, %v2569
    %v2572 = vunpack.c.l.s4 1966171168
    %v2573 = vunpack.c.0.s8 %v2572
    %v2574 = vlaneseq
    %v2575 = vshrl.u32 %v2574, 7
    %v2576 = vsub.s32 %v2573, %v2575
    %v2577 = vrot.slane %v2549, %v2576
    %v2578 = vcombine.high %v2556, %v2556
    %v2579 = vcombine.high %v2563, %v2563
    %v2580 = vcombine.high %v2570, %v2570
    %v2581 = vcombine.high %v2577, %v2577
    %v2583 = vunpack.c.l.s4 1966171168
    %v2584 = vunpack.c.0.s8 %v2583
    %v2585 = vlaneseq
    %v2586 = vshrl.u32 %v2585, 7
    %v2587 = vsub.s32 %v2584, %v2586
    %v2588 = vrot.slane %v322, %v2587
    %v2590 = vunpack.c.l.s4 1966171168
    %v2591 = vunpack.c.0.s8 %v2590
    %v2592 = vlaneseq
    %v2593 = vshrl.u32 %v2592, 7
    %v2594 = vsub.s32 %v2591, %v2593
    %v2595 = vrot.slane %v2588, %v2594
    %v2597 = vunpack.c.l.s4 1966171168
    %v2598 = vunpack.c.0.s8 %v2597
    %v2599 = vlaneseq
    %v2600 = vshrl.u32 %v2599, 7
    %v2601 = vsub.s32 %v2598, %v2600
    %v2602 = vrot.slane %v315, %v2601
    %v2604 = vunpack.c.l.s4 1966171168
    %v2605 = vunpack.c.0.s8 %v2604
    %v2606 = vlaneseq
    %v2607 = vshrl.u32 %v2606, 7
    %v2608 = vsub.s32 %v2605, %v2607
    %v2609 = vrot.slane %v557, %v2608
    %v2610 = vcombine.high %v2602, %v2602
    %v2611 = vcombine.high %v2609, %v2609
    %v2613 = vunpack.c.l.s4 1966171168
    %v2614 = vunpack.c.0.s8 %v2613
    %v2615 = vlaneseq
    %v2616 = vshrl.u32 %v2615, 7
    %v2617 = vsub.s32 %v2614, %v2616
    %v2618 = vrot.slane %v2602, %v2617
    %v2620 = vunpack.c.l.s4 1966171168
    %v2621 = vunpack.c.0.s8 %v2620
    %v2622 = vlaneseq
    %v2623 = vshrl.u32 %v2622, 7
    %v2624 = vsub.s32 %v2621, %v2623
    %v2625 = vrot.slane %v2609, %v2624
    %v2627 = vunpack.c.l.s4 1966171168
    %v2628 = vunpack.c.0.s8 %v2627
    %v2629 = vlaneseq
    %v2630 = vshrl.u32 %v2629, 7
    %v2631 = vsub.s32 %v2628, %v2630
    %v2632 = vrot.slane %v2610, %v2631
    %v2634 = vunpack.c.l.s4 1966171168
    %v2635 = vunpack.c.0.s8 %v2634
    %v2636 = vlaneseq
    %v2637 = vshrl.u32 %v2636, 7
    %v2638 = vsub.s32 %v2635, %v2637
    %v2639 = vrot.slane %v2611, %v2638
    %v2640 = vcombine.high %v2618, %v2618
    %v2641 = vcombine.high %v2625, %v2625
    %v2642 = vcombine.high %v2632, %v2632
    %v2643 = vcombine.high %v2639, %v2639
    %v2645 = vunpack.c.l.s4 1966171168
    %v2646 = vunpack.c.0.s8 %v2645
    %v2647 = vlaneseq
    %v2648 = vshrl.u32 %v2647, 7
    %v2649 = vsub.s32 %v2646, %v2648
    %v2650 = vrot.slane %v323, %v2649
    %v2652 = vunpack.c.l.s4 1966171168
    %v2653 = vunpack.c.0.s8 %v2652
    %v2654 = vlaneseq
    %v2655 = vshrl.u32 %v2654, 7
    %v2656 = vsub.s32 %v2653, %v2655
    %v2657 = vrot.slane %v2650, %v2656
    %v2658 = vcombine.high %v2216, %v2216
    %v2660 = vunpack.c.l.s4 1966171168
    %v2661 = vunpack.c.0.s8 %v2660
    %v2662 = vlaneseq
    %v2663 = vshrl.u32 %v2662, 7
    %v2664 = vsub.s32 %v2661, %v2663
    %v2665 = vrot.slane %v2658, %v2664
    %v2666 = vcombine.high %v2278, %v2278
    %v2668 = vunpack.c.l.s4 1966171168
    %v2669 = vunpack.c.0.s8 %v2668
    %v2670 = vlaneseq
    %v2671 = vshrl.u32 %v2670, 7
    %v2672 = vsub.s32 %v2669, %v2671
    %v2673 = vrot.slane %v2666, %v2672
    %v2674 = vcombine.high %v2340, %v2340
    %v2676 = vunpack.c.l.s4 1966171168
    %v2677 = vunpack.c.0.s8 %v2676
    %v2678 = vlaneseq
    %v2679 = vshrl.u32 %v2678, 7
    %v2680 = vsub.s32 %v2677, %v2679
    %v2681 = vrot.slane %v2674, %v2680
    %v2682 = vcombine.high %v2402, %v2402
    %v2684 = vunpack.c.l.s4 1966171168
    %v2685 = vunpack.c.0.s8 %v2684
    %v2686 = vlaneseq
    %v2687 = vshrl.u32 %v2686, 7
    %v2688 = vsub.s32 %v2685, %v2687
    %v2689 = vrot.slane %v2682, %v2688
    %v2690 = vcombine.high %v2464, %v2464
    %v2692 = vunpack.c.l.s4 1966171168
    %v2693 = vunpack.c.0.s8 %v2692
    %v2694 = vlaneseq
    %v2695 = vshrl.u32 %v2694, 7
    %v2696 = vsub.s32 %v2693, %v2695
    %v2697 = vrot.slane %v2690, %v2696
    %v2698 = vcombine.high %v2526, %v2526
    %v2700 = vunpack.c.l.s4 1966171168
    %v2701 = vunpack.c.0.s8 %v2700
    %v2702 = vlaneseq
    %v2703 = vshrl.u32 %v2702, 7
    %v2704 = vsub.s32 %v2701, %v2703
    %v2705 = vrot.slane %v2698, %v2704
    %v2706 = vcombine.high %v2588, %v2588
    %v2708 = vunpack.c.l.s4 1966171168
    %v2709 = vunpack.c.0.s8 %v2708
    %v2710 = vlaneseq
    %v2711 = vshrl.u32 %v2710, 7
    %v2712 = vsub.s32 %v2709, %v2711
    %v2713 = vrot.slane %v2706, %v2712
    %v2714 = vcombine.high %v2650, %v2650
    %v2716 = vunpack.c.l.s4 1966171168
    %v2717 = vunpack.c.0.s8 %v2716
    %v2718 = vlaneseq
    %v2719 = vshrl.u32 %v2718, 7
    %v2720 = vsub.s32 %v2717, %v2719
    %v2721 = vrot.slane %v2714, %v2720
    %v2722 = vcombine.low %v2198, %v2206
    %v2723 = vcombine.low %v2208, %v2191
    %v2724 = vcombine.low %v2205, %v2207
    %v2725 = vcombine.low %v2209, %v2223
    %v2727 = vunpack.c.l.s4 1966171168
    %v2728 = vunpack.c.0.s8 %v2727
    %v2729 = vlaneseq
    %v2730 = vshrl.u32 %v2729, 7
    %v2731 = vsub.s32 %v2728, %v2730
    %v2732 = vrot.slane %v2722, %v2731
    %v2734 = vunpack.c.l.s4 1966171168
    %v2735 = vunpack.c.0.s8 %v2734
    %v2736 = vlaneseq
    %v2737 = vshrl.u32 %v2736, 7
    %v2738 = vsub.s32 %v2735, %v2737
    %v2739 = vrot.slane %v2723, %v2738
    %v2741 = vunpack.c.l.s4 1966171168
    %v2742 = vunpack.c.0.s8 %v2741
    %v2743 = vlaneseq
    %v2744 = vshrl.u32 %v2743, 7
    %v2745 = vsub.s32 %v2742, %v2744
    %v2746 = vrot.slane %v2724, %v2745
    %v2748 = vunpack.c.l.s4 1966171168
    %v2749 = vunpack.c.0.s8 %v2748
    %v2750 = vlaneseq
    %v2751 = vshrl.u32 %v2750, 7
    %v2752 = vsub.s32 %v2749, %v2751
    %v2753 = vrot.slane %v2725, %v2752
    %v2754 = vcombine.low %v2732, %v2739
    %v2755 = vcombine.low %v2746, %v2753
    %v2757 = vunpack.c.l.s4 1966171168
    %v2758 = vunpack.c.0.s8 %v2757
    %v2759 = vlaneseq
    %v2760 = vshrl.u32 %v2759, 7
    %v2761 = vsub.s32 %v2758, %v2760
    %v2762 = vrot.slane %v2754, %v2761
    %v2764 = vunpack.c.l.s4 1966171168
    %v2765 = vunpack.c.0.s8 %v2764
    %v2766 = vlaneseq
    %v2767 = vshrl.u32 %v2766, 7
    %v2768 = vsub.s32 %v2765, %v2767
    %v2769 = vrot.slane %v2755, %v2768
    %v2770 = vcombine.low %v2762, %v2769
    %v2771 = vcombine.low %v2665, %v2260
    %v2772 = vcombine.low %v2268, %v2270
    %v2773 = vcombine.low %v2253, %v2267
    %v2774 = vcombine.low %v2269, %v2271
    %v2776 = vunpack.c.l.s4 1966171168
    %v2777 = vunpack.c.0.s8 %v2776
    %v2778 = vlaneseq
    %v2779 = vshrl.u32 %v2778, 7
    %v2780 = vsub.s32 %v2777, %v2779
    %v2781 = vrot.slane %v2771, %v2780
    %v2783 = vunpack.c.l.s4 1966171168
    %v2784 = vunpack.c.0.s8 %v2783
    %v2785 = vlaneseq
    %v2786 = vshrl.u32 %v2785, 7
    %v2787 = vsub.s32 %v2784, %v2786
    %v2788 = vrot.slane %v2772, %v2787
    %v2790 = vunpack.c.l.s4 1966171168
    %v2791 = vunpack.c.0.s8 %v2790
    %v2792 = vlaneseq
    %v2793 = vshrl.u32 %v2792, 7
    %v2794 = vsub.s32 %v2791, %v2793
    %v2795 = vrot.slane %v2773, %v2794
    %v2797 = vunpack.c.l.s4 1966171168
    %v2798 = vunpack.c.0.s8 %v2797
    %v2799 = vlaneseq
    %v2800 = vshrl.u32 %v2799, 7
    %v2801 = vsub.s32 %v2798, %v2800
    %v2802 = vrot.slane %v2774, %v2801
    %v2803 = vcombine.low %v2781, %v2788
    %v2804 = vcombine.low %v2795, %v2802
    %v2806 = vunpack.c.l.s4 1966171168
    %v2807 = vunpack.c.0.s8 %v2806
    %v2808 = vlaneseq
    %v2809 = vshrl.u32 %v2808, 7
    %v2810 = vsub.s32 %v2807, %v2809
    %v2811 = vrot.slane %v2803, %v2810
    %v2813 = vunpack.c.l.s4 1966171168
    %v2814 = vunpack.c.0.s8 %v2813
    %v2815 = vlaneseq
    %v2816 = vshrl.u32 %v2815, 7
    %v2817 = vsub.s32 %v2814, %v2816
    %v2818 = vrot.slane %v2804, %v2817
    %v2819 = vcombine.low %v2811, %v2818
    %v2820 = vcombine.low %v2285, %v2673
    %v2821 = vcombine.low %v2322, %v2330
    %v2822 = vcombine.low %v2332, %v2315
    %v2823 = vcombine.low %v2329, %v2331
    %v2825 = vunpack.c.l.s4 1966171168
    %v2826 = vunpack.c.0.s8 %v2825
    %v2827 = vlaneseq
    %v2828 = vshrl.u32 %v2827, 7
    %v2829 = vsub.s32 %v2826, %v2828
    %v2830 = vrot.slane %v2820, %v2829
    %v2832 = vunpack.c.l.s4 1966171168
    %v2833 = vunpack.c.0.s8 %v2832
    %v2834 = vlaneseq
    %v2835 = vshrl.u32 %v2834, 7
    %v2836 = vsub.s32 %v2833, %v2835
    %v2837 = vrot.slane %v2821, %v2836
    %v2839 = vunpack.c.l.s4 1966171168
    %v2840 = vunpack.c.0.s8 %v2839
    %v2841 = vlaneseq
    %v2842 = vshrl.u32 %v2841, 7
    %v2843 = vsub.s32 %v2840, %v2842
    %v2844 = vrot.slane %v2822, %v2843
    %v2846 = vunpack.c.l.s4 1966171168
    %v2847 = vunpack.c.0.s8 %v2846
    %v2848 = vlaneseq
    %v2849 = vshrl.u32 %v2848, 7
    %v2850 = vsub.s32 %v2847, %v2849
    %v2851 = vrot.slane %v2823, %v2850
    %v2852 = vcombine.low %v2830, %v2837
    %v2853 = vcombine.low %v2844, %v2851
    %v2855 = vunpack.c.l.s4 1966171168
    %v2856 = vunpack.c.0.s8 %v2855
    %v2857 = vlaneseq
    %v2858 = vshrl.u32 %v2857, 7
    %v2859 = vsub.s32 %v2856, %v2858
    %v2860 = vrot.slane %v2852, %v2859
    %v2862 = vunpack.c.l.s4 1966171168
    %v2863 = vunpack.c.0.s8 %v2862
    %v2864 = vlaneseq
    %v2865 = vshrl.u32 %v2864, 7
    %v2866 = vsub.s32 %v2863, %v2865
    %v2867 = vrot.slane %v2853, %v2866
    %v2868 = vcombine.low %v2860, %v2867
    %v2869 = vcombine.low %v2333, %v2347
    %v2870 = vcombine.low %v2681, %v2384
    %v2871 = vcombine.low %v2392, %v2394
    %v2872 = vcombine.low %v2377, %v2391
    %v2874 = vunpack.c.l.s4 1966171168
    %v2875 = vunpack.c.0.s8 %v2874
    %v2876 = vlaneseq
    %v2877 = vshrl.u32 %v2876, 7
    %v2878 = vsub.s32 %v2875, %v2877
    %v2879 = vrot.slane %v2869, %v2878
    %v2881 = vunpack.c.l.s4 1966171168
    %v2882 = vunpack.c.0.s8 %v2881
    %v2883 = vlaneseq
    %v2884 = vshrl.u32 %v2883, 7
    %v2885 = vsub.s32 %v2882, %v2884
    %v2886 = vrot.slane %v2870, %v2885
    %v2888 = vunpack.c.l.s4 1966171168
    %v2889 = vunpack.c.0.s8 %v2888
    %v2890 = vlaneseq
    %v2891 = vshrl.u32 %v2890, 7
    %v2892 = vsub.s32 %v2889, %v2891
    %v2893 = vrot.slane %v2871, %v2892
    %v2895 = vunpack.c.l.s4 1966171168
    %v2896 = vunpack.c.0.s8 %v2895
    %v2897 = vlaneseq
    %v2898 = vshrl.u32 %v2897, 7
    %v2899 = vsub.s32 %v2896, %v2898
    %v2900 = vrot.slane %v2872, %v2899
    %v2901 = vcombine.low %v2879, %v2886
    %v2902 = vcombine.low %v2893, %v2900
    %v2904 = vunpack.c.l.s4 1966171168
    %v2905 = vunpack.c.0.s8 %v2904
    %v2906 = vlaneseq
    %v2907 = vshrl.u32 %v2906, 7
    %v2908 = vsub.s32 %v2905, %v2907
    %v2909 = vrot.slane %v2901, %v2908
    %v2911 = vunpack.c.l.s4 1966171168
    %v2912 = vunpack.c.0.s8 %v2911
    %v2913 = vlaneseq
    %v2914 = vshrl.u32 %v2913, 7
    %v2915 = vsub.s32 %v2912, %v2914
    %v2916 = vrot.slane %v2902, %v2915
    %v2917 = vcombine.low %v2909, %v2916
    %v2918 = vcombine.low %v2393, %v2395
    %v2919 = vcombine.low %v2409, %v2689
    %v2920 = vcombine.low %v2446, %v2454
    %v2921 = vcombine.low %v2456, %v2439
    %v2923 = vunpack.c.l.s4 1966171168
    %v2924 = vunpack.c.0.s8 %v2923
    %v2925 = vlaneseq
    %v2926 = vshrl.u32 %v2925, 7
    %v2927 = vsub.s32 %v2924, %v2926
    %v2928 = vrot.slane %v2918, %v2927
    %v2930 = vunpack.c.l.s4 1966171168
    %v2931 = vunpack.c.0.s8 %v2930
    %v2932 = vlaneseq
    %v2933 = vshrl.u32 %v2932, 7
    %v2934 = vsub.s32 %v2931, %v2933
    %v2935 = vrot.slane %v2919, %v2934
    %v2937 = vunpack.c.l.s4 1966171168
    %v2938 = vunpack.c.0.s8 %v2937
    %v2939 = vlaneseq
    %v2940 = vshrl.u32 %v2939, 7
    %v2941 = vsub.s32 %v2938, %v2940
    %v2942 = vrot.slane %v2920, %v2941
    %v2944 = vunpack.c.l.s4 1966171168
    %v2945 = vunpack.c.0.s8 %v2944
    %v2946 = vlaneseq
    %v2947 = vshrl.u32 %v2946, 7
    %v2948 = vsub.s32 %v2945, %v2947
    %v2949 = vrot.slane %v2921, %v2948
    %v2950 = vcombine.low %v2928, %v2935
    %v2951 = vcombine.low %v2942, %v2949
    %v2953 = vunpack.c.l.s4 1966171168
    %v2954 = vunpack.c.0.s8 %v2953
    %v2955 = vlaneseq
    %v2956 = vshrl.u32 %v2955, 7
    %v2957 = vsub.s32 %v2954, %v2956
    %v2958 = vrot.slane %v2950, %v2957
    %v2960 = vunpack.c.l.s4 1966171168
    %v2961 = vunpack.c.0.s8 %v2960
    %v2962 = vlaneseq
    %v2963 = vshrl.u32 %v2962, 7
    %v2964 = vsub.s32 %v2961, %v2963
    %v2965 = vrot.slane %v2951, %v2964
    %v2966 = vcombine.low %v2958, %v2965
    %v2967 = vcombine.low %v2453, %v2455
    %v2968 = vcombine.low %v2457, %v2471
    %v2969 = vcombine.low %v2697, %v2508
    %v2970 = vcombine.low %v2516, %v2518
    %v2972 = vunpack.c.l.s4 1966171168
    %v2973 = vunpack.c.0.s8 %v2972
    %v2974 = vlaneseq
    %v2975 = vshrl.u32 %v2974, 7
    %v2976 = vsub.s32 %v2973, %v2975
    %v2977 = vrot.slane %v2967, %v2976
    %v2979 = vunpack.c.l.s4 1966171168
    %v2980 = vunpack.c.0.s8 %v2979
    %v2981 = vlaneseq
    %v2982 = vshrl.u32 %v2981, 7
    %v2983 = vsub.s32 %v2980, %v2982
    %v2984 = vrot.slane %v2968, %v2983
    %v2986 = vunpack.c.l.s4 1966171168
    %v2987 = vunpack.c.0.s8 %v2986
    %v2988 = vlaneseq
    %v2989 = vshrl.u32 %v2988, 7
    %v2990 = vsub.s32 %v2987, %v2989
    %v2991 = vrot.slane %v2969, %v2990
    %v2993 = vunpack.c.l.s4 1966171168
    %v2994 = vunpack.c.0.s8 %v2993
    %v2995 = vlaneseq
    %v2996 = vshrl.u32 %v2995, 7
    %v2997 = vsub.s32 %v2994, %v2996
    %v2998 = vrot.slane %v2970, %v2997
    %v2999 = vcombine.low %v2977, %v2984
    %v3000 = vcombine.low %v2991, %v2998
    %v3002 = vunpack.c.l.s4 1966171168
    %v3003 = vunpack.c.0.s8 %v3002
    %v3004 = vlaneseq
    %v3005 = vshrl.u32 %v3004, 7
    %v3006 = vsub.s32 %v3003, %v3005
    %v3007 = vrot.slane %v2999, %v3006
    %v3009 = vunpack.c.l.s4 1966171168
    %v3010 = vunpack.c.0.s8 %v3009
    %v3011 = vlaneseq
    %v3012 = vshrl.u32 %v3011, 7
    %v3013 = vsub.s32 %v3010, %v3012
    %v3014 = vrot.slane %v3000, %v3013
    %v3015 = vcombine.low %v3007, %v3014
    %v3016 = vcombine.low %v2501, %v2515
    %v3017 = vcombine.low %v2517, %v2519
    %v3018 = vcombine.low %v2533, %v2705
    %v3019 = vcombine.low %v2570, %v2578
    %v3021 = vunpack.c.l.s4 1966171168
    %v3022 = vunpack.c.0.s8 %v3021
    %v3023 = vlaneseq
    %v3024 = vshrl.u32 %v3023, 7
    %v3025 = vsub.s32 %v3022, %v3024
    %v3026 = vrot.slane %v3016, %v3025
    %v3028 = vunpack.c.l.s4 1966171168
    %v3029 = vunpack.c.0.s8 %v3028
    %v3030 = vlaneseq
    %v3031 = vshrl.u32 %v3030, 7
    %v3032 = vsub.s32 %v3029, %v3031
    %v3033 = vrot.slane %v3017, %v3032
    %v3035 = vunpack.c.l.s4 1966171168
    %v3036 = vunpack.c.0.s8 %v3035
    %v3037 = vlaneseq
    %v3038 = vshrl.u32 %v3037, 7
    %v3039 = vsub.s32 %v3036, %v3038
    %v3040 = vrot.slane %v3018, %v3039
    %v3042 = vunpack.c.l.s4 1966171168
    %v3043 = vunpack.c.0.s8 %v3042
    %v3044 = vlaneseq
    %v3045 = vshrl.u32 %v3044, 7
    %v3046 = vsub.s32 %v3043, %v3045
    %v3047 = vrot.slane %v3019, %v3046
    %v3048 = vcombine.low %v3026, %v3033
    %v3049 = vcombine.low %v3040, %v3047
    %v3051 = vunpack.c.l.s4 1966171168
    %v3052 = vunpack.c.0.s8 %v3051
    %v3053 = vlaneseq
    %v3054 = vshrl.u32 %v3053, 7
    %v3055 = vsub.s32 %v3052, %v3054
    %v3056 = vrot.slane %v3048, %v3055
    %v3058 = vunpack.c.l.s4 1966171168
    %v3059 = vunpack.c.0.s8 %v3058
    %v3060 = vlaneseq
    %v3061 = vshrl.u32 %v3060, 7
    %v3062 = vsub.s32 %v3059, %v3061
    %v3063 = vrot.slane %v3049, %v3062
    %v3064 = vcombine.low %v3056, %v3063
    %v3065 = vcombine.low %v2580, %v2563
    %v3066 = vcombine.low %v2577, %v2579
    %v3067 = vcombine.low %v2581, %v2595
    %v3068 = vcombine.low %v2713, %v2632
    %v3070 = vunpack.c.l.s4 1966171168
    %v3071 = vunpack.c.0.s8 %v3070
    %v3072 = vlaneseq
    %v3073 = vshrl.u32 %v3072, 7
    %v3074 = vsub.s32 %v3071, %v3073
    %v3075 = vrot.slane %v3065, %v3074
    %v3077 = vunpack.c.l.s4 1966171168
    %v3078 = vunpack.c.0.s8 %v3077
    %v3079 = vlaneseq
    %v3080 = vshrl.u32 %v3079, 7
    %v3081 = vsub.s32 %v3078, %v3080
    %v3082 = vrot.slane %v3066, %v3081
    %v3084 = vunpack.c.l.s4 1966171168
    %v3085 = vunpack.c.0.s8 %v3084
    %v3086 = vlaneseq
    %v3087 = vshrl.u32 %v3086, 7
    %v3088 = vsub.s32 %v3085, %v3087
    %v3089 = vrot.slane %v3067, %v3088
    %v3091 = vunpack.c.l.s4 1966171168
    %v3092 = vunpack.c.0.s8 %v3091
    %v3093 = vlaneseq
    %v3094 = vshrl.u32 %v3093, 7
    %v3095 = vsub.s32 %v3092, %v3094
    %v3096 = vrot.slane %v3068, %v3095
    %v3097 = vcombine.low %v3075, %v3082
    %v3098 = vcombine.low %v3089, %v3096
    %v3100 = vunpack.c.l.s4 1966171168
    %v3101 = vunpack.c.0.s8 %v3100
    %v3102 = vlaneseq
    %v3103 = vshrl.u32 %v3102, 7
    %v3104 = vsub.s32 %v3101, %v3103
    %v3105 = vrot.slane %v3097, %v3104
    %v3107 = vunpack.c.l.s4 1966171168
    %v3108 = vunpack.c.0.s8 %v3107
    %v3109 = vlaneseq
    %v3110 = vshrl.u32 %v3109, 7
    %v3111 = vsub.s32 %v3108, %v3110
    %v3112 = vrot.slane %v3098, %v3111
    %v3113 = vcombine.low %v3105, %v3112
    %v3114 = vcombine.low %v2640, %v2642
    %v3115 = vcombine.low %v2625, %v2639
    %v3116 = vcombine.low %v2641, %v2643
    %v3117 = vcombine.low %v2657, %v2721
    %v3119 = vunpack.c.l.s4 1966171168
    %v3120 = vunpack.c.0.s8 %v3119
    %v3121 = vlaneseq
    %v3122 = vshrl.u32 %v3121, 7
    %v3123 = vsub.s32 %v3120, %v3122
    %v3124 = vrot.slane %v3114, %v3123
    %v3126 = vunpack.c.l.s4 1966171168
    %v3127 = vunpack.c.0.s8 %v3126
    %v3128 = vlaneseq
    %v3129 = vshrl.u32 %v3128, 7
    %v3130 = vsub.s32 %v3127, %v3129
    %v3131 = vrot.slane %v3115, %v3130
    %v3133 = vunpack.c.l.s4 1966171168
    %v3134 = vunpack.c.0.s8 %v3133
    %v3135 = vlaneseq
    %v3136 = vshrl.u32 %v3135, 7
    %v3137 = vsub.s32 %v3134, %v3136
    %v3138 = vrot.slane %v3116, %v3137
    %v3140 = vunpack.c.l.s4 1966171168
    %v3141 = vunpack.c.0.s8 %v3140
    %v3142 = vlaneseq
    %v3143 = vshrl.u32 %v3142, 7
    %v3144 = vsub.s32 %v3141, %v3143
    %v3145 = vrot.slane %v3117, %v3144
    %v3146 = vcombine.low %v3124, %v3131
    %v3147 = vcombine.low %v3138, %v3145
    %v3149 = vunpack.c.l.s4 1966171168
    %v3150 = vunpack.c.0.s8 %v3149
    %v3151 = vlaneseq
    %v3152 = vshrl.u32 %v3151, 7
    %v3153 = vsub.s32 %v3150, %v3152
    %v3154 = vrot.slane %v3146, %v3153
    %v3156 = vunpack.c.l.s4 1966171168
    %v3157 = vunpack.c.0.s8 %v3156
    %v3158 = vlaneseq
    %v3159 = vshrl.u32 %v3158, 7
    %v3160 = vsub.s32 %v3157, %v3159
    %v3161 = vrot.slane %v3147, %v3160
    %v3162 = vcombine.low %v3154, %v3161
    %3172 = vmatprep.subr.mxu0 0.0
    %3173 = vmatpush1.msra.mxu0 %v2128
    %3174 = vmatprep.subr.mxu0 0.0
    %3175 = vmatpush1.msra.mxu0 %v2127
    %3176 = vmatprep.subr.mxu0 0.0
    %3177 = vmatpush1.msra.mxu0 %v2126
    %3178 = vmatprep.subr.mxu0 0.0
    %3179 = vmatpush1.msra.mxu0 %v2125
    %3180 = vmatprep.subr.mxu0 0.0
    %3181 = vmatpush1.msra.mxu0 %v2124
    %3182 = vmatprep.subr.mxu0 0.0
    %3183 = vmatpush1.msra.mxu0 %v2123
    %3184 = vmatprep.subr.mxu0 0.0
    %3185 = vmatpush1.msra.mxu0 %v2122
    %3186 = vmatprep.subr.mxu0 0.0
    %3187 = vmatpush1.msra.mxu0 %v2121
    %3188 = vmatprep.subr.mxu0 0.0
    %3189 = vmatpush1.msra.mxu0 %v2120
    %3190 = vmatprep.subr.mxu0 0.0
    %3191 = vmatpush1.msra.mxu0 %v2119
    %3192 = vmatprep.subr.mxu0 0.0
    %3193 = vmatpush1.msra.mxu0 %v2118
    %3194 = vmatprep.subr.mxu0 0.0
    %3195 = vmatpush1.msra.mxu0 %v2117
    %3196 = vmatprep.subr.mxu0 0.0
    %3197 = vmatpush1.msra.mxu0 %v2116
    %3198 = vmatprep.subr.mxu0 0.0
    %3199 = vmatpush1.msra.mxu0 %v2115
    %3200 = vmatprep.subr.mxu0 0.0
    %3201 = vmatpush1.msra.mxu0 %v2114
    %3202 = vmatprep.subr.mxu0 0.0
    %3203 = vmatpush1.msra.mxu0 %v2113
    %3204 = vmatprep.subr.mxu0 0.0
    %3205 = vmatpush2.msra.mxu0 0.0
    %3206 = vmatprep.subr.mxu0 0.0
    %3207 = vmatpush2.msra.mxu0 0.0
    %3208 = vmatprep.subr.mxu0 0.0
    %3209 = vmatpush2.msra.mxu0 0.0
    %3210 = vmatprep.subr.mxu0 0.0
    %3211 = vmatpush2.msra.mxu0 0.0
    %3212 = vmatprep.subr.mxu0 0.0
    %3213 = vmatpush2.msra.mxu0 0.0
    %3214 = vmatprep.subr.mxu0 0.0
    %3215 = vmatpush2.msra.mxu0 0.0
    %3216 = vmatprep.subr.mxu0 0.0
    %3217 = vmatpush2.msra.mxu0 0.0
    %3218 = vmatprep.subr.mxu0 0.0
    %3219 = vmatpush2.msra.mxu0 0.0
    %3220 = vmatprep.subr.mxu0 0.0
    %3221 = vmatpush2.msra.mxu0 0.0
    %3222 = vmatprep.subr.mxu0 0.0
    %3223 = vmatpush2.msra.mxu0 0.0
    %3224 = vmatprep.subr.mxu0 0.0
    %3225 = vmatpush2.msra.mxu0 0.0
    %3226 = vmatprep.subr.mxu0 0.0
    %3227 = vmatpush2.msra.mxu0 0.0
    %3228 = vmatprep.subr.mxu0 0.0
    %3229 = vmatpush2.msra.mxu0 0.0
    %3230 = vmatprep.subr.mxu0 0.0
    %3231 = vmatpush2.msra.mxu0 0.0
    %3232 = vmatprep.subr.mxu0 0.0
    %3233 = vmatpush2.msra.mxu0 0.0
    %3234 = vmatprep.subr.mxu0 0.0
    %3235 = vmatpush2.msra.mxu0 0.0
    %3236 = vmatprep.mubr.f32.mxu0 0.0
    %3237 = vmatmul.mubr.f32.gmra.mxu0 %v2770
    %v3238 = vpop.f32.mrf.mxu0
    %v3239 = vadd.f32 0.0, %v3238
    %v3240 = vpop.f32.mrf.mxu0
    %3241 = vmatprep.mubr.f32.mxu0 0.0
    %3242 = vmatmul.mubr.f32.gmra.mxu0 %v2819
    %v3243 = vpop.f32.mrf.mxu0
    %v3244 = vadd.f32 0.0, %v3243
    %v3245 = vpop.f32.mrf.mxu0
    %3246 = vmatprep.mubr.f32.mxu0 0.0
    %3247 = vmatmul.mubr.f32.gmra.mxu0 %v2868
    %v3248 = vpop.f32.mrf.mxu0
    %v3249 = vadd.f32 0.0, %v3248
    %v3250 = vpop.f32.mrf.mxu0
    %3251 = vmatprep.mubr.f32.mxu0 0.0
    %3252 = vmatmul.mubr.f32.gmra.mxu0 %v2917
    %v3253 = vpop.f32.mrf.mxu0
    %v3254 = vadd.f32 0.0, %v3253
    %v3255 = vpop.f32.mrf.mxu0
    %3256 = vmatprep.mubr.f32.mxu0 0.0
    %3257 = vmatmul.mubr.f32.gmra.mxu0 %v2966
    %v3258 = vpop.f32.mrf.mxu0
    %v3259 = vadd.f32 0.0, %v3258
    %v3260 = vpop.f32.mrf.mxu0
    %3261 = vmatprep.mubr.f32.mxu0 0.0
    %3262 = vmatmul.mubr.f32.gmra.mxu0 %v3015
    %v3263 = vpop.f32.mrf.mxu0
    %v3264 = vadd.f32 0.0, %v3263
    %v3265 = vpop.f32.mrf.mxu0
    %3266 = vmatprep.mubr.f32.mxu0 0.0
    %3267 = vmatmul.mubr.f32.gmra.mxu0 %v3064
    %v3268 = vpop.f32.mrf.mxu0
    %v3269 = vadd.f32 0.0, %v3268
    %v3270 = vpop.f32.mrf.mxu0
    %3271 = vmatprep.mubr.f32.mxu0 0.0
    %3272 = vmatmul.mubr.f32.gmra.mxu0 %v3113
    %v3273 = vpop.f32.mrf.mxu0
    %v3274 = vadd.f32 0.0, %v3273
    %v3275 = vpop.f32.mrf.mxu0
    %3276 = vmatprep.mubr.f32.mxu0 0.0
    %3277 = vmatmul.mubr.f32.gmra.mxu0 %v3162
    %v3278 = vpop.f32.mrf.mxu0
    %v3279 = vadd.f32 0.0, %v3278
    %v3280 = vpop.f32.mrf.mxu0
    %3281 = vdwg.mxu0
    %v3282 = vcombine.low %v2184, %v2198
    %v3283 = vcombine.low %v2206, %v2208
    %v3284 = vcombine.low %v2191, %v2205
    %v3285 = vcombine.low %v2207, %v2209
    %v3287 = vunpack.c.l.s4 1966171168
    %v3288 = vunpack.c.0.s8 %v3287
    %v3289 = vlaneseq
    %v3290 = vshrl.u32 %v3289, 7
    %v3291 = vsub.s32 %v3288, %v3290
    %v3292 = vrot.slane %v3282, %v3291
    %v3294 = vunpack.c.l.s4 1966171168
    %v3295 = vunpack.c.0.s8 %v3294
    %v3296 = vlaneseq
    %v3297 = vshrl.u32 %v3296, 7
    %v3298 = vsub.s32 %v3295, %v3297
    %v3299 = vrot.slane %v3283, %v3298
    %v3301 = vunpack.c.l.s4 1966171168
    %v3302 = vunpack.c.0.s8 %v3301
    %v3303 = vlaneseq
    %v3304 = vshrl.u32 %v3303, 7
    %v3305 = vsub.s32 %v3302, %v3304
    %v3306 = vrot.slane %v3284, %v3305
    %v3308 = vunpack.c.l.s4 1966171168
    %v3309 = vunpack.c.0.s8 %v3308
    %v3310 = vlaneseq
    %v3311 = vshrl.u32 %v3310, 7
    %v3312 = vsub.s32 %v3309, %v3311
    %v3313 = vrot.slane %v3285, %v3312
    %v3314 = vcombine.low %v3292, %v3299
    %v3315 = vcombine.low %v3306, %v3313
    %v3317 = vunpack.c.l.s4 1966171168
    %v3318 = vunpack.c.0.s8 %v3317
    %v3319 = vlaneseq
    %v3320 = vshrl.u32 %v3319, 7
    %v3321 = vsub.s32 %v3318, %v3320
    %v3322 = vrot.slane %v3314, %v3321
    %v3324 = vunpack.c.l.s4 1966171168
    %v3325 = vunpack.c.0.s8 %v3324
    %v3326 = vlaneseq
    %v3327 = vshrl.u32 %v3326, 7
    %v3328 = vsub.s32 %v3325, %v3327
    %v3329 = vrot.slane %v3315, %v3328
    %v3330 = vcombine.low %v3322, %v3329
    %v3331 = vcombine.low %v2223, %v2246
    %v3332 = vcombine.low %v2260, %v2268
    %v3333 = vcombine.low %v2270, %v2253
    %v3334 = vcombine.low %v2267, %v2269
    %v3336 = vunpack.c.l.s4 1966171168
    %v3337 = vunpack.c.0.s8 %v3336
    %v3338 = vlaneseq
    %v3339 = vshrl.u32 %v3338, 7
    %v3340 = vsub.s32 %v3337, %v3339
    %v3341 = vrot.slane %v3331, %v3340
    %v3343 = vunpack.c.l.s4 1966171168
    %v3344 = vunpack.c.0.s8 %v3343
    %v3345 = vlaneseq
    %v3346 = vshrl.u32 %v3345, 7
    %v3347 = vsub.s32 %v3344, %v3346
    %v3348 = vrot.slane %v3332, %v3347
    %v3350 = vunpack.c.l.s4 1966171168
    %v3351 = vunpack.c.0.s8 %v3350
    %v3352 = vlaneseq
    %v3353 = vshrl.u32 %v3352, 7
    %v3354 = vsub.s32 %v3351, %v3353
    %v3355 = vrot.slane %v3333, %v3354
    %v3357 = vunpack.c.l.s4 1966171168
    %v3358 = vunpack.c.0.s8 %v3357
    %v3359 = vlaneseq
    %v3360 = vshrl.u32 %v3359, 7
    %v3361 = vsub.s32 %v3358, %v3360
    %v3362 = vrot.slane %v3334, %v3361
    %v3363 = vcombine.low %v3341, %v3348
    %v3364 = vcombine.low %v3355, %v3362
    %v3366 = vunpack.c.l.s4 1966171168
    %v3367 = vunpack.c.0.s8 %v3366
    %v3368 = vlaneseq
    %v3369 = vshrl.u32 %v3368, 7
    %v3370 = vsub.s32 %v3367, %v3369
    %v3371 = vrot.slane %v3363, %v3370
    %v3373 = vunpack.c.l.s4 1966171168
    %v3374 = vunpack.c.0.s8 %v3373
    %v3375 = vlaneseq
    %v3376 = vshrl.u32 %v3375, 7
    %v3377 = vsub.s32 %v3374, %v3376
    %v3378 = vrot.slane %v3364, %v3377
    %v3379 = vcombine.low %v3371, %v3378
    %v3380 = vcombine.low %v2271, %v2285
    %v3381 = vcombine.low %v2308, %v2322
    %v3382 = vcombine.low %v2330, %v2332
    %v3383 = vcombine.low %v2315, %v2329
    %v3385 = vunpack.c.l.s4 1966171168
    %v3386 = vunpack.c.0.s8 %v3385
    %v3387 = vlaneseq
    %v3388 = vshrl.u32 %v3387, 7
    %v3389 = vsub.s32 %v3386, %v3388
    %v3390 = vrot.slane %v3380, %v3389
    %v3392 = vunpack.c.l.s4 1966171168
    %v3393 = vunpack.c.0.s8 %v3392
    %v3394 = vlaneseq
    %v3395 = vshrl.u32 %v3394, 7
    %v3396 = vsub.s32 %v3393, %v3395
    %v3397 = vrot.slane %v3381, %v3396
    %v3399 = vunpack.c.l.s4 1966171168
    %v3400 = vunpack.c.0.s8 %v3399
    %v3401 = vlaneseq
    %v3402 = vshrl.u32 %v3401, 7
    %v3403 = vsub.s32 %v3400, %v3402
    %v3404 = vrot.slane %v3382, %v3403
    %v3406 = vunpack.c.l.s4 1966171168
    %v3407 = vunpack.c.0.s8 %v3406
    %v3408 = vlaneseq
    %v3409 = vshrl.u32 %v3408, 7
    %v3410 = vsub.s32 %v3407, %v3409
    %v3411 = vrot.slane %v3383, %v3410
    %v3412 = vcombine.low %v3390, %v3397
    %v3413 = vcombine.low %v3404, %v3411
    %v3415 = vunpack.c.l.s4 1966171168
    %v3416 = vunpack.c.0.s8 %v3415
    %v3417 = vlaneseq
    %v3418 = vshrl.u32 %v3417, 7
    %v3419 = vsub.s32 %v3416, %v3418
    %v3420 = vrot.slane %v3412, %v3419
    %v3422 = vunpack.c.l.s4 1966171168
    %v3423 = vunpack.c.0.s8 %v3422
    %v3424 = vlaneseq
    %v3425 = vshrl.u32 %v3424, 7
    %v3426 = vsub.s32 %v3423, %v3425
    %v3427 = vrot.slane %v3413, %v3426
    %v3428 = vcombine.low %v3420, %v3427
    %v3429 = vcombine.low %v2331, %v2333
    %v3430 = vcombine.low %v2347, %v2370
    %v3431 = vcombine.low %v2384, %v2392
    %v3432 = vcombine.low %v2394, %v2377
    %v3434 = vunpack.c.l.s4 1966171168
    %v3435 = vunpack.c.0.s8 %v3434
    %v3436 = vlaneseq
    %v3437 = vshrl.u32 %v3436, 7
    %v3438 = vsub.s32 %v3435, %v3437
    %v3439 = vrot.slane %v3429, %v3438
    %v3441 = vunpack.c.l.s4 1966171168
    %v3442 = vunpack.c.0.s8 %v3441
    %v3443 = vlaneseq
    %v3444 = vshrl.u32 %v3443, 7
    %v3445 = vsub.s32 %v3442, %v3444
    %v3446 = vrot.slane %v3430, %v3445
    %v3448 = vunpack.c.l.s4 1966171168
    %v3449 = vunpack.c.0.s8 %v3448
    %v3450 = vlaneseq
    %v3451 = vshrl.u32 %v3450, 7
    %v3452 = vsub.s32 %v3449, %v3451
    %v3453 = vrot.slane %v3431, %v3452
    %v3455 = vunpack.c.l.s4 1966171168
    %v3456 = vunpack.c.0.s8 %v3455
    %v3457 = vlaneseq
    %v3458 = vshrl.u32 %v3457, 7
    %v3459 = vsub.s32 %v3456, %v3458
    %v3460 = vrot.slane %v3432, %v3459
    %v3461 = vcombine.low %v3439, %v3446
    %v3462 = vcombine.low %v3453, %v3460
    %v3464 = vunpack.c.l.s4 1966171168
    %v3465 = vunpack.c.0.s8 %v3464
    %v3466 = vlaneseq
    %v3467 = vshrl.u32 %v3466, 7
    %v3468 = vsub.s32 %v3465, %v3467
    %v3469 = vrot.slane %v3461, %v3468
    %v3471 = vunpack.c.l.s4 1966171168
    %v3472 = vunpack.c.0.s8 %v3471
    %v3473 = vlaneseq
    %v3474 = vshrl.u32 %v3473, 7
    %v3475 = vsub.s32 %v3472, %v3474
    %v3476 = vrot.slane %v3462, %v3475
    %v3477 = vcombine.low %v3469, %v3476
    %v3478 = vcombine.low %v2391, %v2393
    %v3479 = vcombine.low %v2395, %v2409
    %v3480 = vcombine.low %v2432, %v2446
    %v3481 = vcombine.low %v2454, %v2456
    %v3483 = vunpack.c.l.s4 1966171168
    %v3484 = vunpack.c.0.s8 %v3483
    %v3485 = vlaneseq
    %v3486 = vshrl.u32 %v3485, 7
    %v3487 = vsub.s32 %v3484, %v3486
    %v3488 = vrot.slane %v3478, %v3487
    %v3490 = vunpack.c.l.s4 1966171168
    %v3491 = vunpack.c.0.s8 %v3490
    %v3492 = vlaneseq
    %v3493 = vshrl.u32 %v3492, 7
    %v3494 = vsub.s32 %v3491, %v3493
    %v3495 = vrot.slane %v3479, %v3494
    %v3497 = vunpack.c.l.s4 1966171168
    %v3498 = vunpack.c.0.s8 %v3497
    %v3499 = vlaneseq
    %v3500 = vshrl.u32 %v3499, 7
    %v3501 = vsub.s32 %v3498, %v3500
    %v3502 = vrot.slane %v3480, %v3501
    %v3504 = vunpack.c.l.s4 1966171168
    %v3505 = vunpack.c.0.s8 %v3504
    %v3506 = vlaneseq
    %v3507 = vshrl.u32 %v3506, 7
    %v3508 = vsub.s32 %v3505, %v3507
    %v3509 = vrot.slane %v3481, %v3508
    %v3510 = vcombine.low %v3488, %v3495
    %v3511 = vcombine.low %v3502, %v3509
    %v3513 = vunpack.c.l.s4 1966171168
    %v3514 = vunpack.c.0.s8 %v3513
    %v3515 = vlaneseq
    %v3516 = vshrl.u32 %v3515, 7
    %v3517 = vsub.s32 %v3514, %v3516
    %v3518 = vrot.slane %v3510, %v3517
    %v3520 = vunpack.c.l.s4 1966171168
    %v3521 = vunpack.c.0.s8 %v3520
    %v3522 = vlaneseq
    %v3523 = vshrl.u32 %v3522, 7
    %v3524 = vsub.s32 %v3521, %v3523
    %v3525 = vrot.slane %v3511, %v3524
    %v3526 = vcombine.low %v3518, %v3525
    %v3527 = vcombine.low %v2439, %v2453
    %v3528 = vcombine.low %v2455, %v2457
    %v3529 = vcombine.low %v2471, %v2494
    %v3530 = vcombine.low %v2508, %v2516
    %v3532 = vunpack.c.l.s4 1966171168
    %v3533 = vunpack.c.0.s8 %v3532
    %v3534 = vlaneseq
    %v3535 = vshrl.u32 %v3534, 7
    %v3536 = vsub.s32 %v3533, %v3535
    %v3537 = vrot.slane %v3527, %v3536
    %v3539 = vunpack.c.l.s4 1966171168
    %v3540 = vunpack.c.0.s8 %v3539
    %v3541 = vlaneseq
    %v3542 = vshrl.u32 %v3541, 7
    %v3543 = vsub.s32 %v3540, %v3542
    %v3544 = vrot.slane %v3528, %v3543
    %v3546 = vunpack.c.l.s4 1966171168
    %v3547 = vunpack.c.0.s8 %v3546
    %v3548 = vlaneseq
    %v3549 = vshrl.u32 %v3548, 7
    %v3550 = vsub.s32 %v3547, %v3549
    %v3551 = vrot.slane %v3529, %v3550
    %v3553 = vunpack.c.l.s4 1966171168
    %v3554 = vunpack.c.0.s8 %v3553
    %v3555 = vlaneseq
    %v3556 = vshrl.u32 %v3555, 7
    %v3557 = vsub.s32 %v3554, %v3556
    %v3558 = vrot.slane %v3530, %v3557
    %v3559 = vcombine.low %v3537, %v3544
    %v3560 = vcombine.low %v3551, %v3558
    %v3562 = vunpack.c.l.s4 1966171168
    %v3563 = vunpack.c.0.s8 %v3562
    %v3564 = vlaneseq
    %v3565 = vshrl.u32 %v3564, 7
    %v3566 = vsub.s32 %v3563, %v3565
    %v3567 = vrot.slane %v3559, %v3566
    %v3569 = vunpack.c.l.s4 1966171168
    %v3570 = vunpack.c.0.s8 %v3569
    %v3571 = vlaneseq
    %v3572 = vshrl.u32 %v3571, 7
    %v3573 = vsub.s32 %v3570, %v3572
    %v3574 = vrot.slane %v3560, %v3573
    %v3575 = vcombine.low %v3567, %v3574
    %v3576 = vcombine.low %v2518, %v2501
    %v3577 = vcombine.low %v2515, %v2517
    %v3578 = vcombine.low %v2519, %v2533
    %v3579 = vcombine.low %v2556, %v2570
    %v3581 = vunpack.c.l.s4 1966171168
    %v3582 = vunpack.c.0.s8 %v3581
    %v3583 = vlaneseq
    %v3584 = vshrl.u32 %v3583, 7
    %v3585 = vsub.s32 %v3582, %v3584
    %v3586 = vrot.slane %v3576, %v3585
    %v3588 = vunpack.c.l.s4 1966171168
    %v3589 = vunpack.c.0.s8 %v3588
    %v3590 = vlaneseq
    %v3591 = vshrl.u32 %v3590, 7
    %v3592 = vsub.s32 %v3589, %v3591
    %v3593 = vrot.slane %v3577, %v3592
    %v3595 = vunpack.c.l.s4 1966171168
    %v3596 = vunpack.c.0.s8 %v3595
    %v3597 = vlaneseq
    %v3598 = vshrl.u32 %v3597, 7
    %v3599 = vsub.s32 %v3596, %v3598
    %v3600 = vrot.slane %v3578, %v3599
    %v3602 = vunpack.c.l.s4 1966171168
    %v3603 = vunpack.c.0.s8 %v3602
    %v3604 = vlaneseq
    %v3605 = vshrl.u32 %v3604, 7
    %v3606 = vsub.s32 %v3603, %v3605
    %v3607 = vrot.slane %v3579, %v3606
    %v3608 = vcombine.low %v3586, %v3593
    %v3609 = vcombine.low %v3600, %v3607
    %v3611 = vunpack.c.l.s4 1966171168
    %v3612 = vunpack.c.0.s8 %v3611
    %v3613 = vlaneseq
    %v3614 = vshrl.u32 %v3613, 7
    %v3615 = vsub.s32 %v3612, %v3614
    %v3616 = vrot.slane %v3608, %v3615
    %v3618 = vunpack.c.l.s4 1966171168
    %v3619 = vunpack.c.0.s8 %v3618
    %v3620 = vlaneseq
    %v3621 = vshrl.u32 %v3620, 7
    %v3622 = vsub.s32 %v3619, %v3621
    %v3623 = vrot.slane %v3609, %v3622
    %v3624 = vcombine.low %v3616, %v3623
    %v3625 = vcombine.low %v2578, %v2580
    %v3626 = vcombine.low %v2563, %v2577
    %v3627 = vcombine.low %v2579, %v2581
    %v3628 = vcombine.low %v2595, %v2618
    %v3630 = vunpack.c.l.s4 1966171168
    %v3631 = vunpack.c.0.s8 %v3630
    %v3632 = vlaneseq
    %v3633 = vshrl.u32 %v3632, 7
    %v3634 = vsub.s32 %v3631, %v3633
    %v3635 = vrot.slane %v3625, %v3634
    %v3637 = vunpack.c.l.s4 1966171168
    %v3638 = vunpack.c.0.s8 %v3637
    %v3639 = vlaneseq
    %v3640 = vshrl.u32 %v3639, 7
    %v3641 = vsub.s32 %v3638, %v3640
    %v3642 = vrot.slane %v3626, %v3641
    %v3644 = vunpack.c.l.s4 1966171168
    %v3645 = vunpack.c.0.s8 %v3644
    %v3646 = vlaneseq
    %v3647 = vshrl.u32 %v3646, 7
    %v3648 = vsub.s32 %v3645, %v3647
    %v3649 = vrot.slane %v3627, %v3648
    %v3651 = vunpack.c.l.s4 1966171168
    %v3652 = vunpack.c.0.s8 %v3651
    %v3653 = vlaneseq
    %v3654 = vshrl.u32 %v3653, 7
    %v3655 = vsub.s32 %v3652, %v3654
    %v3656 = vrot.slane %v3628, %v3655
    %v3657 = vcombine.low %v3635, %v3642
    %v3658 = vcombine.low %v3649, %v3656
    %v3660 = vunpack.c.l.s4 1966171168
    %v3661 = vunpack.c.0.s8 %v3660
    %v3662 = vlaneseq
    %v3663 = vshrl.u32 %v3662, 7
    %v3664 = vsub.s32 %v3661, %v3663
    %v3665 = vrot.slane %v3657, %v3664
    %v3667 = vunpack.c.l.s4 1966171168
    %v3668 = vunpack.c.0.s8 %v3667
    %v3669 = vlaneseq
    %v3670 = vshrl.u32 %v3669, 7
    %v3671 = vsub.s32 %v3668, %v3670
    %v3672 = vrot.slane %v3658, %v3671
    %v3673 = vcombine.low %v3665, %v3672
    %v3674 = vcombine.low %v2632, %v2640
    %v3675 = vcombine.low %v2642, %v2625
    %v3676 = vcombine.low %v2639, %v2641
    %v3677 = vcombine.low %v2643, %v2657
    %v3679 = vunpack.c.l.s4 1966171168
    %v3680 = vunpack.c.0.s8 %v3679
    %v3681 = vlaneseq
    %v3682 = vshrl.u32 %v3681, 7
    %v3683 = vsub.s32 %v3680, %v3682
    %v3684 = vrot.slane %v3674, %v3683
    %v3686 = vunpack.c.l.s4 1966171168
    %v3687 = vunpack.c.0.s8 %v3686
    %v3688 = vlaneseq
    %v3689 = vshrl.u32 %v3688, 7
    %v3690 = vsub.s32 %v3687, %v3689
    %v3691 = vrot.slane %v3675, %v3690
    %v3693 = vunpack.c.l.s4 1966171168
    %v3694 = vunpack.c.0.s8 %v3693
    %v3695 = vlaneseq
    %v3696 = vshrl.u32 %v3695, 7
    %v3697 = vsub.s32 %v3694, %v3696
    %v3698 = vrot.slane %v3676, %v3697
    %v3700 = vunpack.c.l.s4 1966171168
    %v3701 = vunpack.c.0.s8 %v3700
    %v3702 = vlaneseq
    %v3703 = vshrl.u32 %v3702, 7
    %v3704 = vsub.s32 %v3701, %v3703
    %v3705 = vrot.slane %v3677, %v3704
    %v3706 = vcombine.low %v3684, %v3691
    %v3707 = vcombine.low %v3698, %v3705
    %v3709 = vunpack.c.l.s4 1966171168
    %v3710 = vunpack.c.0.s8 %v3709
    %v3711 = vlaneseq
    %v3712 = vshrl.u32 %v3711, 7
    %v3713 = vsub.s32 %v3710, %v3712
    %v3714 = vrot.slane %v3706, %v3713
    %v3716 = vunpack.c.l.s4 1966171168
    %v3717 = vunpack.c.0.s8 %v3716
    %v3718 = vlaneseq
    %v3719 = vshrl.u32 %v3718, 7
    %v3720 = vsub.s32 %v3717, %v3719
    %v3721 = vrot.slane %v3707, %v3720
    %v3722 = vcombine.low %v3714, %v3721
    %3732 = vmatprep.subr.mxu0 0.0
    %3733 = vmatpush1.msra.mxu0 %v2112
    %3734 = vmatprep.subr.mxu0 0.0
    %3735 = vmatpush1.msra.mxu0 %v2111
    %3736 = vmatprep.subr.mxu0 0.0
    %3737 = vmatpush1.msra.mxu0 %v2110
    %3738 = vmatprep.subr.mxu0 0.0
    %3739 = vmatpush1.msra.mxu0 %v2109
    %3740 = vmatprep.subr.mxu0 0.0
    %3741 = vmatpush1.msra.mxu0 %v2108
    %3742 = vmatprep.subr.mxu0 0.0
    %3743 = vmatpush1.msra.mxu0 %v2107
    %3744 = vmatprep.subr.mxu0 0.0
    %3745 = vmatpush1.msra.mxu0 %v2106
    %3746 = vmatprep.subr.mxu0 0.0
    %3747 = vmatpush1.msra.mxu0 %v2105
    %3748 = vmatprep.subr.mxu0 0.0
    %3749 = vmatpush1.msra.mxu0 %v2104
    %3750 = vmatprep.subr.mxu0 0.0
    %3751 = vmatpush1.msra.mxu0 %v2103
    %3752 = vmatprep.subr.mxu0 0.0
    %3753 = vmatpush1.msra.mxu0 %v2102
    %3754 = vmatprep.subr.mxu0 0.0
    %3755 = vmatpush1.msra.mxu0 %v2101
    %3756 = vmatprep.subr.mxu0 0.0
    %3757 = vmatpush1.msra.mxu0 %v2100
    %3758 = vmatprep.subr.mxu0 0.0
    %3759 = vmatpush1.msra.mxu0 %v2099
    %3760 = vmatprep.subr.mxu0 0.0
    %3761 = vmatpush1.msra.mxu0 %v2098
    %3762 = vmatprep.subr.mxu0 0.0
    %3763 = vmatpush1.msra.mxu0 %v2097
    %3764 = vmatprep.subr.mxu0 0.0
    %3765 = vmatpush2.msra.mxu0 0.0
    %3766 = vmatprep.subr.mxu0 0.0
    %3767 = vmatpush2.msra.mxu0 0.0
    %3768 = vmatprep.subr.mxu0 0.0
    %3769 = vmatpush2.msra.mxu0 0.0
    %3770 = vmatprep.subr.mxu0 0.0
    %3771 = vmatpush2.msra.mxu0 0.0
    %3772 = vmatprep.subr.mxu0 0.0
    %3773 = vmatpush2.msra.mxu0 0.0
    %3774 = vmatprep.subr.mxu0 0.0
    %3775 = vmatpush2.msra.mxu0 0.0
    %3776 = vmatprep.subr.mxu0 0.0
    %3777 = vmatpush2.msra.mxu0 0.0
    %3778 = vmatprep.subr.mxu0 0.0
    %3779 = vmatpush2.msra.mxu0 0.0
    %3780 = vmatprep.subr.mxu0 0.0
    %3781 = vmatpush2.msra.mxu0 0.0
    %3782 = vmatprep.subr.mxu0 0.0
    %3783 = vmatpush2.msra.mxu0 0.0
    %3784 = vmatprep.subr.mxu0 0.0
    %3785 = vmatpush2.msra.mxu0 0.0
    %3786 = vmatprep.subr.mxu0 0.0
    %3787 = vmatpush2.msra.mxu0 0.0
    %3788 = vmatprep.subr.mxu0 0.0
    %3789 = vmatpush2.msra.mxu0 0.0
    %3790 = vmatprep.subr.mxu0 0.0
    %3791 = vmatpush2.msra.mxu0 0.0
    %3792 = vmatprep.subr.mxu0 0.0
    %3793 = vmatpush2.msra.mxu0 0.0
    %3794 = vmatprep.subr.mxu0 0.0
    %3795 = vmatpush2.msra.mxu0 0.0
    %3796 = vmatprep.mubr.f32.mxu0 0.0
    %3797 = vmatmul.mubr.f32.gmra.mxu0 %v3330
    %v3798 = vpop.f32.mrf.mxu0
    %v3799 = vadd.f32 %v3239, %v3798
    %v3800 = vpop.f32.mrf.mxu0
    %3801 = vmatprep.mubr.f32.mxu0 0.0
    %3802 = vmatmul.mubr.f32.gmra.mxu0 %v3379
    %v3803 = vpop.f32.mrf.mxu0
    %v3804 = vadd.f32 %v3244, %v3803
    %v3805 = vpop.f32.mrf.mxu0
    %3806 = vmatprep.mubr.f32.mxu0 0.0
    %3807 = vmatmul.mubr.f32.gmra.mxu0 %v3428
    %v3808 = vpop.f32.mrf.mxu0
    %v3809 = vadd.f32 %v3249, %v3808
    %v3810 = vpop.f32.mrf.mxu0
    %3811 = vmatprep.mubr.f32.mxu0 0.0
    %3812 = vmatmul.mubr.f32.gmra.mxu0 %v3477
    %v3813 = vpop.f32.mrf.mxu0
    %v3814 = vadd.f32 %v3254, %v3813
    %v3815 = vpop.f32.mrf.mxu0
    %3816 = vmatprep.mubr.f32.mxu0 0.0
    %3817 = vmatmul.mubr.f32.gmra.mxu0 %v3526
    %v3818 = vpop.f32.mrf.mxu0
    %v3819 = vadd.f32 %v3259, %v3818
    %v3820 = vpop.f32.mrf.mxu0
    %3821 = vmatprep.mubr.f32.mxu0 0.0
    %3822 = vmatmul.mubr.f32.gmra.mxu0 %v3575
    %v3823 = vpop.f32.mrf.mxu0
    %v3824 = vadd.f32 %v3264, %v3823
    %v3825 = vpop.f32.mrf.mxu0
    %3826 = vmatprep.mubr.f32.mxu0 0.0
    %3827 = vmatmul.mubr.f32.gmra.mxu0 %v3624
    %v3828 = vpop.f32.mrf.mxu0
    %v3829 = vadd.f32 %v3269, %v3828
    %v3830 = vpop.f32.mrf.mxu0
    %3831 = vmatprep.mubr.f32.mxu0 0.0
    %3832 = vmatmul.mubr.f32.gmra.mxu0 %v3673
    %v3833 = vpop.f32.mrf.mxu0
    %v3834 = vadd.f32 %v3274, %v3833
    %v3835 = vpop.f32.mrf.mxu0
    %3836 = vmatprep.mubr.f32.mxu0 0.0
    %3837 = vmatmul.mubr.f32.gmra.mxu0 %v3722
    %v3838 = vpop.f32.mrf.mxu0
    %v3839 = vadd.f32 %v3279, %v3838
    %v3840 = vpop.f32.mrf.mxu0
    %3841 = vdwg.mxu0
    %v3842 = vcombine.high %v2223, %v2223
    %v3843 = vcombine.high %v2285, %v2285
    %v3844 = vcombine.high %v2347, %v2347
    %v3845 = vcombine.high %v2409, %v2409
    %v3846 = vcombine.high %v2471, %v2471
    %v3847 = vcombine.high %v2533, %v2533
    %v3848 = vcombine.high %v2595, %v2595
    %v3849 = vcombine.high %v2657, %v2657
    %v3850 = vcombine.low %v2223, %v2665
    %v3852 = vunpack.c.l.s4 1966171168
    %v3853 = vunpack.c.0.s8 %v3852
    %v3854 = vlaneseq
    %v3855 = vshrl.u32 %v3854, 7
    %v3856 = vsub.s32 %v3853, %v3855
    %v3857 = vrot.slane %v3850, %v3856
    %v3858 = vcombine.low %v3299, %v3306
    %v3859 = vcombine.low %v3313, %v3857
    %v3861 = vunpack.c.l.s4 1966171168
    %v3862 = vunpack.c.0.s8 %v3861
    %v3863 = vlaneseq
    %v3864 = vshrl.u32 %v3863, 7
    %v3865 = vsub.s32 %v3862, %v3864
    %v3866 = vrot.slane %v3858, %v3865
    %v3868 = vunpack.c.l.s4 1966171168
    %v3869 = vunpack.c.0.s8 %v3868
    %v3870 = vlaneseq
    %v3871 = vshrl.u32 %v3870, 7
    %v3872 = vsub.s32 %v3869, %v3871
    %v3873 = vrot.slane %v3859, %v3872
    %v3874 = vcombine.low %v3866, %v3873
    %v3875 = vcombine.low %v3842, %v2268
    %v3877 = vunpack.c.l.s4 1966171168
    %v3878 = vunpack.c.0.s8 %v3877
    %v3879 = vlaneseq
    %v3880 = vshrl.u32 %v3879, 7
    %v3881 = vsub.s32 %v3878, %v3880
    %v3882 = vrot.slane %v3875, %v3881
    %v3883 = vcombine.low %v3882, %v3355
    %v3884 = vcombine.low %v3362, %v3390
    %v3886 = vunpack.c.l.s4 1966171168
    %v3887 = vunpack.c.0.s8 %v3886
    %v3888 = vlaneseq
    %v3889 = vshrl.u32 %v3888, 7
    %v3890 = vsub.s32 %v3887, %v3889
    %v3891 = vrot.slane %v3883, %v3890
    %v3893 = vunpack.c.l.s4 1966171168
    %v3894 = vunpack.c.0.s8 %v3893
    %v3895 = vlaneseq
    %v3896 = vshrl.u32 %v3895, 7
    %v3897 = vsub.s32 %v3894, %v3896
    %v3898 = vrot.slane %v3884, %v3897
    %v3899 = vcombine.low %v3891, %v3898
    %v3900 = vcombine.low %v2673, %v3843
    %v3902 = vunpack.c.l.s4 1966171168
    %v3903 = vunpack.c.0.s8 %v3902
    %v3904 = vlaneseq
    %v3905 = vshrl.u32 %v3904, 7
    %v3906 = vsub.s32 %v3903, %v3905
    %v3907 = vrot.slane %v3900, %v3906
    %v3908 = vcombine.low %v3907, %v3404
    %v3909 = vcombine.low %v3411, %v3439
    %v3911 = vunpack.c.l.s4 1966171168
    %v3912 = vunpack.c.0.s8 %v3911
    %v3913 = vlaneseq
    %v3914 = vshrl.u32 %v3913, 7
    %v3915 = vsub.s32 %v3912, %v3914
    %v3916 = vrot.slane %v3908, %v3915
    %v3918 = vunpack.c.l.s4 1966171168
    %v3919 = vunpack.c.0.s8 %v3918
    %v3920 = vlaneseq
    %v3921 = vshrl.u32 %v3920, 7
    %v3922 = vsub.s32 %v3919, %v3921
    %v3923 = vrot.slane %v3909, %v3922
    %v3924 = vcombine.low %v3916, %v3923
    %v3925 = vcombine.low %v2347, %v2681
    %v3926 = vcombine.low %v3844, %v2392
    %v3928 = vunpack.c.l.s4 1966171168
    %v3929 = vunpack.c.0.s8 %v3928
    %v3930 = vlaneseq
    %v3931 = vshrl.u32 %v3930, 7
    %v3932 = vsub.s32 %v3929, %v3931
    %v3933 = vrot.slane %v3925, %v3932
    %v3935 = vunpack.c.l.s4 1966171168
    %v3936 = vunpack.c.0.s8 %v3935
    %v3937 = vlaneseq
    %v3938 = vshrl.u32 %v3937, 7
    %v3939 = vsub.s32 %v3936, %v3938
    %v3940 = vrot.slane %v3926, %v3939
    %v3941 = vcombine.low %v3933, %v3940
    %v3942 = vcombine.low %v3460, %v3488
    %v3944 = vunpack.c.l.s4 1966171168
    %v3945 = vunpack.c.0.s8 %v3944
    %v3946 = vlaneseq
    %v3947 = vshrl.u32 %v3946, 7
    %v3948 = vsub.s32 %v3945, %v3947
    %v3949 = vrot.slane %v3941, %v3948
    %v3951 = vunpack.c.l.s4 1966171168
    %v3952 = vunpack.c.0.s8 %v3951
    %v3953 = vlaneseq
    %v3954 = vshrl.u32 %v3953, 7
    %v3955 = vsub.s32 %v3952, %v3954
    %v3956 = vrot.slane %v3942, %v3955
    %v3957 = vcombine.low %v3949, %v3956
    %v3958 = vcombine.low %v2689, %v3845
    %v3960 = vunpack.c.l.s4 1966171168
    %v3961 = vunpack.c.0.s8 %v3960
    %v3962 = vlaneseq
    %v3963 = vshrl.u32 %v3962, 7
    %v3964 = vsub.s32 %v3961, %v3963
    %v3965 = vrot.slane %v3958, %v3964
    %v3966 = vcombine.low %v3495, %v3965
    %v3967 = vcombine.low %v3509, %v3537
    %v3969 = vunpack.c.l.s4 1966171168
    %v3970 = vunpack.c.0.s8 %v3969
    %v3971 = vlaneseq
    %v3972 = vshrl.u32 %v3971, 7
    %v3973 = vsub.s32 %v3970, %v3972
    %v3974 = vrot.slane %v3966, %v3973
    %v3976 = vunpack.c.l.s4 1966171168
    %v3977 = vunpack.c.0.s8 %v3976
    %v3978 = vlaneseq
    %v3979 = vshrl.u32 %v3978, 7
    %v3980 = vsub.s32 %v3977, %v3979
    %v3981 = vrot.slane %v3967, %v3980
    %v3982 = vcombine.low %v3974, %v3981
    %v3983 = vcombine.low %v2471, %v2697
    %v3984 = vcombine.low %v3846, %v2516
    %v3986 = vunpack.c.l.s4 1966171168
    %v3987 = vunpack.c.0.s8 %v3986
    %v3988 = vlaneseq
    %v3989 = vshrl.u32 %v3988, 7
    %v3990 = vsub.s32 %v3987, %v3989
    %v3991 = vrot.slane %v3983, %v3990
    %v3993 = vunpack.c.l.s4 1966171168
    %v3994 = vunpack.c.0.s8 %v3993
    %v3995 = vlaneseq
    %v3996 = vshrl.u32 %v3995, 7
    %v3997 = vsub.s32 %v3994, %v3996
    %v3998 = vrot.slane %v3984, %v3997
    %v3999 = vcombine.low %v3544, %v3991
    %v4000 = vcombine.low %v3998, %v3586
    %v4002 = vunpack.c.l.s4 1966171168
    %v4003 = vunpack.c.0.s8 %v4002
    %v4004 = vlaneseq
    %v4005 = vshrl.u32 %v4004, 7
    %v4006 = vsub.s32 %v4003, %v4005
    %v4007 = vrot.slane %v3999, %v4006
    %v4009 = vunpack.c.l.s4 1966171168
    %v4010 = vunpack.c.0.s8 %v4009
    %v4011 = vlaneseq
    %v4012 = vshrl.u32 %v4011, 7
    %v4013 = vsub.s32 %v4010, %v4012
    %v4014 = vrot.slane %v4000, %v4013
    %v4015 = vcombine.low %v4007, %v4014
    %v4016 = vcombine.low %v2705, %v3847
    %v4018 = vunpack.c.l.s4 1966171168
    %v4019 = vunpack.c.0.s8 %v4018
    %v4020 = vlaneseq
    %v4021 = vshrl.u32 %v4020, 7
    %v4022 = vsub.s32 %v4019, %v4021
    %v4023 = vrot.slane %v4016, %v4022
    %v4024 = vcombine.low %v3593, %v3600
    %v4025 = vcombine.low %v4023, %v3635
    %v4027 = vunpack.c.l.s4 1966171168
    %v4028 = vunpack.c.0.s8 %v4027
    %v4029 = vlaneseq
    %v4030 = vshrl.u32 %v4029, 7
    %v4031 = vsub.s32 %v4028, %v4030
    %v4032 = vrot.slane %v4024, %v4031
    %v4034 = vunpack.c.l.s4 1966171168
    %v4035 = vunpack.c.0.s8 %v4034
    %v4036 = vlaneseq
    %v4037 = vshrl.u32 %v4036, 7
    %v4038 = vsub.s32 %v4035, %v4037
    %v4039 = vrot.slane %v4025, %v4038
    %v4040 = vcombine.low %v4032, %v4039
    %v4041 = vcombine.low %v2595, %v2713
    %v4042 = vcombine.low %v3848, %v2640
    %v4044 = vunpack.c.l.s4 1966171168
    %v4045 = vunpack.c.0.s8 %v4044
    %v4046 = vlaneseq
    %v4047 = vshrl.u32 %v4046, 7
    %v4048 = vsub.s32 %v4045, %v4047
    %v4049 = vrot.slane %v4041, %v4048
    %v4051 = vunpack.c.l.s4 1966171168
    %v4052 = vunpack.c.0.s8 %v4051
    %v4053 = vlaneseq
    %v4054 = vshrl.u32 %v4053, 7
    %v4055 = vsub.s32 %v4052, %v4054
    %v4056 = vrot.slane %v4042, %v4055
    %v4057 = vcombine.low %v3642, %v3649
    %v4058 = vcombine.low %v4049, %v4056
    %v4060 = vunpack.c.l.s4 1966171168
    %v4061 = vunpack.c.0.s8 %v4060
    %v4062 = vlaneseq
    %v4063 = vshrl.u32 %v4062, 7
    %v4064 = vsub.s32 %v4061, %v4063
    %v4065 = vrot.slane %v4057, %v4064
    %v4067 = vunpack.c.l.s4 1966171168
    %v4068 = vunpack.c.0.s8 %v4067
    %v4069 = vlaneseq
    %v4070 = vshrl.u32 %v4069, 7
    %v4071 = vsub.s32 %v4068, %v4070
    %v4072 = vrot.slane %v4058, %v4071
    %v4073 = vcombine.low %v4065, %v4072
    %v4074 = vcombine.low %v2721, %v3849
    %v4076 = vunpack.c.l.s4 1966171168
    %v4077 = vunpack.c.0.s8 %v4076
    %v4078 = vlaneseq
    %v4079 = vshrl.u32 %v4078, 7
    %v4080 = vsub.s32 %v4077, %v4079
    %v4081 = vrot.slane %v4074, %v4080
    %v4082 = vcombine.low %v3691, %v3698
    %v4083 = vcombine.low %v3705, %v4081
    %v4085 = vunpack.c.l.s4 1966171168
    %v4086 = vunpack.c.0.s8 %v4085
    %v4087 = vlaneseq
    %v4088 = vshrl.u32 %v4087, 7
    %v4089 = vsub.s32 %v4086, %v4088
    %v4090 = vrot.slane %v4082, %v4089
    %v4092 = vunpack.c.l.s4 1966171168
    %v4093 = vunpack.c.0.s8 %v4092
    %v4094 = vlaneseq
    %v4095 = vshrl.u32 %v4094, 7
    %v4096 = vsub.s32 %v4093, %v4095
    %v4097 = vrot.slane %v4083, %v4096
    %v4098 = vcombine.low %v4090, %v4097
    %4108 = vmatprep.subr.mxu0 0.0
    %4109 = vmatpush1.msra.mxu0 %v2144
    %4110 = vmatprep.subr.mxu0 0.0
    %4111 = vmatpush1.msra.mxu0 %v2143
    %4112 = vmatprep.subr.mxu0 0.0
    %4113 = vmatpush1.msra.mxu0 %v2142
    %4114 = vmatprep.subr.mxu0 0.0
    %4115 = vmatpush1.msra.mxu0 %v2141
    %4116 = vmatprep.subr.mxu0 0.0
    %4117 = vmatpush1.msra.mxu0 %v2140
    %4118 = vmatprep.subr.mxu0 0.0
    %4119 = vmatpush1.msra.mxu0 %v2139
    %4120 = vmatprep.subr.mxu0 0.0
    %4121 = vmatpush1.msra.mxu0 %v2138
    %4122 = vmatprep.subr.mxu0 0.0
    %4123 = vmatpush1.msra.mxu0 %v2137
    %4124 = vmatprep.subr.mxu0 0.0
    %4125 = vmatpush1.msra.mxu0 %v2136
    %4126 = vmatprep.subr.mxu0 0.0
    %4127 = vmatpush1.msra.mxu0 %v2135
    %4128 = vmatprep.subr.mxu0 0.0
    %4129 = vmatpush1.msra.mxu0 %v2134
    %4130 = vmatprep.subr.mxu0 0.0
    %4131 = vmatpush1.msra.mxu0 %v2133
    %4132 = vmatprep.subr.mxu0 0.0
    %4133 = vmatpush1.msra.mxu0 %v2132
    %4134 = vmatprep.subr.mxu0 0.0
    %4135 = vmatpush1.msra.mxu0 %v2131
    %4136 = vmatprep.subr.mxu0 0.0
    %4137 = vmatpush1.msra.mxu0 %v2130
    %4138 = vmatprep.subr.mxu0 0.0
    %4139 = vmatpush1.msra.mxu0 %v2129
    %4140 = vmatprep.subr.mxu0 0.0
    %4141 = vmatpush2.msra.mxu0 0.0
    %4142 = vmatprep.subr.mxu0 0.0
    %4143 = vmatpush2.msra.mxu0 0.0
    %4144 = vmatprep.subr.mxu0 0.0
    %4145 = vmatpush2.msra.mxu0 0.0
    %4146 = vmatprep.subr.mxu0 0.0
    %4147 = vmatpush2.msra.mxu0 0.0
    %4148 = vmatprep.subr.mxu0 0.0
    %4149 = vmatpush2.msra.mxu0 0.0
    %4150 = vmatprep.subr.mxu0 0.0
    %4151 = vmatpush2.msra.mxu0 0.0
    %4152 = vmatprep.subr.mxu0 0.0
    %4153 = vmatpush2.msra.mxu0 0.0
    %4154 = vmatprep.subr.mxu0 0.0
    %4155 = vmatpush2.msra.mxu0 0.0
    %4156 = vmatprep.subr.mxu0 0.0
    %4157 = vmatpush2.msra.mxu0 0.0
    %4158 = vmatprep.subr.mxu0 0.0
    %4159 = vmatpush2.msra.mxu0 0.0
    %4160 = vmatprep.subr.mxu0 0.0
    %4161 = vmatpush2.msra.mxu0 0.0
    %4162 = vmatprep.subr.mxu0 0.0
    %4163 = vmatpush2.msra.mxu0 0.0
    %4164 = vmatprep.subr.mxu0 0.0
    %4165 = vmatpush2.msra.mxu0 0.0
    %4166 = vmatprep.subr.mxu0 0.0
    %4167 = vmatpush2.msra.mxu0 0.0
    %4168 = vmatprep.subr.mxu0 0.0
    %4169 = vmatpush2.msra.mxu0 0.0
    %4170 = vmatprep.subr.mxu0 0.0
    %4171 = vmatpush2.msra.mxu0 0.0
    %4172 = vmatprep.mubr.f32.mxu0 0.0
    %4173 = vmatmul.mubr.f32.gmra.mxu0 %v3874
    %v4174 = vpop.f32.mrf.mxu0
    %v4175 = vadd.f32 0.0, %v4174
    %v4176 = vpop.f32.mrf.mxu0
    %4177 = vmatprep.mubr.f32.mxu0 0.0
    %4178 = vmatmul.mubr.f32.gmra.mxu0 %v3899
    %v4179 = vpop.f32.mrf.mxu0
    %v4180 = vadd.f32 0.0, %v4179
    %v4181 = vpop.f32.mrf.mxu0
    %4182 = vmatprep.mubr.f32.mxu0 0.0
    %4183 = vmatmul.mubr.f32.gmra.mxu0 %v3924
    %v4184 = vpop.f32.mrf.mxu0
    %v4185 = vadd.f32 0.0, %v4184
    %v4186 = vpop.f32.mrf.mxu0
    %4187 = vmatprep.mubr.f32.mxu0 0.0
    %4188 = vmatmul.mubr.f32.gmra.mxu0 %v3957
    %v4189 = vpop.f32.mrf.mxu0
    %v4190 = vadd.f32 0.0, %v4189
    %v4191 = vpop.f32.mrf.mxu0
    %4192 = vmatprep.mubr.f32.mxu0 0.0
    %4193 = vmatmul.mubr.f32.gmra.mxu0 %v3982
    %v4194 = vpop.f32.mrf.mxu0
    %v4195 = vadd.f32 0.0, %v4194
    %v4196 = vpop.f32.mrf.mxu0
    %4197 = vmatprep.mubr.f32.mxu0 0.0
    %4198 = vmatmul.mubr.f32.gmra.mxu0 %v4015
    %v4199 = vpop.f32.mrf.mxu0
    %v4200 = vadd.f32 0.0, %v4199
    %v4201 = vpop.f32.mrf.mxu0
    %4202 = vmatprep.mubr.f32.mxu0 0.0
    %4203 = vmatmul.mubr.f32.gmra.mxu0 %v4040
    %v4204 = vpop.f32.mrf.mxu0
    %v4205 = vadd.f32 0.0, %v4204
    %v4206 = vpop.f32.mrf.mxu0
    %4207 = vmatprep.mubr.f32.mxu0 0.0
    %4208 = vmatmul.mubr.f32.gmra.mxu0 %v4073
    %v4209 = vpop.f32.mrf.mxu0
    %v4210 = vadd.f32 0.0, %v4209
    %v4211 = vpop.f32.mrf.mxu0
    %4212 = vmatprep.mubr.f32.mxu0 0.0
    %4213 = vmatmul.mubr.f32.gmra.mxu0 %v4098
    %v4214 = vpop.f32.mrf.mxu0
    %v4215 = vadd.f32 0.0, %v4214
    %v4216 = vpop.f32.mrf.mxu0
    %4217 = vdwg.mxu0
    %v4218 = vadd.f32 %v3799, %v4175
    %v4219 = vadd.f32 %v3804, %v4180
    %v4220 = vadd.f32 %v3809, %v4185
    %v4221 = vadd.f32 %v3814, %v4190
    %v4222 = vadd.f32 %v3819, %v4195
    %v4223 = vadd.f32 %v3824, %v4200
    %v4224 = vadd.f32 %v3829, %v4205
    %v4225 = vadd.f32 %v3834, %v4210
    %v4226 = vadd.f32 %v3839, %v4215
    %v4227 = vcombine.high %v2665, %v2665
    %v4228 = vcombine.high %v2673, %v2673
    %v4229 = vcombine.high %v2681, %v2681
    %v4230 = vcombine.high %v2689, %v2689
    %v4231 = vcombine.high %v2697, %v2697
    %v4232 = vcombine.high %v2705, %v2705
    %v4233 = vcombine.high %v2713, %v2713
    %v4234 = vcombine.high %v2721, %v2721
    %v4235 = vcombine.low %v2665, %v3842
    %v4237 = vunpack.c.l.s4 1966171168
    %v4238 = vunpack.c.0.s8 %v4237
    %v4239 = vlaneseq
    %v4240 = vshrl.u32 %v4239, 7
    %v4241 = vsub.s32 %v4238, %v4240
    %v4242 = vrot.slane %v4235, %v4241
    %v4243 = vcombine.low %v2739, %v2746
    %v4244 = vcombine.low %v2753, %v4242
    %v4246 = vunpack.c.l.s4 1966171168
    %v4247 = vunpack.c.0.s8 %v4246
    %v4248 = vlaneseq
    %v4249 = vshrl.u32 %v4248, 7
    %v4250 = vsub.s32 %v4247, %v4249
    %v4251 = vrot.slane %v4243, %v4250
    %v4253 = vunpack.c.l.s4 1966171168
    %v4254 = vunpack.c.0.s8 %v4253
    %v4255 = vlaneseq
    %v4256 = vshrl.u32 %v4255, 7
    %v4257 = vsub.s32 %v4254, %v4256
    %v4258 = vrot.slane %v4244, %v4257
    %v4259 = vcombine.low %v4251, %v4258
    %v4260 = vcombine.low %v4227, %v2270
    %v4262 = vunpack.c.l.s4 1966171168
    %v4263 = vunpack.c.0.s8 %v4262
    %v4264 = vlaneseq
    %v4265 = vshrl.u32 %v4264, 7
    %v4266 = vsub.s32 %v4263, %v4265
    %v4267 = vrot.slane %v4260, %v4266
    %v4268 = vcombine.low %v4267, %v2795
    %v4269 = vcombine.low %v2802, %v2830
    %v4271 = vunpack.c.l.s4 1966171168
    %v4272 = vunpack.c.0.s8 %v4271
    %v4273 = vlaneseq
    %v4274 = vshrl.u32 %v4273, 7
    %v4275 = vsub.s32 %v4272, %v4274
    %v4276 = vrot.slane %v4268, %v4275
    %v4278 = vunpack.c.l.s4 1966171168
    %v4279 = vunpack.c.0.s8 %v4278
    %v4280 = vlaneseq
    %v4281 = vshrl.u32 %v4280, 7
    %v4282 = vsub.s32 %v4279, %v4281
    %v4283 = vrot.slane %v4269, %v4282
    %v4284 = vcombine.low %v4276, %v4283
    %v4285 = vcombine.low %v3843, %v4228
    %v4287 = vunpack.c.l.s4 1966171168
    %v4288 = vunpack.c.0.s8 %v4287
    %v4289 = vlaneseq
    %v4290 = vshrl.u32 %v4289, 7
    %v4291 = vsub.s32 %v4288, %v4290
    %v4292 = vrot.slane %v4285, %v4291
    %v4293 = vcombine.low %v4292, %v2844
    %v4294 = vcombine.low %v2851, %v2879
    %v4296 = vunpack.c.l.s4 1966171168
    %v4297 = vunpack.c.0.s8 %v4296
    %v4298 = vlaneseq
    %v4299 = vshrl.u32 %v4298, 7
    %v4300 = vsub.s32 %v4297, %v4299
    %v4301 = vrot.slane %v4293, %v4300
    %v4303 = vunpack.c.l.s4 1966171168
    %v4304 = vunpack.c.0.s8 %v4303
    %v4305 = vlaneseq
    %v4306 = vshrl.u32 %v4305, 7
    %v4307 = vsub.s32 %v4304, %v4306
    %v4308 = vrot.slane %v4294, %v4307
    %v4309 = vcombine.low %v4301, %v4308
    %v4310 = vcombine.low %v2681, %v3844
    %v4311 = vcombine.low %v4229, %v2394
    %v4313 = vunpack.c.l.s4 1966171168
    %v4314 = vunpack.c.0.s8 %v4313
    %v4315 = vlaneseq
    %v4316 = vshrl.u32 %v4315, 7
    %v4317 = vsub.s32 %v4314, %v4316
    %v4318 = vrot.slane %v4310, %v4317
    %v4320 = vunpack.c.l.s4 1966171168
    %v4321 = vunpack.c.0.s8 %v4320
    %v4322 = vlaneseq
    %v4323 = vshrl.u32 %v4322, 7
    %v4324 = vsub.s32 %v4321, %v4323
    %v4325 = vrot.slane %v4311, %v4324
    %v4326 = vcombine.low %v4318, %v4325
    %v4327 = vcombine.low %v2900, %v2928
    %v4329 = vunpack.c.l.s4 1966171168
    %v4330 = vunpack.c.0.s8 %v4329
    %v4331 = vlaneseq
    %v4332 = vshrl.u32 %v4331, 7
    %v4333 = vsub.s32 %v4330, %v4332
    %v4334 = vrot.slane %v4326, %v4333
    %v4336 = vunpack.c.l.s4 1966171168
    %v4337 = vunpack.c.0.s8 %v4336
    %v4338 = vlaneseq
    %v4339 = vshrl.u32 %v4338, 7
    %v4340 = vsub.s32 %v4337, %v4339
    %v4341 = vrot.slane %v4327, %v4340
    %v4342 = vcombine.low %v4334, %v4341
    %v4343 = vcombine.low %v3845, %v4230
    %v4345 = vunpack.c.l.s4 1966171168
    %v4346 = vunpack.c.0.s8 %v4345
    %v4347 = vlaneseq
    %v4348 = vshrl.u32 %v4347, 7
    %v4349 = vsub.s32 %v4346, %v4348
    %v4350 = vrot.slane %v4343, %v4349
    %v4351 = vcombine.low %v2935, %v4350
    %v4352 = vcombine.low %v2949, %v2977
    %v4354 = vunpack.c.l.s4 1966171168
    %v4355 = vunpack.c.0.s8 %v4354
    %v4356 = vlaneseq
    %v4357 = vshrl.u32 %v4356, 7
    %v4358 = vsub.s32 %v4355, %v4357
    %v4359 = vrot.slane %v4351, %v4358
    %v4361 = vunpack.c.l.s4 1966171168
    %v4362 = vunpack.c.0.s8 %v4361
    %v4363 = vlaneseq
    %v4364 = vshrl.u32 %v4363, 7
    %v4365 = vsub.s32 %v4362, %v4364
    %v4366 = vrot.slane %v4352, %v4365
    %v4367 = vcombine.low %v4359, %v4366
    %v4368 = vcombine.low %v2697, %v3846
    %v4369 = vcombine.low %v4231, %v2518
    %v4371 = vunpack.c.l.s4 1966171168
    %v4372 = vunpack.c.0.s8 %v4371
    %v4373 = vlaneseq
    %v4374 = vshrl.u32 %v4373, 7
    %v4375 = vsub.s32 %v4372, %v4374
    %v4376 = vrot.slane %v4368, %v4375
    %v4378 = vunpack.c.l.s4 1966171168
    %v4379 = vunpack.c.0.s8 %v4378
    %v4380 = vlaneseq
    %v4381 = vshrl.u32 %v4380, 7
    %v4382 = vsub.s32 %v4379, %v4381
    %v4383 = vrot.slane %v4369, %v4382
    %v4384 = vcombine.low %v2984, %v4376
    %v4385 = vcombine.low %v4383, %v3026
    %v4387 = vunpack.c.l.s4 1966171168
    %v4388 = vunpack.c.0.s8 %v4387
    %v4389 = vlaneseq
    %v4390 = vshrl.u32 %v4389, 7
    %v4391 = vsub.s32 %v4388, %v4390
    %v4392 = vrot.slane %v4384, %v4391
    %v4394 = vunpack.c.l.s4 1966171168
    %v4395 = vunpack.c.0.s8 %v4394
    %v4396 = vlaneseq
    %v4397 = vshrl.u32 %v4396, 7
    %v4398 = vsub.s32 %v4395, %v4397
    %v4399 = vrot.slane %v4385, %v4398
    %v4400 = vcombine.low %v4392, %v4399
    %v4401 = vcombine.low %v3847, %v4232
    %v4403 = vunpack.c.l.s4 1966171168
    %v4404 = vunpack.c.0.s8 %v4403
    %v4405 = vlaneseq
    %v4406 = vshrl.u32 %v4405, 7
    %v4407 = vsub.s32 %v4404, %v4406
    %v4408 = vrot.slane %v4401, %v4407
    %v4409 = vcombine.low %v3033, %v3040
    %v4410 = vcombine.low %v4408, %v3075
    %v4412 = vunpack.c.l.s4 1966171168
    %v4413 = vunpack.c.0.s8 %v4412
    %v4414 = vlaneseq
    %v4415 = vshrl.u32 %v4414, 7
    %v4416 = vsub.s32 %v4413, %v4415
    %v4417 = vrot.slane %v4409, %v4416
    %v4419 = vunpack.c.l.s4 1966171168
    %v4420 = vunpack.c.0.s8 %v4419
    %v4421 = vlaneseq
    %v4422 = vshrl.u32 %v4421, 7
    %v4423 = vsub.s32 %v4420, %v4422
    %v4424 = vrot.slane %v4410, %v4423
    %v4425 = vcombine.low %v4417, %v4424
    %v4426 = vcombine.low %v2713, %v3848
    %v4427 = vcombine.low %v4233, %v2642
    %v4429 = vunpack.c.l.s4 1966171168
    %v4430 = vunpack.c.0.s8 %v4429
    %v4431 = vlaneseq
    %v4432 = vshrl.u32 %v4431, 7
    %v4433 = vsub.s32 %v4430, %v4432
    %v4434 = vrot.slane %v4426, %v4433
    %v4436 = vunpack.c.l.s4 1966171168
    %v4437 = vunpack.c.0.s8 %v4436
    %v4438 = vlaneseq
    %v4439 = vshrl.u32 %v4438, 7
    %v4440 = vsub.s32 %v4437, %v4439
    %v4441 = vrot.slane %v4427, %v4440
    %v4442 = vcombine.low %v3082, %v3089
    %v4443 = vcombine.low %v4434, %v4441
    %v4445 = vunpack.c.l.s4 1966171168
    %v4446 = vunpack.c.0.s8 %v4445
    %v4447 = vlaneseq
    %v4448 = vshrl.u32 %v4447, 7
    %v4449 = vsub.s32 %v4446, %v4448
    %v4450 = vrot.slane %v4442, %v4449
    %v4452 = vunpack.c.l.s4 1966171168
    %v4453 = vunpack.c.0.s8 %v4452
    %v4454 = vlaneseq
    %v4455 = vshrl.u32 %v4454, 7
    %v4456 = vsub.s32 %v4453, %v4455
    %v4457 = vrot.slane %v4443, %v4456
    %v4458 = vcombine.low %v4450, %v4457
    %v4459 = vcombine.low %v3849, %v4234
    %v4461 = vunpack.c.l.s4 1966171168
    %v4462 = vunpack.c.0.s8 %v4461
    %v4463 = vlaneseq
    %v4464 = vshrl.u32 %v4463, 7
    %v4465 = vsub.s32 %v4462, %v4464
    %v4466 = vrot.slane %v4459, %v4465
    %v4467 = vcombine.low %v3131, %v3138
    %v4468 = vcombine.low %v3145, %v4466
    %v4470 = vunpack.c.l.s4 1966171168
    %v4471 = vunpack.c.0.s8 %v4470
    %v4472 = vlaneseq
    %v4473 = vshrl.u32 %v4472, 7
    %v4474 = vsub.s32 %v4471, %v4473
    %v4475 = vrot.slane %v4467, %v4474
    %v4477 = vunpack.c.l.s4 1966171168
    %v4478 = vunpack.c.0.s8 %v4477
    %v4479 = vlaneseq
    %v4480 = vshrl.u32 %v4479, 7
    %v4481 = vsub.s32 %v4478, %v4480
    %v4482 = vrot.slane %v4468, %v4481
    %v4483 = vcombine.low %v4475, %v4482
    %4493 = vmatprep.subr.mxu0 0.0
    %4494 = vmatpush1.msra.mxu0 %v2160
    %4495 = vmatprep.subr.mxu0 0.0
    %4496 = vmatpush1.msra.mxu0 %v2159
    %4497 = vmatprep.subr.mxu0 0.0
    %4498 = vmatpush1.msra.mxu0 %v2158
    %4499 = vmatprep.subr.mxu0 0.0
    %4500 = vmatpush1.msra.mxu0 %v2157
    %4501 = vmatprep.subr.mxu0 0.0
    %4502 = vmatpush1.msra.mxu0 %v2156
    %4503 = vmatprep.subr.mxu0 0.0
    %4504 = vmatpush1.msra.mxu0 %v2155
    %4505 = vmatprep.subr.mxu0 0.0
    %4506 = vmatpush1.msra.mxu0 %v2154
    %4507 = vmatprep.subr.mxu0 0.0
    %4508 = vmatpush1.msra.mxu0 %v2153
    %4509 = vmatprep.subr.mxu0 0.0
    %4510 = vmatpush1.msra.mxu0 %v2152
    %4511 = vmatprep.subr.mxu0 0.0
    %4512 = vmatpush1.msra.mxu0 %v2151
    %4513 = vmatprep.subr.mxu0 0.0
    %4514 = vmatpush1.msra.mxu0 %v2150
    %4515 = vmatprep.subr.mxu0 0.0
    %4516 = vmatpush1.msra.mxu0 %v2149
    %4517 = vmatprep.subr.mxu0 0.0
    %4518 = vmatpush1.msra.mxu0 %v2148
    %4519 = vmatprep.subr.mxu0 0.0
    %4520 = vmatpush1.msra.mxu0 %v2147
    %4521 = vmatprep.subr.mxu0 0.0
    %4522 = vmatpush1.msra.mxu0 %v2146
    %4523 = vmatprep.subr.mxu0 0.0
    %4524 = vmatpush1.msra.mxu0 %v2145
    %4525 = vmatprep.subr.mxu0 0.0
    %4526 = vmatpush2.msra.mxu0 0.0
    %4527 = vmatprep.subr.mxu0 0.0
    %4528 = vmatpush2.msra.mxu0 0.0
    %4529 = vmatprep.subr.mxu0 0.0
    %4530 = vmatpush2.msra.mxu0 0.0
    %4531 = vmatprep.subr.mxu0 0.0
    %4532 = vmatpush2.msra.mxu0 0.0
    %4533 = vmatprep.subr.mxu0 0.0
    %4534 = vmatpush2.msra.mxu0 0.0
    %4535 = vmatprep.subr.mxu0 0.0
    %4536 = vmatpush2.msra.mxu0 0.0
    %4537 = vmatprep.subr.mxu0 0.0
    %4538 = vmatpush2.msra.mxu0 0.0
    %4539 = vmatprep.subr.mxu0 0.0
    %4540 = vmatpush2.msra.mxu0 0.0
    %4541 = vmatprep.subr.mxu0 0.0
    %4542 = vmatpush2.msra.mxu0 0.0
    %4543 = vmatprep.subr.mxu0 0.0
    %4544 = vmatpush2.msra.mxu0 0.0
    %4545 = vmatprep.subr.mxu0 0.0
    %4546 = vmatpush2.msra.mxu0 0.0
    %4547 = vmatprep.subr.mxu0 0.0
    %4548 = vmatpush2.msra.mxu0 0.0
    %4549 = vmatprep.subr.mxu0 0.0
    %4550 = vmatpush2.msra.mxu0 0.0
    %4551 = vmatprep.subr.mxu0 0.0
    %4552 = vmatpush2.msra.mxu0 0.0
    %4553 = vmatprep.subr.mxu0 0.0
    %4554 = vmatpush2.msra.mxu0 0.0
    %4555 = vmatprep.subr.mxu0 0.0
    %4556 = vmatpush2.msra.mxu0 0.0
    %4557 = vmatprep.mubr.f32.mxu0 0.0
    %4558 = vmatmul.mubr.f32.gmra.mxu0 %v4259
    %v4559 = vpop.f32.mrf.mxu0
    %v4560 = vadd.f32 0.0, %v4559
    %v4561 = vpop.f32.mrf.mxu0
    %4562 = vmatprep.mubr.f32.mxu0 0.0
    %4563 = vmatmul.mubr.f32.gmra.mxu0 %v4284
    %v4564 = vpop.f32.mrf.mxu0
    %v4565 = vadd.f32 0.0, %v4564
    %v4566 = vpop.f32.mrf.mxu0
    %4567 = vmatprep.mubr.f32.mxu0 0.0
    %4568 = vmatmul.mubr.f32.gmra.mxu0 %v4309
    %v4569 = vpop.f32.mrf.mxu0
    %v4570 = vadd.f32 0.0, %v4569
    %v4571 = vpop.f32.mrf.mxu0
    %4572 = vmatprep.mubr.f32.mxu0 0.0
    %4573 = vmatmul.mubr.f32.gmra.mxu0 %v4342
    %v4574 = vpop.f32.mrf.mxu0
    %v4575 = vadd.f32 0.0, %v4574
    %v4576 = vpop.f32.mrf.mxu0
    %4577 = vmatprep.mubr.f32.mxu0 0.0
    %4578 = vmatmul.mubr.f32.gmra.mxu0 %v4367
    %v4579 = vpop.f32.mrf.mxu0
    %v4580 = vadd.f32 0.0, %v4579
    %v4581 = vpop.f32.mrf.mxu0
    %4582 = vmatprep.mubr.f32.mxu0 0.0
    %4583 = vmatmul.mubr.f32.gmra.mxu0 %v4400
    %v4584 = vpop.f32.mrf.mxu0
    %v4585 = vadd.f32 0.0, %v4584
    %v4586 = vpop.f32.mrf.mxu0
    %4587 = vmatprep.mubr.f32.mxu0 0.0
    %4588 = vmatmul.mubr.f32.gmra.mxu0 %v4425
    %v4589 = vpop.f32.mrf.mxu0
    %v4590 = vadd.f32 0.0, %v4589
    %v4591 = vpop.f32.mrf.mxu0
    %4592 = vmatprep.mubr.f32.mxu0 0.0
    %4593 = vmatmul.mubr.f32.gmra.mxu0 %v4458
    %v4594 = vpop.f32.mrf.mxu0
    %v4595 = vadd.f32 0.0, %v4594
    %v4596 = vpop.f32.mrf.mxu0
    %4597 = vmatprep.mubr.f32.mxu0 0.0
    %4598 = vmatmul.mubr.f32.gmra.mxu0 %v4483
    %v4599 = vpop.f32.mrf.mxu0
    %v4600 = vadd.f32 0.0, %v4599
    %v4601 = vpop.f32.mrf.mxu0
    %4602 = vdwg.mxu0
    %v4603 = vadd.f32 %v4218, %v4560
    %v4604 = vadd.f32 %v4219, %v4565
    %v4605 = vadd.f32 %v4220, %v4570
    %v4606 = vadd.f32 %v4221, %v4575
    %v4607 = vadd.f32 %v4222, %v4580
    %v4608 = vadd.f32 %v4223, %v4585
    %v4609 = vadd.f32 %v4224, %v4590
    %v4610 = vadd.f32 %v4225, %v4595
    %v4611 = vadd.f32 %v4226, %v4600
    %v4613 = vlaneseq
    %v4614 = vshrl.u32 %v4613, 7
    %v4615 = vsub.s32 0, %v4614
    %v4616 = vrot.slane %v2161, %v4615
    %v4618 = vadd.f32 %v4603, %v4616
    %v4619 = vadd.f32 %v4604, %v4616
    %v4620 = vadd.f32 %v4605, %v4616
    %v4621 = vadd.f32 %v4606, %v4616
    %v4622 = vadd.f32 %v4607, %v4616
    %v4623 = vadd.f32 %v4608, %v4616
    %v4624 = vadd.f32 %v4609, %v4616
    %v4625 = vadd.f32 %v4610, %v4616
    %v4626 = vadd.f32 %v4611, %v4616
    %v4627 = vmax.f32 %v4618, 0.0
    %v4628 = vmax.f32 %v4619, 0.0
    %v4629 = vmax.f32 %v4620, 0.0
    %v4630 = vmax.f32 %v4621, 0.0
    %v4631 = vmax.f32 %v4622, 0.0
    %v4632 = vmax.f32 %v4623, 0.0
    %v4633 = vmax.f32 %v4624, 0.0
    %v4634 = vmax.f32 %v4625, 0.0
    %v4635 = vmax.f32 %v4626, 0.0
    %v4645 = vcombine.high %v4627, %v4627
    %v4647 = vunpack.c.l.s4 1966171168
    %v4648 = vunpack.c.0.s8 %v4647
    %v4649 = vlaneseq
    %v4650 = vshrl.u32 %v4649, 7
    %v4651 = vsub.s32 %v4648, %v4650
    %v4652 = vrot.slane %v4627, %v4651
    %v4654 = vunpack.c.l.s4 1966171168
    %v4655 = vunpack.c.0.s8 %v4654
    %v4656 = vlaneseq
    %v4657 = vshrl.u32 %v4656, 7
    %v4658 = vsub.s32 %v4655, %v4657
    %v4659 = vrot.slane %v4645, %v4658
    %v4660 = vcombine.high %v4652, %v4652
    %v4661 = vcombine.high %v4659, %v4659
    %v4663 = vunpack.c.l.s4 1966171168
    %v4664 = vunpack.c.0.s8 %v4663
    %v4665 = vlaneseq
    %v4666 = vshrl.u32 %v4665, 7
    %v4667 = vsub.s32 %v4664, %v4666
    %v4668 = vrot.slane %v4652, %v4667
    %v4670 = vunpack.c.l.s4 1966171168
    %v4671 = vunpack.c.0.s8 %v4670
    %v4672 = vlaneseq
    %v4673 = vshrl.u32 %v4672, 7
    %v4674 = vsub.s32 %v4671, %v4673
    %v4675 = vrot.slane %v4659, %v4674
    %v4677 = vunpack.c.l.s4 1966171168
    %v4678 = vunpack.c.0.s8 %v4677
    %v4679 = vlaneseq
    %v4680 = vshrl.u32 %v4679, 7
    %v4681 = vsub.s32 %v4678, %v4680
    %v4682 = vrot.slane %v4660, %v4681
    %v4684 = vunpack.c.l.s4 1966171168
    %v4685 = vunpack.c.0.s8 %v4684
    %v4686 = vlaneseq
    %v4687 = vshrl.u32 %v4686, 7
    %v4688 = vsub.s32 %v4685, %v4687
    %v4689 = vrot.slane %v4661, %v4688
    %v4690 = vcombine.high %v4668, %v4668
    %v4691 = vcombine.high %v4675, %v4675
    %v4692 = vcombine.high %v4682, %v4682
    %v4693 = vcombine.high %v4689, %v4689
    %v4694 = vcombine.high %v4628, %v4628
    %v4696 = vunpack.c.l.s4 1966171168
    %v4697 = vunpack.c.0.s8 %v4696
    %v4698 = vlaneseq
    %v4699 = vshrl.u32 %v4698, 7
    %v4700 = vsub.s32 %v4697, %v4699
    %v4701 = vrot.slane %v4628, %v4700
    %v4703 = vunpack.c.l.s4 1966171168
    %v4704 = vunpack.c.0.s8 %v4703
    %v4705 = vlaneseq
    %v4706 = vshrl.u32 %v4705, 7
    %v4707 = vsub.s32 %v4704, %v4706
    %v4708 = vrot.slane %v4694, %v4707
    %v4709 = vcombine.high %v4701, %v4701
    %v4710 = vcombine.high %v4708, %v4708
    %v4712 = vunpack.c.l.s4 1966171168
    %v4713 = vunpack.c.0.s8 %v4712
    %v4714 = vlaneseq
    %v4715 = vshrl.u32 %v4714, 7
    %v4716 = vsub.s32 %v4713, %v4715
    %v4717 = vrot.slane %v4701, %v4716
    %v4719 = vunpack.c.l.s4 1966171168
    %v4720 = vunpack.c.0.s8 %v4719
    %v4721 = vlaneseq
    %v4722 = vshrl.u32 %v4721, 7
    %v4723 = vsub.s32 %v4720, %v4722
    %v4724 = vrot.slane %v4708, %v4723
    %v4726 = vunpack.c.l.s4 1966171168
    %v4727 = vunpack.c.0.s8 %v4726
    %v4728 = vlaneseq
    %v4729 = vshrl.u32 %v4728, 7
    %v4730 = vsub.s32 %v4727, %v4729
    %v4731 = vrot.slane %v4709, %v4730
    %v4733 = vunpack.c.l.s4 1966171168
    %v4734 = vunpack.c.0.s8 %v4733
    %v4735 = vlaneseq
    %v4736 = vshrl.u32 %v4735, 7
    %v4737 = vsub.s32 %v4734, %v4736
    %v4738 = vrot.slane %v4710, %v4737
    %v4739 = vcombine.high %v4717, %v4717
    %v4740 = vcombine.high %v4724, %v4724
    %v4741 = vcombine.high %v4731, %v4731
    %v4742 = vcombine.high %v4738, %v4738
    %v4743 = vcombine.high %v4629, %v4629
    %v4745 = vunpack.c.l.s4 1966171168
    %v4746 = vunpack.c.0.s8 %v4745
    %v4747 = vlaneseq
    %v4748 = vshrl.u32 %v4747, 7
    %v4749 = vsub.s32 %v4746, %v4748
    %v4750 = vrot.slane %v4629, %v4749
    %v4752 = vunpack.c.l.s4 1966171168
    %v4753 = vunpack.c.0.s8 %v4752
    %v4754 = vlaneseq
    %v4755 = vshrl.u32 %v4754, 7
    %v4756 = vsub.s32 %v4753, %v4755
    %v4757 = vrot.slane %v4743, %v4756
    %v4758 = vcombine.high %v4750, %v4750
    %v4759 = vcombine.high %v4757, %v4757
    %v4761 = vunpack.c.l.s4 1966171168
    %v4762 = vunpack.c.0.s8 %v4761
    %v4763 = vlaneseq
    %v4764 = vshrl.u32 %v4763, 7
    %v4765 = vsub.s32 %v4762, %v4764
    %v4766 = vrot.slane %v4750, %v4765
    %v4768 = vunpack.c.l.s4 1966171168
    %v4769 = vunpack.c.0.s8 %v4768
    %v4770 = vlaneseq
    %v4771 = vshrl.u32 %v4770, 7
    %v4772 = vsub.s32 %v4769, %v4771
    %v4773 = vrot.slane %v4757, %v4772
    %v4775 = vunpack.c.l.s4 1966171168
    %v4776 = vunpack.c.0.s8 %v4775
    %v4777 = vlaneseq
    %v4778 = vshrl.u32 %v4777, 7
    %v4779 = vsub.s32 %v4776, %v4778
    %v4780 = vrot.slane %v4758, %v4779
    %v4782 = vunpack.c.l.s4 1966171168
    %v4783 = vunpack.c.0.s8 %v4782
    %v4784 = vlaneseq
    %v4785 = vshrl.u32 %v4784, 7
    %v4786 = vsub.s32 %v4783, %v4785
    %v4787 = vrot.slane %v4759, %v4786
    %v4788 = vcombine.high %v4766, %v4766
    %v4789 = vcombine.high %v4773, %v4773
    %v4790 = vcombine.high %v4780, %v4780
    %v4791 = vcombine.high %v4787, %v4787
    %v4792 = vcombine.high %v4630, %v4630
    %v4794 = vunpack.c.l.s4 1966171168
    %v4795 = vunpack.c.0.s8 %v4794
    %v4796 = vlaneseq
    %v4797 = vshrl.u32 %v4796, 7
    %v4798 = vsub.s32 %v4795, %v4797
    %v4799 = vrot.slane %v4630, %v4798
    %v4801 = vunpack.c.l.s4 1966171168
    %v4802 = vunpack.c.0.s8 %v4801
    %v4803 = vlaneseq
    %v4804 = vshrl.u32 %v4803, 7
    %v4805 = vsub.s32 %v4802, %v4804
    %v4806 = vrot.slane %v4792, %v4805
    %v4807 = vcombine.high %v4799, %v4799
    %v4808 = vcombine.high %v4806, %v4806
    %v4810 = vunpack.c.l.s4 1966171168
    %v4811 = vunpack.c.0.s8 %v4810
    %v4812 = vlaneseq
    %v4813 = vshrl.u32 %v4812, 7
    %v4814 = vsub.s32 %v4811, %v4813
    %v4815 = vrot.slane %v4799, %v4814
    %v4817 = vunpack.c.l.s4 1966171168
    %v4818 = vunpack.c.0.s8 %v4817
    %v4819 = vlaneseq
    %v4820 = vshrl.u32 %v4819, 7
    %v4821 = vsub.s32 %v4818, %v4820
    %v4822 = vrot.slane %v4806, %v4821
    %v4824 = vunpack.c.l.s4 1966171168
    %v4825 = vunpack.c.0.s8 %v4824
    %v4826 = vlaneseq
    %v4827 = vshrl.u32 %v4826, 7
    %v4828 = vsub.s32 %v4825, %v4827
    %v4829 = vrot.slane %v4807, %v4828
    %v4831 = vunpack.c.l.s4 1966171168
    %v4832 = vunpack.c.0.s8 %v4831
    %v4833 = vlaneseq
    %v4834 = vshrl.u32 %v4833, 7
    %v4835 = vsub.s32 %v4832, %v4834
    %v4836 = vrot.slane %v4808, %v4835
    %v4837 = vcombine.high %v4815, %v4815
    %v4838 = vcombine.high %v4822, %v4822
    %v4839 = vcombine.high %v4829, %v4829
    %v4840 = vcombine.high %v4836, %v4836
    %v4841 = vcombine.high %v4631, %v4631
    %v4843 = vunpack.c.l.s4 1966171168
    %v4844 = vunpack.c.0.s8 %v4843
    %v4845 = vlaneseq
    %v4846 = vshrl.u32 %v4845, 7
    %v4847 = vsub.s32 %v4844, %v4846
    %v4848 = vrot.slane %v4631, %v4847
    %v4850 = vunpack.c.l.s4 1966171168
    %v4851 = vunpack.c.0.s8 %v4850
    %v4852 = vlaneseq
    %v4853 = vshrl.u32 %v4852, 7
    %v4854 = vsub.s32 %v4851, %v4853
    %v4855 = vrot.slane %v4841, %v4854
    %v4856 = vcombine.high %v4848, %v4848
    %v4857 = vcombine.high %v4855, %v4855
    %v4859 = vunpack.c.l.s4 1966171168
    %v4860 = vunpack.c.0.s8 %v4859
    %v4861 = vlaneseq
    %v4862 = vshrl.u32 %v4861, 7
    %v4863 = vsub.s32 %v4860, %v4862
    %v4864 = vrot.slane %v4848, %v4863
    %v4866 = vunpack.c.l.s4 1966171168
    %v4867 = vunpack.c.0.s8 %v4866
    %v4868 = vlaneseq
    %v4869 = vshrl.u32 %v4868, 7
    %v4870 = vsub.s32 %v4867, %v4869
    %v4871 = vrot.slane %v4855, %v4870
    %v4873 = vunpack.c.l.s4 1966171168
    %v4874 = vunpack.c.0.s8 %v4873
    %v4875 = vlaneseq
    %v4876 = vshrl.u32 %v4875, 7
    %v4877 = vsub.s32 %v4874, %v4876
    %v4878 = vrot.slane %v4856, %v4877
    %v4880 = vunpack.c.l.s4 1966171168
    %v4881 = vunpack.c.0.s8 %v4880
    %v4882 = vlaneseq
    %v4883 = vshrl.u32 %v4882, 7
    %v4884 = vsub.s32 %v4881, %v4883
    %v4885 = vrot.slane %v4857, %v4884
    %v4886 = vcombine.high %v4864, %v4864
    %v4887 = vcombine.high %v4871, %v4871
    %v4888 = vcombine.high %v4878, %v4878
    %v4889 = vcombine.high %v4885, %v4885
    %v4890 = vcombine.high %v4632, %v4632
    %v4892 = vunpack.c.l.s4 1966171168
    %v4893 = vunpack.c.0.s8 %v4892
    %v4894 = vlaneseq
    %v4895 = vshrl.u32 %v4894, 7
    %v4896 = vsub.s32 %v4893, %v4895
    %v4897 = vrot.slane %v4632, %v4896
    %v4899 = vunpack.c.l.s4 1966171168
    %v4900 = vunpack.c.0.s8 %v4899
    %v4901 = vlaneseq
    %v4902 = vshrl.u32 %v4901, 7
    %v4903 = vsub.s32 %v4900, %v4902
    %v4904 = vrot.slane %v4890, %v4903
    %v4905 = vcombine.high %v4897, %v4897
    %v4906 = vcombine.high %v4904, %v4904
    %v4908 = vunpack.c.l.s4 1966171168
    %v4909 = vunpack.c.0.s8 %v4908
    %v4910 = vlaneseq
    %v4911 = vshrl.u32 %v4910, 7
    %v4912 = vsub.s32 %v4909, %v4911
    %v4913 = vrot.slane %v4897, %v4912
    %v4915 = vunpack.c.l.s4 1966171168
    %v4916 = vunpack.c.0.s8 %v4915
    %v4917 = vlaneseq
    %v4918 = vshrl.u32 %v4917, 7
    %v4919 = vsub.s32 %v4916, %v4918
    %v4920 = vrot.slane %v4904, %v4919
    %v4922 = vunpack.c.l.s4 1966171168
    %v4923 = vunpack.c.0.s8 %v4922
    %v4924 = vlaneseq
    %v4925 = vshrl.u32 %v4924, 7
    %v4926 = vsub.s32 %v4923, %v4925
    %v4927 = vrot.slane %v4905, %v4926
    %v4929 = vunpack.c.l.s4 1966171168
    %v4930 = vunpack.c.0.s8 %v4929
    %v4931 = vlaneseq
    %v4932 = vshrl.u32 %v4931, 7
    %v4933 = vsub.s32 %v4930, %v4932
    %v4934 = vrot.slane %v4906, %v4933
    %v4935 = vcombine.high %v4913, %v4913
    %v4936 = vcombine.high %v4920, %v4920
    %v4937 = vcombine.high %v4927, %v4927
    %v4938 = vcombine.high %v4934, %v4934
    %v4939 = vcombine.high %v4633, %v4633
    %v4941 = vunpack.c.l.s4 1966171168
    %v4942 = vunpack.c.0.s8 %v4941
    %v4943 = vlaneseq
    %v4944 = vshrl.u32 %v4943, 7
    %v4945 = vsub.s32 %v4942, %v4944
    %v4946 = vrot.slane %v4633, %v4945
    %v4948 = vunpack.c.l.s4 1966171168
    %v4949 = vunpack.c.0.s8 %v4948
    %v4950 = vlaneseq
    %v4951 = vshrl.u32 %v4950, 7
    %v4952 = vsub.s32 %v4949, %v4951
    %v4953 = vrot.slane %v4939, %v4952
    %v4954 = vcombine.high %v4946, %v4946
    %v4955 = vcombine.high %v4953, %v4953
    %v4957 = vunpack.c.l.s4 1966171168
    %v4958 = vunpack.c.0.s8 %v4957
    %v4959 = vlaneseq
    %v4960 = vshrl.u32 %v4959, 7
    %v4961 = vsub.s32 %v4958, %v4960
    %v4962 = vrot.slane %v4946, %v4961
    %v4964 = vunpack.c.l.s4 1966171168
    %v4965 = vunpack.c.0.s8 %v4964
    %v4966 = vlaneseq
    %v4967 = vshrl.u32 %v4966, 7
    %v4968 = vsub.s32 %v4965, %v4967
    %v4969 = vrot.slane %v4953, %v4968
    %v4971 = vunpack.c.l.s4 1966171168
    %v4972 = vunpack.c.0.s8 %v4971
    %v4973 = vlaneseq
    %v4974 = vshrl.u32 %v4973, 7
    %v4975 = vsub.s32 %v4972, %v4974
    %v4976 = vrot.slane %v4954, %v4975
    %v4978 = vunpack.c.l.s4 1966171168
    %v4979 = vunpack.c.0.s8 %v4978
    %v4980 = vlaneseq
    %v4981 = vshrl.u32 %v4980, 7
    %v4982 = vsub.s32 %v4979, %v4981
    %v4983 = vrot.slane %v4955, %v4982
    %v4984 = vcombine.high %v4962, %v4962
    %v4985 = vcombine.high %v4969, %v4969
    %v4986 = vcombine.high %v4976, %v4976
    %v4987 = vcombine.high %v4983, %v4983
    %v4988 = vcombine.high %v4634, %v4634
    %v4990 = vunpack.c.l.s4 1966171168
    %v4991 = vunpack.c.0.s8 %v4990
    %v4992 = vlaneseq
    %v4993 = vshrl.u32 %v4992, 7
    %v4994 = vsub.s32 %v4991, %v4993
    %v4995 = vrot.slane %v4634, %v4994
    %v4997 = vunpack.c.l.s4 1966171168
    %v4998 = vunpack.c.0.s8 %v4997
    %v4999 = vlaneseq
    %v5000 = vshrl.u32 %v4999, 7
    %v5001 = vsub.s32 %v4998, %v5000
    %v5002 = vrot.slane %v4988, %v5001
    %v5003 = vcombine.high %v4995, %v4995
    %v5004 = vcombine.high %v5002, %v5002
    %v5006 = vunpack.c.l.s4 1966171168
    %v5007 = vunpack.c.0.s8 %v5006
    %v5008 = vlaneseq
    %v5009 = vshrl.u32 %v5008, 7
    %v5010 = vsub.s32 %v5007, %v5009
    %v5011 = vrot.slane %v4995, %v5010
    %v5013 = vunpack.c.l.s4 1966171168
    %v5014 = vunpack.c.0.s8 %v5013
    %v5015 = vlaneseq
    %v5016 = vshrl.u32 %v5015, 7
    %v5017 = vsub.s32 %v5014, %v5016
    %v5018 = vrot.slane %v5002, %v5017
    %v5020 = vunpack.c.l.s4 1966171168
    %v5021 = vunpack.c.0.s8 %v5020
    %v5022 = vlaneseq
    %v5023 = vshrl.u32 %v5022, 7
    %v5024 = vsub.s32 %v5021, %v5023
    %v5025 = vrot.slane %v5003, %v5024
    %v5027 = vunpack.c.l.s4 1966171168
    %v5028 = vunpack.c.0.s8 %v5027
    %v5029 = vlaneseq
    %v5030 = vshrl.u32 %v5029, 7
    %v5031 = vsub.s32 %v5028, %v5030
    %v5032 = vrot.slane %v5004, %v5031
    %v5033 = vcombine.high %v5011, %v5011
    %v5034 = vcombine.high %v5018, %v5018
    %v5035 = vcombine.high %v5025, %v5025
    %v5036 = vcombine.high %v5032, %v5032
    %v5037 = vcombine.high %v4635, %v4635
    %v5039 = vunpack.c.l.s4 1966171168
    %v5040 = vunpack.c.0.s8 %v5039
    %v5041 = vlaneseq
    %v5042 = vshrl.u32 %v5041, 7
    %v5043 = vsub.s32 %v5040, %v5042
    %v5044 = vrot.slane %v4635, %v5043
    %v5046 = vunpack.c.l.s4 1966171168
    %v5047 = vunpack.c.0.s8 %v5046
    %v5048 = vlaneseq
    %v5049 = vshrl.u32 %v5048, 7
    %v5050 = vsub.s32 %v5047, %v5049
    %v5051 = vrot.slane %v5037, %v5050
    %v5052 = vcombine.high %v5044, %v5044
    %v5053 = vcombine.high %v5051, %v5051
    %v5055 = vunpack.c.l.s4 1966171168
    %v5056 = vunpack.c.0.s8 %v5055
    %v5057 = vlaneseq
    %v5058 = vshrl.u32 %v5057, 7
    %v5059 = vsub.s32 %v5056, %v5058
    %v5060 = vrot.slane %v5044, %v5059
    %v5062 = vunpack.c.l.s4 1966171168
    %v5063 = vunpack.c.0.s8 %v5062
    %v5064 = vlaneseq
    %v5065 = vshrl.u32 %v5064, 7
    %v5066 = vsub.s32 %v5063, %v5065
    %v5067 = vrot.slane %v5051, %v5066
    %v5069 = vunpack.c.l.s4 1966171168
    %v5070 = vunpack.c.0.s8 %v5069
    %v5071 = vlaneseq
    %v5072 = vshrl.u32 %v5071, 7
    %v5073 = vsub.s32 %v5070, %v5072
    %v5074 = vrot.slane %v5052, %v5073
    %v5076 = vunpack.c.l.s4 1966171168
    %v5077 = vunpack.c.0.s8 %v5076
    %v5078 = vlaneseq
    %v5079 = vshrl.u32 %v5078, 7
    %v5080 = vsub.s32 %v5077, %v5079
    %v5081 = vrot.slane %v5053, %v5080
    %v5082 = vcombine.high %v5060, %v5060
    %v5083 = vcombine.high %v5067, %v5067
    %v5084 = vcombine.high %v5074, %v5074
    %v5085 = vcombine.high %v5081, %v5081
    %v5086 = vcombine.low %v4668, %v4682
    %v5087 = vcombine.low %v4690, %v4692
    %v5088 = vcombine.low %v4675, %v4689
    %v5089 = vcombine.low %v4691, %v4693
    %v5091 = vunpack.c.l.s4 1966171168
    %v5092 = vunpack.c.0.s8 %v5091
    %v5093 = vlaneseq
    %v5094 = vshrl.u32 %v5093, 7
    %v5095 = vsub.s32 %v5092, %v5094
    %v5096 = vrot.slane %v5086, %v5095
    %v5098 = vunpack.c.l.s4 1966171168
    %v5099 = vunpack.c.0.s8 %v5098
    %v5100 = vlaneseq
    %v5101 = vshrl.u32 %v5100, 7
    %v5102 = vsub.s32 %v5099, %v5101
    %v5103 = vrot.slane %v5087, %v5102
    %v5105 = vunpack.c.l.s4 1966171168
    %v5106 = vunpack.c.0.s8 %v5105
    %v5107 = vlaneseq
    %v5108 = vshrl.u32 %v5107, 7
    %v5109 = vsub.s32 %v5106, %v5108
    %v5110 = vrot.slane %v5088, %v5109
    %v5112 = vunpack.c.l.s4 1966171168
    %v5113 = vunpack.c.0.s8 %v5112
    %v5114 = vlaneseq
    %v5115 = vshrl.u32 %v5114, 7
    %v5116 = vsub.s32 %v5113, %v5115
    %v5117 = vrot.slane %v5089, %v5116
    %v5118 = vcombine.low %v5096, %v5103
    %v5119 = vcombine.low %v5110, %v5117
    %v5121 = vunpack.c.l.s4 1966171168
    %v5122 = vunpack.c.0.s8 %v5121
    %v5123 = vlaneseq
    %v5124 = vshrl.u32 %v5123, 7
    %v5125 = vsub.s32 %v5122, %v5124
    %v5126 = vrot.slane %v5118, %v5125
    %v5128 = vunpack.c.l.s4 1966171168
    %v5129 = vunpack.c.0.s8 %v5128
    %v5130 = vlaneseq
    %v5131 = vshrl.u32 %v5130, 7
    %v5132 = vsub.s32 %v5129, %v5131
    %v5133 = vrot.slane %v5119, %v5132
    %v5134 = vcombine.low %v5126, %v5133
    %v5136 = vunpack.c.l.s4 1966171168
    %v5137 = vunpack.c.0.s8 %v5136
    %v5138 = vlaneseq
    %v5139 = vshrl.u32 %v5138, 7
    %v5140 = vsub.s32 %v5137, %v5139
    %v5141 = vrot.slane %v4717, %v5140
    %v5143 = vunpack.c.l.s4 1966171168
    %v5144 = vunpack.c.0.s8 %v5143
    %v5145 = vlaneseq
    %v5146 = vshrl.u32 %v5145, 7
    %v5147 = vsub.s32 %v5144, %v5146
    %v5148 = vrot.slane %v5141, %v5147
    %v5149 = vcombine.low %v4731, %v4739
    %v5150 = vcombine.low %v4741, %v4724
    %v5151 = vcombine.low %v4738, %v4740
    %v5152 = vcombine.low %v4742, %v4766
    %v5154 = vunpack.c.l.s4 1966171168
    %v5155 = vunpack.c.0.s8 %v5154
    %v5156 = vlaneseq
    %v5157 = vshrl.u32 %v5156, 7
    %v5158 = vsub.s32 %v5155, %v5157
    %v5159 = vrot.slane %v5149, %v5158
    %v5161 = vunpack.c.l.s4 1966171168
    %v5162 = vunpack.c.0.s8 %v5161
    %v5163 = vlaneseq
    %v5164 = vshrl.u32 %v5163, 7
    %v5165 = vsub.s32 %v5162, %v5164
    %v5166 = vrot.slane %v5150, %v5165
    %v5168 = vunpack.c.l.s4 1966171168
    %v5169 = vunpack.c.0.s8 %v5168
    %v5170 = vlaneseq
    %v5171 = vshrl.u32 %v5170, 7
    %v5172 = vsub.s32 %v5169, %v5171
    %v5173 = vrot.slane %v5151, %v5172
    %v5175 = vunpack.c.l.s4 1966171168
    %v5176 = vunpack.c.0.s8 %v5175
    %v5177 = vlaneseq
    %v5178 = vshrl.u32 %v5177, 7
    %v5179 = vsub.s32 %v5176, %v5178
    %v5180 = vrot.slane %v5152, %v5179
    %v5181 = vcombine.low %v5159, %v5166
    %v5182 = vcombine.low %v5173, %v5180
    %v5184 = vunpack.c.l.s4 1966171168
    %v5185 = vunpack.c.0.s8 %v5184
    %v5186 = vlaneseq
    %v5187 = vshrl.u32 %v5186, 7
    %v5188 = vsub.s32 %v5185, %v5187
    %v5189 = vrot.slane %v5181, %v5188
    %v5191 = vunpack.c.l.s4 1966171168
    %v5192 = vunpack.c.0.s8 %v5191
    %v5193 = vlaneseq
    %v5194 = vshrl.u32 %v5193, 7
    %v5195 = vsub.s32 %v5192, %v5194
    %v5196 = vrot.slane %v5182, %v5195
    %v5197 = vcombine.low %v5189, %v5196
    %v5199 = vunpack.c.l.s4 1966171168
    %v5200 = vunpack.c.0.s8 %v5199
    %v5201 = vlaneseq
    %v5202 = vshrl.u32 %v5201, 7
    %v5203 = vsub.s32 %v5200, %v5202
    %v5204 = vrot.slane %v4780, %v5203
    %v5206 = vunpack.c.l.s4 1966171168
    %v5207 = vunpack.c.0.s8 %v5206
    %v5208 = vlaneseq
    %v5209 = vshrl.u32 %v5208, 7
    %v5210 = vsub.s32 %v5207, %v5209
    %v5211 = vrot.slane %v5204, %v5210
    %v5212 = vcombine.low %v4788, %v4790
    %v5213 = vcombine.low %v4773, %v4787
    %v5214 = vcombine.low %v4789, %v4791
    %v5215 = vcombine.low %v4815, %v4829
    %v5217 = vunpack.c.l.s4 1966171168
    %v5218 = vunpack.c.0.s8 %v5217
    %v5219 = vlaneseq
    %v5220 = vshrl.u32 %v5219, 7
    %v5221 = vsub.s32 %v5218, %v5220
    %v5222 = vrot.slane %v5212, %v5221
    %v5224 = vunpack.c.l.s4 1966171168
    %v5225 = vunpack.c.0.s8 %v5224
    %v5226 = vlaneseq
    %v5227 = vshrl.u32 %v5226, 7
    %v5228 = vsub.s32 %v5225, %v5227
    %v5229 = vrot.slane %v5213, %v5228
    %v5231 = vunpack.c.l.s4 1966171168
    %v5232 = vunpack.c.0.s8 %v5231
    %v5233 = vlaneseq
    %v5234 = vshrl.u32 %v5233, 7
    %v5235 = vsub.s32 %v5232, %v5234
    %v5236 = vrot.slane %v5214, %v5235
    %v5238 = vunpack.c.l.s4 1966171168
    %v5239 = vunpack.c.0.s8 %v5238
    %v5240 = vlaneseq
    %v5241 = vshrl.u32 %v5240, 7
    %v5242 = vsub.s32 %v5239, %v5241
    %v5243 = vrot.slane %v5215, %v5242
    %v5244 = vcombine.low %v5222, %v5229
    %v5245 = vcombine.low %v5236, %v5243
    %v5247 = vunpack.c.l.s4 1966171168
    %v5248 = vunpack.c.0.s8 %v5247
    %v5249 = vlaneseq
    %v5250 = vshrl.u32 %v5249, 7
    %v5251 = vsub.s32 %v5248, %v5250
    %v5252 = vrot.slane %v5244, %v5251
    %v5254 = vunpack.c.l.s4 1966171168
    %v5255 = vunpack.c.0.s8 %v5254
    %v5256 = vlaneseq
    %v5257 = vshrl.u32 %v5256, 7
    %v5258 = vsub.s32 %v5255, %v5257
    %v5259 = vrot.slane %v5245, %v5258
    %v5260 = vcombine.low %v5252, %v5259
    %v5262 = vunpack.c.l.s4 1966171168
    %v5263 = vunpack.c.0.s8 %v5262
    %v5264 = vlaneseq
    %v5265 = vshrl.u32 %v5264, 7
    %v5266 = vsub.s32 %v5263, %v5265
    %v5267 = vrot.slane %v4837, %v5266
    %v5269 = vunpack.c.l.s4 1966171168
    %v5270 = vunpack.c.0.s8 %v5269
    %v5271 = vlaneseq
    %v5272 = vshrl.u32 %v5271, 7
    %v5273 = vsub.s32 %v5270, %v5272
    %v5274 = vrot.slane %v5267, %v5273
    %v5275 = vcombine.low %v4839, %v4822
    %v5276 = vcombine.low %v4836, %v4838
    %v5277 = vcombine.low %v4840, %v4864
    %v5278 = vcombine.low %v4878, %v4886
    %v5280 = vunpack.c.l.s4 1966171168
    %v5281 = vunpack.c.0.s8 %v5280
    %v5282 = vlaneseq
    %v5283 = vshrl.u32 %v5282, 7
    %v5284 = vsub.s32 %v5281, %v5283
    %v5285 = vrot.slane %v5275, %v5284
    %v5287 = vunpack.c.l.s4 1966171168
    %v5288 = vunpack.c.0.s8 %v5287
    %v5289 = vlaneseq
    %v5290 = vshrl.u32 %v5289, 7
    %v5291 = vsub.s32 %v5288, %v5290
    %v5292 = vrot.slane %v5276, %v5291
    %v5294 = vunpack.c.l.s4 1966171168
    %v5295 = vunpack.c.0.s8 %v5294
    %v5296 = vlaneseq
    %v5297 = vshrl.u32 %v5296, 7
    %v5298 = vsub.s32 %v5295, %v5297
    %v5299 = vrot.slane %v5277, %v5298
    %v5301 = vunpack.c.l.s4 1966171168
    %v5302 = vunpack.c.0.s8 %v5301
    %v5303 = vlaneseq
    %v5304 = vshrl.u32 %v5303, 7
    %v5305 = vsub.s32 %v5302, %v5304
    %v5306 = vrot.slane %v5278, %v5305
    %v5307 = vcombine.low %v5285, %v5292
    %v5308 = vcombine.low %v5299, %v5306
    %v5310 = vunpack.c.l.s4 1966171168
    %v5311 = vunpack.c.0.s8 %v5310
    %v5312 = vlaneseq
    %v5313 = vshrl.u32 %v5312, 7
    %v5314 = vsub.s32 %v5311, %v5313
    %v5315 = vrot.slane %v5307, %v5314
    %v5317 = vunpack.c.l.s4 1966171168
    %v5318 = vunpack.c.0.s8 %v5317
    %v5319 = vlaneseq
    %v5320 = vshrl.u32 %v5319, 7
    %v5321 = vsub.s32 %v5318, %v5320
    %v5322 = vrot.slane %v5308, %v5321
    %v5323 = vcombine.low %v5315, %v5322
    %v5325 = vunpack.c.l.s4 1966171168
    %v5326 = vunpack.c.0.s8 %v5325
    %v5327 = vlaneseq
    %v5328 = vshrl.u32 %v5327, 7
    %v5329 = vsub.s32 %v5326, %v5328
    %v5330 = vrot.slane %v4888, %v5329
    %v5332 = vunpack.c.l.s4 1966171168
    %v5333 = vunpack.c.0.s8 %v5332
    %v5334 = vlaneseq
    %v5335 = vshrl.u32 %v5334, 7
    %v5336 = vsub.s32 %v5333, %v5335
    %v5337 = vrot.slane %v5330, %v5336
    %v5338 = vcombine.low %v4871, %v4885
    %v5339 = vcombine.low %v4887, %v4889
    %v5340 = vcombine.low %v4913, %v4927
    %v5341 = vcombine.low %v4935, %v4937
    %v5343 = vunpack.c.l.s4 1966171168
    %v5344 = vunpack.c.0.s8 %v5343
    %v5345 = vlaneseq
    %v5346 = vshrl.u32 %v5345, 7
    %v5347 = vsub.s32 %v5344, %v5346
    %v5348 = vrot.slane %v5338, %v5347
    %v5350 = vunpack.c.l.s4 1966171168
    %v5351 = vunpack.c.0.s8 %v5350
    %v5352 = vlaneseq
    %v5353 = vshrl.u32 %v5352, 7
    %v5354 = vsub.s32 %v5351, %v5353
    %v5355 = vrot.slane %v5339, %v5354
    %v5357 = vunpack.c.l.s4 1966171168
    %v5358 = vunpack.c.0.s8 %v5357
    %v5359 = vlaneseq
    %v5360 = vshrl.u32 %v5359, 7
    %v5361 = vsub.s32 %v5358, %v5360
    %v5362 = vrot.slane %v5340, %v5361
    %v5364 = vunpack.c.l.s4 1966171168
    %v5365 = vunpack.c.0.s8 %v5364
    %v5366 = vlaneseq
    %v5367 = vshrl.u32 %v5366, 7
    %v5368 = vsub.s32 %v5365, %v5367
    %v5369 = vrot.slane %v5341, %v5368
    %v5370 = vcombine.low %v5348, %v5355
    %v5371 = vcombine.low %v5362, %v5369
    %v5373 = vunpack.c.l.s4 1966171168
    %v5374 = vunpack.c.0.s8 %v5373
    %v5375 = vlaneseq
    %v5376 = vshrl.u32 %v5375, 7
    %v5377 = vsub.s32 %v5374, %v5376
    %v5378 = vrot.slane %v5370, %v5377
    %v5380 = vunpack.c.l.s4 1966171168
    %v5381 = vunpack.c.0.s8 %v5380
    %v5382 = vlaneseq
    %v5383 = vshrl.u32 %v5382, 7
    %v5384 = vsub.s32 %v5381, %v5383
    %v5385 = vrot.slane %v5371, %v5384
    %v5386 = vcombine.low %v5378, %v5385
    %v5388 = vunpack.c.l.s4 1966171168
    %v5389 = vunpack.c.0.s8 %v5388
    %v5390 = vlaneseq
    %v5391 = vshrl.u32 %v5390, 7
    %v5392 = vsub.s32 %v5389, %v5391
    %v5393 = vrot.slane %v4920, %v5392
    %v5395 = vunpack.c.l.s4 1966171168
    %v5396 = vunpack.c.0.s8 %v5395
    %v5397 = vlaneseq
    %v5398 = vshrl.u32 %v5397, 7
    %v5399 = vsub.s32 %v5396, %v5398
    %v5400 = vrot.slane %v5393, %v5399
    %v5401 = vcombine.low %v4934, %v4936
    %v5402 = vcombine.low %v4938, %v4962
    %v5403 = vcombine.low %v4976, %v4984
    %v5404 = vcombine.low %v4986, %v4969
    %v5406 = vunpack.c.l.s4 1966171168
    %v5407 = vunpack.c.0.s8 %v5406
    %v5408 = vlaneseq
    %v5409 = vshrl.u32 %v5408, 7
    %v5410 = vsub.s32 %v5407, %v5409
    %v5411 = vrot.slane %v5401, %v5410
    %v5413 = vunpack.c.l.s4 1966171168
    %v5414 = vunpack.c.0.s8 %v5413
    %v5415 = vlaneseq
    %v5416 = vshrl.u32 %v5415, 7
    %v5417 = vsub.s32 %v5414, %v5416
    %v5418 = vrot.slane %v5402, %v5417
    %v5420 = vunpack.c.l.s4 1966171168
    %v5421 = vunpack.c.0.s8 %v5420
    %v5422 = vlaneseq
    %v5423 = vshrl.u32 %v5422, 7
    %v5424 = vsub.s32 %v5421, %v5423
    %v5425 = vrot.slane %v5403, %v5424
    %v5427 = vunpack.c.l.s4 1966171168
    %v5428 = vunpack.c.0.s8 %v5427
    %v5429 = vlaneseq
    %v5430 = vshrl.u32 %v5429, 7
    %v5431 = vsub.s32 %v5428, %v5430
    %v5432 = vrot.slane %v5404, %v5431
    %v5433 = vcombine.low %v5411, %v5418
    %v5434 = vcombine.low %v5425, %v5432
    %v5436 = vunpack.c.l.s4 1966171168
    %v5437 = vunpack.c.0.s8 %v5436
    %v5438 = vlaneseq
    %v5439 = vshrl.u32 %v5438, 7
    %v5440 = vsub.s32 %v5437, %v5439
    %v5441 = vrot.slane %v5433, %v5440
    %v5443 = vunpack.c.l.s4 1966171168
    %v5444 = vunpack.c.0.s8 %v5443
    %v5445 = vlaneseq
    %v5446 = vshrl.u32 %v5445, 7
    %v5447 = vsub.s32 %v5444, %v5446
    %v5448 = vrot.slane %v5434, %v5447
    %v5449 = vcombine.low %v5441, %v5448
    %v5451 = vunpack.c.l.s4 1966171168
    %v5452 = vunpack.c.0.s8 %v5451
    %v5453 = vlaneseq
    %v5454 = vshrl.u32 %v5453, 7
    %v5455 = vsub.s32 %v5452, %v5454
    %v5456 = vrot.slane %v4983, %v5455
    %v5458 = vunpack.c.l.s4 1966171168
    %v5459 = vunpack.c.0.s8 %v5458
    %v5460 = vlaneseq
    %v5461 = vshrl.u32 %v5460, 7
    %v5462 = vsub.s32 %v5459, %v5461
    %v5463 = vrot.slane %v5456, %v5462
    %v5464 = vcombine.low %v4985, %v4987
    %v5465 = vcombine.low %v5011, %v5025
    %v5466 = vcombine.low %v5033, %v5035
    %v5467 = vcombine.low %v5018, %v5032
    %v5469 = vunpack.c.l.s4 1966171168
    %v5470 = vunpack.c.0.s8 %v5469
    %v5471 = vlaneseq
    %v5472 = vshrl.u32 %v5471, 7
    %v5473 = vsub.s32 %v5470, %v5472
    %v5474 = vrot.slane %v5464, %v5473
    %v5476 = vunpack.c.l.s4 1966171168
    %v5477 = vunpack.c.0.s8 %v5476
    %v5478 = vlaneseq
    %v5479 = vshrl.u32 %v5478, 7
    %v5480 = vsub.s32 %v5477, %v5479
    %v5481 = vrot.slane %v5465, %v5480
    %v5483 = vunpack.c.l.s4 1966171168
    %v5484 = vunpack.c.0.s8 %v5483
    %v5485 = vlaneseq
    %v5486 = vshrl.u32 %v5485, 7
    %v5487 = vsub.s32 %v5484, %v5486
    %v5488 = vrot.slane %v5466, %v5487
    %v5490 = vunpack.c.l.s4 1966171168
    %v5491 = vunpack.c.0.s8 %v5490
    %v5492 = vlaneseq
    %v5493 = vshrl.u32 %v5492, 7
    %v5494 = vsub.s32 %v5491, %v5493
    %v5495 = vrot.slane %v5467, %v5494
    %v5496 = vcombine.low %v5474, %v5481
    %v5497 = vcombine.low %v5488, %v5495
    %v5499 = vunpack.c.l.s4 1966171168
    %v5500 = vunpack.c.0.s8 %v5499
    %v5501 = vlaneseq
    %v5502 = vshrl.u32 %v5501, 7
    %v5503 = vsub.s32 %v5500, %v5502
    %v5504 = vrot.slane %v5496, %v5503
    %v5506 = vunpack.c.l.s4 1966171168
    %v5507 = vunpack.c.0.s8 %v5506
    %v5508 = vlaneseq
    %v5509 = vshrl.u32 %v5508, 7
    %v5510 = vsub.s32 %v5507, %v5509
    %v5511 = vrot.slane %v5497, %v5510
    %v5512 = vcombine.low %v5504, %v5511
    %v5514 = vunpack.c.l.s4 1966171168
    %v5515 = vunpack.c.0.s8 %v5514
    %v5516 = vlaneseq
    %v5517 = vshrl.u32 %v5516, 7
    %v5518 = vsub.s32 %v5515, %v5517
    %v5519 = vrot.slane %v5034, %v5518
    %v5521 = vunpack.c.l.s4 1966171168
    %v5522 = vunpack.c.0.s8 %v5521
    %v5523 = vlaneseq
    %v5524 = vshrl.u32 %v5523, 7
    %v5525 = vsub.s32 %v5522, %v5524
    %v5526 = vrot.slane %v5519, %v5525
    %v5527 = vcombine.low %v5036, %v5060
    %v5528 = vcombine.low %v5074, %v5082
    %v5529 = vcombine.low %v5084, %v5067
    %v5530 = vcombine.low %v5081, %v5083
    %v5532 = vunpack.c.l.s4 1966171168
    %v5533 = vunpack.c.0.s8 %v5532
    %v5534 = vlaneseq
    %v5535 = vshrl.u32 %v5534, 7
    %v5536 = vsub.s32 %v5533, %v5535
    %v5537 = vrot.slane %v5527, %v5536
    %v5539 = vunpack.c.l.s4 1966171168
    %v5540 = vunpack.c.0.s8 %v5539
    %v5541 = vlaneseq
    %v5542 = vshrl.u32 %v5541, 7
    %v5543 = vsub.s32 %v5540, %v5542
    %v5544 = vrot.slane %v5528, %v5543
    %v5546 = vunpack.c.l.s4 1966171168
    %v5547 = vunpack.c.0.s8 %v5546
    %v5548 = vlaneseq
    %v5549 = vshrl.u32 %v5548, 7
    %v5550 = vsub.s32 %v5547, %v5549
    %v5551 = vrot.slane %v5529, %v5550
    %v5553 = vunpack.c.l.s4 1966171168
    %v5554 = vunpack.c.0.s8 %v5553
    %v5555 = vlaneseq
    %v5556 = vshrl.u32 %v5555, 7
    %v5557 = vsub.s32 %v5554, %v5556
    %v5558 = vrot.slane %v5530, %v5557
    %v5559 = vcombine.low %v5537, %v5544
    %v5560 = vcombine.low %v5551, %v5558
    %v5562 = vunpack.c.l.s4 1966171168
    %v5563 = vunpack.c.0.s8 %v5562
    %v5564 = vlaneseq
    %v5565 = vshrl.u32 %v5564, 7
    %v5566 = vsub.s32 %v5563, %v5565
    %v5567 = vrot.slane %v5559, %v5566
    %v5569 = vunpack.c.l.s4 1966171168
    %v5570 = vunpack.c.0.s8 %v5569
    %v5571 = vlaneseq
    %v5572 = vshrl.u32 %v5571, 7
    %v5573 = vsub.s32 %v5570, %v5572
    %v5574 = vrot.slane %v5560, %v5573
    %v5575 = vcombine.low %v5567, %v5574
    %v5577 = vunpack.c.l.s4 1966171168
    %v5578 = vunpack.c.0.s8 %v5577
    %v5579 = vlaneseq
    %v5580 = vshrl.u32 %v5579, 7
    %v5581 = vsub.s32 %v5578, %v5580
    %v5582 = vrot.slane %v5085, %v5581
    %v5584 = vunpack.c.l.s4 1966171168
    %v5585 = vunpack.c.0.s8 %v5584
    %v5586 = vlaneseq
    %v5587 = vshrl.u32 %v5586, 7
    %v5588 = vsub.s32 %v5585, %v5587
    %v5589 = vrot.slane %v5582, %v5588
    %v5606 = vsel %vm589, %v5148, -inf
    %v5607 = vmax.f32 %v5134, %v5606
    %v5608 = vrot.slane %v5607, 4
    %v5609 = vmax.f32 %v5607, %v5608
    %v5610 = vrot.slane %v5609, 2
    %v5611 = vmax.f32 %v5609, %v5610
    %v5612 = vrot.slane %v5611, 1
    %v5613 = vmax.f32 %v5611, %v5612
    %v5614 = vsel %vm589, %v5211, -inf
    %v5615 = vmax.f32 %v5197, %v5614
    %v5616 = vrot.slane %v5615, 4
    %v5617 = vmax.f32 %v5615, %v5616
    %v5618 = vrot.slane %v5617, 2
    %v5619 = vmax.f32 %v5617, %v5618
    %v5620 = vrot.slane %v5619, 1
    %v5621 = vmax.f32 %v5619, %v5620
    %v5622 = vsel %vm589, %v5274, -inf
    %v5623 = vmax.f32 %v5260, %v5622
    %v5624 = vrot.slane %v5623, 4
    %v5625 = vmax.f32 %v5623, %v5624
    %v5626 = vrot.slane %v5625, 2
    %v5627 = vmax.f32 %v5625, %v5626
    %v5628 = vrot.slane %v5627, 1
    %v5629 = vmax.f32 %v5627, %v5628
    %v5630 = vsel %vm589, %v5337, -inf
    %v5631 = vmax.f32 %v5323, %v5630
    %v5632 = vrot.slane %v5631, 4
    %v5633 = vmax.f32 %v5631, %v5632
    %v5634 = vrot.slane %v5633, 2
    %v5635 = vmax.f32 %v5633, %v5634
    %v5636 = vrot.slane %v5635, 1
    %v5637 = vmax.f32 %v5635, %v5636
    %v5638 = vsel %vm589, %v5400, -inf
    %v5639 = vmax.f32 %v5386, %v5638
    %v5640 = vrot.slane %v5639, 4
    %v5641 = vmax.f32 %v5639, %v5640
    %v5642 = vrot.slane %v5641, 2
    %v5643 = vmax.f32 %v5641, %v5642
    %v5644 = vrot.slane %v5643, 1
    %v5645 = vmax.f32 %v5643, %v5644
    %v5646 = vsel %vm589, %v5463, -inf
    %v5647 = vmax.f32 %v5449, %v5646
    %v5648 = vrot.slane %v5647, 4
    %v5649 = vmax.f32 %v5647, %v5648
    %v5650 = vrot.slane %v5649, 2
    %v5651 = vmax.f32 %v5649, %v5650
    %v5652 = vrot.slane %v5651, 1
    %v5653 = vmax.f32 %v5651, %v5652
    %v5654 = vsel %vm589, %v5526, -inf
    %v5655 = vmax.f32 %v5512, %v5654
    %v5656 = vrot.slane %v5655, 4
    %v5657 = vmax.f32 %v5655, %v5656
    %v5658 = vrot.slane %v5657, 2
    %v5659 = vmax.f32 %v5657, %v5658
    %v5660 = vrot.slane %v5659, 1
    %v5661 = vmax.f32 %v5659, %v5660
    %v5662 = vsel %vm589, %v5589, -inf
    %v5663 = vmax.f32 %v5575, %v5662
    %v5664 = vrot.slane %v5663, 4
    %v5665 = vmax.f32 %v5663, %v5664
    %v5666 = vrot.slane %v5665, 2
    %v5667 = vmax.f32 %v5665, %v5666
    %v5668 = vrot.slane %v5667, 1
    %v5669 = vmax.f32 %v5667, %v5668
    %v5670 = vld [vmem:[#allocation8] sm:$0xff]
    %v5671 = vld [vmem:[#allocation8 + $0x8] sm:$0xff]
    %v5672 = vld [vmem:[#allocation8 + $0x10] sm:$0xff]
    %v5673 = vld [vmem:[#allocation8 + $0x18] sm:$0xff]
    %v5674 = vld [vmem:[#allocation8 + $0x20] sm:$0xff]
    %v5675 = vld [vmem:[#allocation8 + $0x28] sm:$0xff]
    %v5676 = vld [vmem:[#allocation8 + $0x30] sm:$0xff]
    %v5677 = vld [vmem:[#allocation8 + $0x38] sm:$0xff]
    %v5678 = vld [vmem:[#allocation8 + $0x40] sm:$0xff]
    %v5679 = vld [vmem:[#allocation8 + $0x48] sm:$0xff]
    %v5680 = vld [vmem:[#allocation8 + $0x50] sm:$0xff]
    %v5681 = vld [vmem:[#allocation8 + $0x58] sm:$0xff]
    %v5682 = vld [vmem:[#allocation8 + $0x60] sm:$0xff]
    %v5683 = vld [vmem:[#allocation8 + $0x68] sm:$0xff]
    %v5684 = vld [vmem:[#allocation8 + $0x70] sm:$0xff]
    %v5685 = vld [vmem:[#allocation8 + $0x78] sm:$0xff]
    %v5686 = vld [vmem:[#allocation8 + $0x80] sm:$0xff]
    %v5687 = vld [vmem:[#allocation8 + $0x88] sm:$0xff]
    %v5688 = vld [vmem:[#allocation8 + $0x90] sm:$0xff]
    %v5689 = vld [vmem:[#allocation8 + $0x98] sm:$0xff]
    %v5690 = vld [vmem:[#allocation8 + $0xa0] sm:$0xff]
    %v5691 = vld [vmem:[#allocation8 + $0xa8] sm:$0xff]
    %v5692 = vld [vmem:[#allocation8 + $0xb0] sm:$0xff]
    %v5693 = vld [vmem:[#allocation8 + $0xb8] sm:$0xff]
    %v5694 = vld [vmem:[#allocation8 + $0xc0] sm:$0xff]
    %v5695 = vld [vmem:[#allocation8 + $0xc8] sm:$0xff]
    %v5696 = vld [vmem:[#allocation8 + $0xd0] sm:$0xff]
    %v5697 = vld [vmem:[#allocation8 + $0xd8] sm:$0xff]
    %v5698 = vld [vmem:[#allocation8 + $0xe0] sm:$0xff]
    %v5699 = vld [vmem:[#allocation8 + $0xe8] sm:$0xff]
    %v5700 = vld [vmem:[#allocation8 + $0xf0] sm:$0xff]
    %v5701 = vld [vmem:[#allocation8 + $0xf8] sm:$0xff]
    %v5702 = vld [vmem:[#allocation8 + $0x100] sm:$0xff]
    %v5703 = vld [vmem:[#allocation8 + $0x108] sm:$0xff]
    %v5704 = vld [vmem:[#allocation8 + $0x110] sm:$0xff]
    %v5705 = vld [vmem:[#allocation8 + $0x118] sm:$0xff]
    %v5706 = vld [vmem:[#allocation8 + $0x120] sm:$0xff]
    %v5707 = vld [vmem:[#allocation8 + $0x128] sm:$0xff]
    %v5708 = vld [vmem:[#allocation8 + $0x130] sm:$0xff]
    %v5709 = vld [vmem:[#allocation8 + $0x138] sm:$0xff]
    %v5710 = vld [vmem:[#allocation8 + $0x140] sm:$0xff]
    %v5711 = vld [vmem:[#allocation8 + $0x148] sm:$0xff]
    %v5712 = vld [vmem:[#allocation8 + $0x150] sm:$0xff]
    %v5713 = vld [vmem:[#allocation8 + $0x158] sm:$0xff]
    %v5714 = vld [vmem:[#allocation8 + $0x160] sm:$0xff]
    %v5715 = vld [vmem:[#allocation8 + $0x168] sm:$0xff]
    %v5716 = vld [vmem:[#allocation8 + $0x170] sm:$0xff]
    %v5717 = vld [vmem:[#allocation8 + $0x178] sm:$0xff]
    %v5718 = vld [vmem:[#allocation8 + $0x180] sm:$0xff]
    %v5719 = vld [vmem:[#allocation8 + $0x188] sm:$0xff]
    %v5720 = vld [vmem:[#allocation8 + $0x190] sm:$0xff]
    %v5721 = vld [vmem:[#allocation8 + $0x198] sm:$0xff]
    %v5722 = vld [vmem:[#allocation8 + $0x1a0] sm:$0xff]
    %v5723 = vld [vmem:[#allocation8 + $0x1a8] sm:$0xff]
    %v5724 = vld [vmem:[#allocation8 + $0x1b0] sm:$0xff]
    %v5725 = vld [vmem:[#allocation8 + $0x1b8] sm:$0xff]
    %v5726 = vld [vmem:[#allocation8 + $0x1c0] sm:$0xff]
    %v5727 = vld [vmem:[#allocation8 + $0x1c8] sm:$0xff]
    %v5728 = vld [vmem:[#allocation8 + $0x1d0] sm:$0xff]
    %v5729 = vld [vmem:[#allocation8 + $0x1d8] sm:$0xff]
    %v5730 = vld [vmem:[#allocation8 + $0x1e0] sm:$0xff]
    %v5731 = vld [vmem:[#allocation8 + $0x1e8] sm:$0xff]
    %v5732 = vld [vmem:[#allocation8 + $0x1f0] sm:$0xff]
    %v5733 = vld [vmem:[#allocation8 + $0x1f8] sm:$0xff]
    %v5734 = vld [vmem:[#allocation8 + $0x200] sm:$0xff]
    %v5735 = vld [vmem:[#allocation8 + $0x208] sm:$0xff]
    %v5736 = vld [vmem:[#allocation8 + $0x210] sm:$0xff]
    %v5737 = vld [vmem:[#allocation8 + $0x218] sm:$0xff]
    %v5738 = vld [vmem:[#allocation8 + $0x220] sm:$0xff]
    %v5739 = vld [vmem:[#allocation8 + $0x228] sm:$0xff]
    %v5740 = vld [vmem:[#allocation8 + $0x230] sm:$0xff]
    %v5741 = vld [vmem:[#allocation8 + $0x238] sm:$0xff]
    %v5742 = vld [vmem:[#allocation8 + $0x240] sm:$0xff]
    %v5743 = vld [vmem:[#allocation8 + $0x248] sm:$0xff]
    %v5744 = vld [vmem:[#allocation8 + $0x250] sm:$0xff]
    %v5745 = vld [vmem:[#allocation8 + $0x258] sm:$0xff]
    %v5746 = vld [vmem:[#allocation8 + $0x260] sm:$0xff]
    %v5747 = vld [vmem:[#allocation8 + $0x268] sm:$0xff]
    %v5748 = vld [vmem:[#allocation8 + $0x270] sm:$0xff]
    %v5749 = vld [vmem:[#allocation8 + $0x278] sm:$0xff]
    %v5750 = vld [vmem:[%s7] sm:$0x1]
    %vm5751 = vcmask 1046528
    %v5752 = vrot.slane %v308, 1
    %v5753 = vrot.slane %v316, 1
    %v5754 = vsel %vm5751, %v5752, %v5753
    %v5755 = vrot.slane %v309, 1
    %v5756 = vrot.slane %v317, 1
    %v5757 = vsel %vm5751, %v5755, %v5756
    %v5758 = vrot.slane %v310, 1
    %v5759 = vrot.slane %v318, 1
    %v5760 = vsel %vm5751, %v5758, %v5759
    %v5761 = vrot.slane %v311, 1
    %v5762 = vrot.slane %v319, 1
    %v5763 = vsel %vm5751, %v5761, %v5762
    %v5764 = vrot.slane %v312, 1
    %v5765 = vrot.slane %v320, 1
    %v5766 = vsel %vm5751, %v5764, %v5765
    %v5767 = vrot.slane %v313, 1
    %v5768 = vrot.slane %v321, 1
    %v5769 = vsel %vm5751, %v5767, %v5768
    %v5770 = vrot.slane %v314, 1
    %v5771 = vrot.slane %v322, 1
    %v5772 = vsel %vm5751, %v5770, %v5771
    %v5773 = vrot.slane %v315, 1
    %v5774 = vrot.slane %v323, 1
    %v5775 = vsel %vm5751, %v5773, %v5774
    %5784 = vmatprep.subr.mxu0 0.0
    %5785 = vmatpush1.msra.mxu0 %v5701
    %5786 = vmatprep.subr.mxu0 0.0
    %5787 = vmatpush1.msra.mxu0 %v5700
    %5788 = vmatprep.subr.mxu0 0.0
    %5789 = vmatpush1.msra.mxu0 %v5699
    %5790 = vmatprep.subr.mxu0 0.0
    %5791 = vmatpush1.msra.mxu0 %v5698
    %5792 = vmatprep.subr.mxu0 0.0
    %5793 = vmatpush1.msra.mxu0 %v5697
    %5794 = vmatprep.subr.mxu0 0.0
    %5795 = vmatpush1.msra.mxu0 %v5696
    %5796 = vmatprep.subr.mxu0 0.0
    %5797 = vmatpush1.msra.mxu0 %v5695
    %5798 = vmatprep.subr.mxu0 0.0
    %5799 = vmatpush1.msra.mxu0 %v5694
    %5800 = vmatprep.subr.mxu0 0.0
    %5801 = vmatpush1.msra.mxu0 %v5693
    %5802 = vmatprep.subr.mxu0 0.0
    %5803 = vmatpush1.msra.mxu0 %v5692
    %5804 = vmatprep.subr.mxu0 0.0
    %5805 = vmatpush1.msra.mxu0 %v5691
    %5806 = vmatprep.subr.mxu0 0.0
    %5807 = vmatpush1.msra.mxu0 %v5690
    %5808 = vmatprep.subr.mxu0 0.0
    %5809 = vmatpush1.msra.mxu0 %v5689
    %5810 = vmatprep.subr.mxu0 0.0
    %5811 = vmatpush1.msra.mxu0 %v5688
    %5812 = vmatprep.subr.mxu0 0.0
    %5813 = vmatpush1.msra.mxu0 %v5687
    %5814 = vmatprep.subr.mxu0 0.0
    %5815 = vmatpush1.msra.mxu0 %v5686
    %5816 = vmatprep.subr.mxu0 0.0
    %5817 = vmatpush2.msra.mxu0 0.0
    %5818 = vmatprep.subr.mxu0 0.0
    %5819 = vmatpush2.msra.mxu0 0.0
    %5820 = vmatprep.subr.mxu0 0.0
    %5821 = vmatpush2.msra.mxu0 0.0
    %5822 = vmatprep.subr.mxu0 0.0
    %5823 = vmatpush2.msra.mxu0 0.0
    %5824 = vmatprep.subr.mxu0 0.0
    %5825 = vmatpush2.msra.mxu0 0.0
    %5826 = vmatprep.subr.mxu0 0.0
    %5827 = vmatpush2.msra.mxu0 0.0
    %5828 = vmatprep.subr.mxu0 0.0
    %5829 = vmatpush2.msra.mxu0 0.0
    %5830 = vmatprep.subr.mxu0 0.0
    %5831 = vmatpush2.msra.mxu0 0.0
    %5832 = vmatprep.subr.mxu0 0.0
    %5833 = vmatpush2.msra.mxu0 0.0
    %5834 = vmatprep.subr.mxu0 0.0
    %5835 = vmatpush2.msra.mxu0 0.0
    %5836 = vmatprep.subr.mxu0 0.0
    %5837 = vmatpush2.msra.mxu0 0.0
    %5838 = vmatprep.subr.mxu0 0.0
    %5839 = vmatpush2.msra.mxu0 0.0
    %5840 = vmatprep.subr.mxu0 0.0
    %5841 = vmatpush2.msra.mxu0 0.0
    %5842 = vmatprep.subr.mxu0 0.0
    %5843 = vmatpush2.msra.mxu0 0.0
    %5844 = vmatprep.subr.mxu0 0.0
    %5845 = vmatpush2.msra.mxu0 0.0
    %5846 = vmatprep.subr.mxu0 0.0
    %5847 = vmatpush2.msra.mxu0 0.0
    %5848 = vmatprep.mubr.f32.mxu0 0.0
    %5849 = vmatmul.mubr.f32.gmra.mxu0 %v5754
    %v5850 = vpop.f32.mrf.mxu0
    %v5851 = vadd.f32 0.0, %v5850
    %v5852 = vpop.f32.mrf.mxu0
    %5853 = vmatprep.mubr.f32.mxu0 0.0
    %5854 = vmatmul.mubr.f32.gmra.mxu0 %v5757
    %v5855 = vpop.f32.mrf.mxu0
    %v5856 = vadd.f32 0.0, %v5855
    %v5857 = vpop.f32.mrf.mxu0
    %5858 = vmatprep.mubr.f32.mxu0 0.0
    %5859 = vmatmul.mubr.f32.gmra.mxu0 %v5760
    %v5860 = vpop.f32.mrf.mxu0
    %v5861 = vadd.f32 0.0, %v5860
    %v5862 = vpop.f32.mrf.mxu0
    %5863 = vmatprep.mubr.f32.mxu0 0.0
    %5864 = vmatmul.mubr.f32.gmra.mxu0 %v5763
    %v5865 = vpop.f32.mrf.mxu0
    %v5866 = vadd.f32 0.0, %v5865
    %v5867 = vpop.f32.mrf.mxu0
    %5868 = vmatprep.mubr.f32.mxu0 0.0
    %5869 = vmatmul.mubr.f32.gmra.mxu0 %v5766
    %v5870 = vpop.f32.mrf.mxu0
    %v5871 = vadd.f32 0.0, %v5870
    %v5872 = vpop.f32.mrf.mxu0
    %5873 = vmatprep.mubr.f32.mxu0 0.0
    %5874 = vmatmul.mubr.f32.gmra.mxu0 %v5769
    %v5875 = vpop.f32.mrf.mxu0
    %v5876 = vadd.f32 0.0, %v5875
    %v5877 = vpop.f32.mrf.mxu0
    %5878 = vmatprep.mubr.f32.mxu0 0.0
    %5879 = vmatmul.mubr.f32.gmra.mxu0 %v5772
    %v5880 = vpop.f32.mrf.mxu0
    %v5881 = vadd.f32 0.0, %v5880
    %v5882 = vpop.f32.mrf.mxu0
    %5883 = vmatprep.mubr.f32.mxu0 0.0
    %5884 = vmatmul.mubr.f32.gmra.mxu0 %v5775
    %v5885 = vpop.f32.mrf.mxu0
    %v5886 = vadd.f32 0.0, %v5885
    %v5887 = vpop.f32.mrf.mxu0
    %5888 = vdwg.mxu0
    %5889 = vmatprep.subr.mxu0 0.0
    %5890 = vmatpush1.msra.mxu0 %v5685
    %5891 = vmatprep.subr.mxu0 0.0
    %5892 = vmatpush1.msra.mxu0 %v5684
    %5893 = vmatprep.subr.mxu0 0.0
    %5894 = vmatpush1.msra.mxu0 %v5683
    %5895 = vmatprep.subr.mxu0 0.0
    %5896 = vmatpush1.msra.mxu0 %v5682
    %5897 = vmatprep.subr.mxu0 0.0
    %5898 = vmatpush1.msra.mxu0 %v5681
    %5899 = vmatprep.subr.mxu0 0.0
    %5900 = vmatpush1.msra.mxu0 %v5680
    %5901 = vmatprep.subr.mxu0 0.0
    %5902 = vmatpush1.msra.mxu0 %v5679
    %5903 = vmatprep.subr.mxu0 0.0
    %5904 = vmatpush1.msra.mxu0 %v5678
    %5905 = vmatprep.subr.mxu0 0.0
    %5906 = vmatpush1.msra.mxu0 %v5677
    %5907 = vmatprep.subr.mxu0 0.0
    %5908 = vmatpush1.msra.mxu0 %v5676
    %5909 = vmatprep.subr.mxu0 0.0
    %5910 = vmatpush1.msra.mxu0 %v5675
    %5911 = vmatprep.subr.mxu0 0.0
    %5912 = vmatpush1.msra.mxu0 %v5674
    %5913 = vmatprep.subr.mxu0 0.0
    %5914 = vmatpush1.msra.mxu0 %v5673
    %5915 = vmatprep.subr.mxu0 0.0
    %5916 = vmatpush1.msra.mxu0 %v5672
    %5917 = vmatprep.subr.mxu0 0.0
    %5918 = vmatpush1.msra.mxu0 %v5671
    %5919 = vmatprep.subr.mxu0 0.0
    %5920 = vmatpush1.msra.mxu0 %v5670
    %5921 = vmatprep.subr.mxu0 0.0
    %5922 = vmatpush2.msra.mxu0 0.0
    %5923 = vmatprep.subr.mxu0 0.0
    %5924 = vmatpush2.msra.mxu0 0.0
    %5925 = vmatprep.subr.mxu0 0.0
    %5926 = vmatpush2.msra.mxu0 0.0
    %5927 = vmatprep.subr.mxu0 0.0
    %5928 = vmatpush2.msra.mxu0 0.0
    %5929 = vmatprep.subr.mxu0 0.0
    %5930 = vmatpush2.msra.mxu0 0.0
    %5931 = vmatprep.subr.mxu0 0.0
    %5932 = vmatpush2.msra.mxu0 0.0
    %5933 = vmatprep.subr.mxu0 0.0
    %5934 = vmatpush2.msra.mxu0 0.0
    %5935 = vmatprep.subr.mxu0 0.0
    %5936 = vmatpush2.msra.mxu0 0.0
    %5937 = vmatprep.subr.mxu0 0.0
    %5938 = vmatpush2.msra.mxu0 0.0
    %5939 = vmatprep.subr.mxu0 0.0
    %5940 = vmatpush2.msra.mxu0 0.0
    %5941 = vmatprep.subr.mxu0 0.0
    %5942 = vmatpush2.msra.mxu0 0.0
    %5943 = vmatprep.subr.mxu0 0.0
    %5944 = vmatpush2.msra.mxu0 0.0
    %5945 = vmatprep.subr.mxu0 0.0
    %5946 = vmatpush2.msra.mxu0 0.0
    %5947 = vmatprep.subr.mxu0 0.0
    %5948 = vmatpush2.msra.mxu0 0.0
    %5949 = vmatprep.subr.mxu0 0.0
    %5950 = vmatpush2.msra.mxu0 0.0
    %5951 = vmatprep.subr.mxu0 0.0
    %5952 = vmatpush2.msra.mxu0 0.0
    %5953 = vmatprep.mubr.f32.mxu0 0.0
    %5954 = vmatmul.mubr.f32.gmra.mxu0 %v308
    %v5955 = vpop.f32.mrf.mxu0
    %v5956 = vadd.f32 %v5851, %v5955
    %v5957 = vpop.f32.mrf.mxu0
    %5958 = vmatprep.mubr.f32.mxu0 0.0
    %5959 = vmatmul.mubr.f32.gmra.mxu0 %v309
    %v5960 = vpop.f32.mrf.mxu0
    %v5961 = vadd.f32 %v5856, %v5960
    %v5962 = vpop.f32.mrf.mxu0
    %5963 = vmatprep.mubr.f32.mxu0 0.0
    %5964 = vmatmul.mubr.f32.gmra.mxu0 %v310
    %v5965 = vpop.f32.mrf.mxu0
    %v5966 = vadd.f32 %v5861, %v5965
    %v5967 = vpop.f32.mrf.mxu0
    %5968 = vmatprep.mubr.f32.mxu0 0.0
    %5969 = vmatmul.mubr.f32.gmra.mxu0 %v311
    %v5970 = vpop.f32.mrf.mxu0
    %v5971 = vadd.f32 %v5866, %v5970
    %v5972 = vpop.f32.mrf.mxu0
    %5973 = vmatprep.mubr.f32.mxu0 0.0
    %5974 = vmatmul.mubr.f32.gmra.mxu0 %v312
    %v5975 = vpop.f32.mrf.mxu0
    %v5976 = vadd.f32 %v5871, %v5975
    %v5977 = vpop.f32.mrf.mxu0
    %5978 = vmatprep.mubr.f32.mxu0 0.0
    %5979 = vmatmul.mubr.f32.gmra.mxu0 %v313
    %v5980 = vpop.f32.mrf.mxu0
    %v5981 = vadd.f32 %v5876, %v5980
    %v5982 = vpop.f32.mrf.mxu0
    %5983 = vmatprep.mubr.f32.mxu0 0.0
    %5984 = vmatmul.mubr.f32.gmra.mxu0 %v314
    %v5985 = vpop.f32.mrf.mxu0
    %v5986 = vadd.f32 %v5881, %v5985
    %v5987 = vpop.f32.mrf.mxu0
    %5988 = vmatprep.mubr.f32.mxu0 0.0
    %5989 = vmatmul.mubr.f32.gmra.mxu0 %v315
    %v5990 = vpop.f32.mrf.mxu0
    %v5991 = vadd.f32 %v5886, %v5990
    %v5992 = vpop.f32.mrf.mxu0
    %5993 = vdwg.mxu0
    %vm5994 = vcmask 1045504
    %v5995 = vrot.slane %v308, 2
    %v5996 = vrot.slane %v316, 2
    %v5997 = vsel %vm5994, %v5995, %v5996
    %v5998 = vrot.slane %v309, 2
    %v5999 = vrot.slane %v317, 2
    %v6000 = vsel %vm5994, %v5998, %v5999
    %v6001 = vrot.slane %v310, 2
    %v6002 = vrot.slane %v318, 2
    %v6003 = vsel %vm5994, %v6001, %v6002
    %v6004 = vrot.slane %v311, 2
    %v6005 = vrot.slane %v319, 2
    %v6006 = vsel %vm5994, %v6004, %v6005
    %v6007 = vrot.slane %v312, 2
    %v6008 = vrot.slane %v320, 2
    %v6009 = vsel %vm5994, %v6007, %v6008
    %v6010 = vrot.slane %v313, 2
    %v6011 = vrot.slane %v321, 2
    %v6012 = vsel %vm5994, %v6010, %v6011
    %v6013 = vrot.slane %v314, 2
    %v6014 = vrot.slane %v322, 2
    %v6015 = vsel %vm5994, %v6013, %v6014
    %v6016 = vrot.slane %v315, 2
    %v6017 = vrot.slane %v323, 2
    %v6018 = vsel %vm5994, %v6016, %v6017
    %6027 = vmatprep.subr.mxu0 0.0
    %6028 = vmatpush1.msra.mxu0 %v5717
    %6029 = vmatprep.subr.mxu0 0.0
    %6030 = vmatpush1.msra.mxu0 %v5716
    %6031 = vmatprep.subr.mxu0 0.0
    %6032 = vmatpush1.msra.mxu0 %v5715
    %6033 = vmatprep.subr.mxu0 0.0
    %6034 = vmatpush1.msra.mxu0 %v5714
    %6035 = vmatprep.subr.mxu0 0.0
    %6036 = vmatpush1.msra.mxu0 %v5713
    %6037 = vmatprep.subr.mxu0 0.0
    %6038 = vmatpush1.msra.mxu0 %v5712
    %6039 = vmatprep.subr.mxu0 0.0
    %6040 = vmatpush1.msra.mxu0 %v5711
    %6041 = vmatprep.subr.mxu0 0.0
    %6042 = vmatpush1.msra.mxu0 %v5710
    %6043 = vmatprep.subr.mxu0 0.0
    %6044 = vmatpush1.msra.mxu0 %v5709
    %6045 = vmatprep.subr.mxu0 0.0
    %6046 = vmatpush1.msra.mxu0 %v5708
    %6047 = vmatprep.subr.mxu0 0.0
    %6048 = vmatpush1.msra.mxu0 %v5707
    %6049 = vmatprep.subr.mxu0 0.0
    %6050 = vmatpush1.msra.mxu0 %v5706
    %6051 = vmatprep.subr.mxu0 0.0
    %6052 = vmatpush1.msra.mxu0 %v5705
    %6053 = vmatprep.subr.mxu0 0.0
    %6054 = vmatpush1.msra.mxu0 %v5704
    %6055 = vmatprep.subr.mxu0 0.0
    %6056 = vmatpush1.msra.mxu0 %v5703
    %6057 = vmatprep.subr.mxu0 0.0
    %6058 = vmatpush1.msra.mxu0 %v5702
    %6059 = vmatprep.subr.mxu0 0.0
    %6060 = vmatpush2.msra.mxu0 0.0
    %6061 = vmatprep.subr.mxu0 0.0
    %6062 = vmatpush2.msra.mxu0 0.0
    %6063 = vmatprep.subr.mxu0 0.0
    %6064 = vmatpush2.msra.mxu0 0.0
    %6065 = vmatprep.subr.mxu0 0.0
    %6066 = vmatpush2.msra.mxu0 0.0
    %6067 = vmatprep.subr.mxu0 0.0
    %6068 = vmatpush2.msra.mxu0 0.0
    %6069 = vmatprep.subr.mxu0 0.0
    %6070 = vmatpush2.msra.mxu0 0.0
    %6071 = vmatprep.subr.mxu0 0.0
    %6072 = vmatpush2.msra.mxu0 0.0
    %6073 = vmatprep.subr.mxu0 0.0
    %6074 = vmatpush2.msra.mxu0 0.0
    %6075 = vmatprep.subr.mxu0 0.0
    %6076 = vmatpush2.msra.mxu0 0.0
    %6077 = vmatprep.subr.mxu0 0.0
    %6078 = vmatpush2.msra.mxu0 0.0
    %6079 = vmatprep.subr.mxu0 0.0
    %6080 = vmatpush2.msra.mxu0 0.0
    %6081 = vmatprep.subr.mxu0 0.0
    %6082 = vmatpush2.msra.mxu0 0.0
    %6083 = vmatprep.subr.mxu0 0.0
    %6084 = vmatpush2.msra.mxu0 0.0
    %6085 = vmatprep.subr.mxu0 0.0
    %6086 = vmatpush2.msra.mxu0 0.0
    %6087 = vmatprep.subr.mxu0 0.0
    %6088 = vmatpush2.msra.mxu0 0.0
    %6089 = vmatprep.subr.mxu0 0.0
    %6090 = vmatpush2.msra.mxu0 0.0
    %6091 = vmatprep.mubr.f32.mxu0 0.0
    %6092 = vmatmul.mubr.f32.gmra.mxu0 %v5997
    %v6093 = vpop.f32.mrf.mxu0
    %v6094 = vadd.f32 0.0, %v6093
    %v6095 = vpop.f32.mrf.mxu0
    %6096 = vmatprep.mubr.f32.mxu0 0.0
    %6097 = vmatmul.mubr.f32.gmra.mxu0 %v6000
    %v6098 = vpop.f32.mrf.mxu0
    %v6099 = vadd.f32 0.0, %v6098
    %v6100 = vpop.f32.mrf.mxu0
    %6101 = vmatprep.mubr.f32.mxu0 0.0
    %6102 = vmatmul.mubr.f32.gmra.mxu0 %v6003
    %v6103 = vpop.f32.mrf.mxu0
    %v6104 = vadd.f32 0.0, %v6103
    %v6105 = vpop.f32.mrf.mxu0
    %6106 = vmatprep.mubr.f32.mxu0 0.0
    %6107 = vmatmul.mubr.f32.gmra.mxu0 %v6006
    %v6108 = vpop.f32.mrf.mxu0
    %v6109 = vadd.f32 0.0, %v6108
    %v6110 = vpop.f32.mrf.mxu0
    %6111 = vmatprep.mubr.f32.mxu0 0.0
    %6112 = vmatmul.mubr.f32.gmra.mxu0 %v6009
    %v6113 = vpop.f32.mrf.mxu0
    %v6114 = vadd.f32 0.0, %v6113
    %v6115 = vpop.f32.mrf.mxu0
    %6116 = vmatprep.mubr.f32.mxu0 0.0
    %6117 = vmatmul.mubr.f32.gmra.mxu0 %v6012
    %v6118 = vpop.f32.mrf.mxu0
    %v6119 = vadd.f32 0.0, %v6118
    %v6120 = vpop.f32.mrf.mxu0
    %6121 = vmatprep.mubr.f32.mxu0 0.0
    %6122 = vmatmul.mubr.f32.gmra.mxu0 %v6015
    %v6123 = vpop.f32.mrf.mxu0
    %v6124 = vadd.f32 0.0, %v6123
    %v6125 = vpop.f32.mrf.mxu0
    %6126 = vmatprep.mubr.f32.mxu0 0.0
    %6127 = vmatmul.mubr.f32.gmra.mxu0 %v6018
    %v6128 = vpop.f32.mrf.mxu0
    %v6129 = vadd.f32 0.0, %v6128
    %v6130 = vpop.f32.mrf.mxu0
    %6131 = vdwg.mxu0
    %v6132 = vadd.f32 %v5956, %v6094
    %v6133 = vadd.f32 %v5961, %v6099
    %v6134 = vadd.f32 %v5966, %v6104
    %v6135 = vadd.f32 %v5971, %v6109
    %v6136 = vadd.f32 %v5976, %v6114
    %v6137 = vadd.f32 %v5981, %v6119
    %v6138 = vadd.f32 %v5986, %v6124
    %v6139 = vadd.f32 %v5991, %v6129
    %vm6140 = vcmask 1044480
    %v6141 = vrot.slane %v308, 3
    %v6142 = vrot.slane %v316, 3
    %v6143 = vsel %vm6140, %v6141, %v6142
    %v6144 = vrot.slane %v309, 3
    %v6145 = vrot.slane %v317, 3
    %v6146 = vsel %vm6140, %v6144, %v6145
    %v6147 = vrot.slane %v310, 3
    %v6148 = vrot.slane %v318, 3
    %v6149 = vsel %vm6140, %v6147, %v6148
    %v6150 = vrot.slane %v311, 3
    %v6151 = vrot.slane %v319, 3
    %v6152 = vsel %vm6140, %v6150, %v6151
    %v6153 = vrot.slane %v312, 3
    %v6154 = vrot.slane %v320, 3
    %v6155 = vsel %vm6140, %v6153, %v6154
    %v6156 = vrot.slane %v313, 3
    %v6157 = vrot.slane %v321, 3
    %v6158 = vsel %vm6140, %v6156, %v6157
    %v6159 = vrot.slane %v314, 3
    %v6160 = vrot.slane %v322, 3
    %v6161 = vsel %vm6140, %v6159, %v6160
    %v6162 = vrot.slane %v315, 3
    %v6163 = vrot.slane %v323, 3
    %v6164 = vsel %vm6140, %v6162, %v6163
    %6173 = vmatprep.subr.mxu0 0.0
    %6174 = vmatpush1.msra.mxu0 %v5733
    %6175 = vmatprep.subr.mxu0 0.0
    %6176 = vmatpush1.msra.mxu0 %v5732
    %6177 = vmatprep.subr.mxu0 0.0
    %6178 = vmatpush1.msra.mxu0 %v5731
    %6179 = vmatprep.subr.mxu0 0.0
    %6180 = vmatpush1.msra.mxu0 %v5730
    %6181 = vmatprep.subr.mxu0 0.0
    %6182 = vmatpush1.msra.mxu0 %v5729
    %6183 = vmatprep.subr.mxu0 0.0
    %6184 = vmatpush1.msra.mxu0 %v5728
    %6185 = vmatprep.subr.mxu0 0.0
    %6186 = vmatpush1.msra.mxu0 %v5727
    %6187 = vmatprep.subr.mxu0 0.0
    %6188 = vmatpush1.msra.mxu0 %v5726
    %6189 = vmatprep.subr.mxu0 0.0
    %6190 = vmatpush1.msra.mxu0 %v5725
    %6191 = vmatprep.subr.mxu0 0.0
    %6192 = vmatpush1.msra.mxu0 %v5724
    %6193 = vmatprep.subr.mxu0 0.0
    %6194 = vmatpush1.msra.mxu0 %v5723
    %6195 = vmatprep.subr.mxu0 0.0
    %6196 = vmatpush1.msra.mxu0 %v5722
    %6197 = vmatprep.subr.mxu0 0.0
    %6198 = vmatpush1.msra.mxu0 %v5721
    %6199 = vmatprep.subr.mxu0 0.0
    %6200 = vmatpush1.msra.mxu0 %v5720
    %6201 = vmatprep.subr.mxu0 0.0
    %6202 = vmatpush1.msra.mxu0 %v5719
    %6203 = vmatprep.subr.mxu0 0.0
    %6204 = vmatpush1.msra.mxu0 %v5718
    %6205 = vmatprep.subr.mxu0 0.0
    %6206 = vmatpush2.msra.mxu0 0.0
    %6207 = vmatprep.subr.mxu0 0.0
    %6208 = vmatpush2.msra.mxu0 0.0
    %6209 = vmatprep.subr.mxu0 0.0
    %6210 = vmatpush2.msra.mxu0 0.0
    %6211 = vmatprep.subr.mxu0 0.0
    %6212 = vmatpush2.msra.mxu0 0.0
    %6213 = vmatprep.subr.mxu0 0.0
    %6214 = vmatpush2.msra.mxu0 0.0
    %6215 = vmatprep.subr.mxu0 0.0
    %6216 = vmatpush2.msra.mxu0 0.0
    %6217 = vmatprep.subr.mxu0 0.0
    %6218 = vmatpush2.msra.mxu0 0.0
    %6219 = vmatprep.subr.mxu0 0.0
    %6220 = vmatpush2.msra.mxu0 0.0
    %6221 = vmatprep.subr.mxu0 0.0
    %6222 = vmatpush2.msra.mxu0 0.0
    %6223 = vmatprep.subr.mxu0 0.0
    %6224 = vmatpush2.msra.mxu0 0.0
    %6225 = vmatprep.subr.mxu0 0.0
    %6226 = vmatpush2.msra.mxu0 0.0
    %6227 = vmatprep.subr.mxu0 0.0
    %6228 = vmatpush2.msra.mxu0 0.0
    %6229 = vmatprep.subr.mxu0 0.0
    %6230 = vmatpush2.msra.mxu0 0.0
    %6231 = vmatprep.subr.mxu0 0.0
    %6232 = vmatpush2.msra.mxu0 0.0
    %6233 = vmatprep.subr.mxu0 0.0
    %6234 = vmatpush2.msra.mxu0 0.0
    %6235 = vmatprep.subr.mxu0 0.0
    %6236 = vmatpush2.msra.mxu0 0.0
    %6237 = vmatprep.mubr.f32.mxu0 0.0
    %6238 = vmatmul.mubr.f32.gmra.mxu0 %v6143
    %v6239 = vpop.f32.mrf.mxu0
    %v6240 = vadd.f32 0.0, %v6239
    %v6241 = vpop.f32.mrf.mxu0
    %6242 = vmatprep.mubr.f32.mxu0 0.0
    %6243 = vmatmul.mubr.f32.gmra.mxu0 %v6146
    %v6244 = vpop.f32.mrf.mxu0
    %v6245 = vadd.f32 0.0, %v6244
    %v6246 = vpop.f32.mrf.mxu0
    %6247 = vmatprep.mubr.f32.mxu0 0.0
    %6248 = vmatmul.mubr.f32.gmra.mxu0 %v6149
    %v6249 = vpop.f32.mrf.mxu0
    %v6250 = vadd.f32 0.0, %v6249
    %v6251 = vpop.f32.mrf.mxu0
    %6252 = vmatprep.mubr.f32.mxu0 0.0
    %6253 = vmatmul.mubr.f32.gmra.mxu0 %v6152
    %v6254 = vpop.f32.mrf.mxu0
    %v6255 = vadd.f32 0.0, %v6254
    %v6256 = vpop.f32.mrf.mxu0
    %6257 = vmatprep.mubr.f32.mxu0 0.0
    %6258 = vmatmul.mubr.f32.gmra.mxu0 %v6155
    %v6259 = vpop.f32.mrf.mxu0
    %v6260 = vadd.f32 0.0, %v6259
    %v6261 = vpop.f32.mrf.mxu0
    %6262 = vmatprep.mubr.f32.mxu0 0.0
    %6263 = vmatmul.mubr.f32.gmra.mxu0 %v6158
    %v6264 = vpop.f32.mrf.mxu0
    %v6265 = vadd.f32 0.0, %v6264
    %v6266 = vpop.f32.mrf.mxu0
    %6267 = vmatprep.mubr.f32.mxu0 0.0
    %6268 = vmatmul.mubr.f32.gmra.mxu0 %v6161
    %v6269 = vpop.f32.mrf.mxu0
    %v6270 = vadd.f32 0.0, %v6269
    %v6271 = vpop.f32.mrf.mxu0
    %6272 = vmatprep.mubr.f32.mxu0 0.0
    %6273 = vmatmul.mubr.f32.gmra.mxu0 %v6164
    %v6274 = vpop.f32.mrf.mxu0
    %v6275 = vadd.f32 0.0, %v6274
    %v6276 = vpop.f32.mrf.mxu0
    %6277 = vdwg.mxu0
    %v6278 = vadd.f32 %v6132, %v6240
    %v6279 = vadd.f32 %v6133, %v6245
    %v6280 = vadd.f32 %v6134, %v6250
    %v6281 = vadd.f32 %v6135, %v6255
    %v6282 = vadd.f32 %v6136, %v6260
    %v6283 = vadd.f32 %v6137, %v6265
    %v6284 = vadd.f32 %v6138, %v6270
    %v6285 = vadd.f32 %v6139, %v6275
    %vm6286 = vcmask 1043456
    %v6287 = vrot.slane %v308, 4
    %v6288 = vrot.slane %v316, 4
    %v6289 = vsel %vm6286, %v6287, %v6288
    %v6290 = vrot.slane %v309, 4
    %v6291 = vrot.slane %v317, 4
    %v6292 = vsel %vm6286, %v6290, %v6291
    %v6293 = vrot.slane %v310, 4
    %v6294 = vrot.slane %v318, 4
    %v6295 = vsel %vm6286, %v6293, %v6294
    %v6296 = vrot.slane %v311, 4
    %v6297 = vrot.slane %v319, 4
    %v6298 = vsel %vm6286, %v6296, %v6297
    %v6299 = vrot.slane %v312, 4
    %v6300 = vrot.slane %v320, 4
    %v6301 = vsel %vm6286, %v6299, %v6300
    %v6302 = vrot.slane %v313, 4
    %v6303 = vrot.slane %v321, 4
    %v6304 = vsel %vm6286, %v6302, %v6303
    %v6305 = vrot.slane %v314, 4
    %v6306 = vrot.slane %v322, 4
    %v6307 = vsel %vm6286, %v6305, %v6306
    %v6308 = vrot.slane %v315, 4
    %v6309 = vrot.slane %v323, 4
    %v6310 = vsel %vm6286, %v6308, %v6309
    %6319 = vmatprep.subr.mxu0 0.0
    %6320 = vmatpush1.msra.mxu0 %v5749
    %6321 = vmatprep.subr.mxu0 0.0
    %6322 = vmatpush1.msra.mxu0 %v5748
    %6323 = vmatprep.subr.mxu0 0.0
    %6324 = vmatpush1.msra.mxu0 %v5747
    %6325 = vmatprep.subr.mxu0 0.0
    %6326 = vmatpush1.msra.mxu0 %v5746
    %6327 = vmatprep.subr.mxu0 0.0
    %6328 = vmatpush1.msra.mxu0 %v5745
    %6329 = vmatprep.subr.mxu0 0.0
    %6330 = vmatpush1.msra.mxu0 %v5744
    %6331 = vmatprep.subr.mxu0 0.0
    %6332 = vmatpush1.msra.mxu0 %v5743
    %6333 = vmatprep.subr.mxu0 0.0
    %6334 = vmatpush1.msra.mxu0 %v5742
    %6335 = vmatprep.subr.mxu0 0.0
    %6336 = vmatpush1.msra.mxu0 %v5741
    %6337 = vmatprep.subr.mxu0 0.0
    %6338 = vmatpush1.msra.mxu0 %v5740
    %6339 = vmatprep.subr.mxu0 0.0
    %6340 = vmatpush1.msra.mxu0 %v5739
    %6341 = vmatprep.subr.mxu0 0.0
    %6342 = vmatpush1.msra.mxu0 %v5738
    %6343 = vmatprep.subr.mxu0 0.0
    %6344 = vmatpush1.msra.mxu0 %v5737
    %6345 = vmatprep.subr.mxu0 0.0
    %6346 = vmatpush1.msra.mxu0 %v5736
    %6347 = vmatprep.subr.mxu0 0.0
    %6348 = vmatpush1.msra.mxu0 %v5735
    %6349 = vmatprep.subr.mxu0 0.0
    %6350 = vmatpush1.msra.mxu0 %v5734
    %6351 = vmatprep.subr.mxu0 0.0
    %6352 = vmatpush2.msra.mxu0 0.0
    %6353 = vmatprep.subr.mxu0 0.0
    %6354 = vmatpush2.msra.mxu0 0.0
    %6355 = vmatprep.subr.mxu0 0.0
    %6356 = vmatpush2.msra.mxu0 0.0
    %6357 = vmatprep.subr.mxu0 0.0
    %6358 = vmatpush2.msra.mxu0 0.0
    %6359 = vmatprep.subr.mxu0 0.0
    %6360 = vmatpush2.msra.mxu0 0.0
    %6361 = vmatprep.subr.mxu0 0.0
    %6362 = vmatpush2.msra.mxu0 0.0
    %6363 = vmatprep.subr.mxu0 0.0
    %6364 = vmatpush2.msra.mxu0 0.0
    %6365 = vmatprep.subr.mxu0 0.0
    %6366 = vmatpush2.msra.mxu0 0.0
    %6367 = vmatprep.subr.mxu0 0.0
    %6368 = vmatpush2.msra.mxu0 0.0
    %6369 = vmatprep.subr.mxu0 0.0
    %6370 = vmatpush2.msra.mxu0 0.0
    %6371 = vmatprep.subr.mxu0 0.0
    %6372 = vmatpush2.msra.mxu0 0.0
    %6373 = vmatprep.subr.mxu0 0.0
    %6374 = vmatpush2.msra.mxu0 0.0
    %6375 = vmatprep.subr.mxu0 0.0
    %6376 = vmatpush2.msra.mxu0 0.0
    %6377 = vmatprep.subr.mxu0 0.0
    %6378 = vmatpush2.msra.mxu0 0.0
    %6379 = vmatprep.subr.mxu0 0.0
    %6380 = vmatpush2.msra.mxu0 0.0
    %6381 = vmatprep.subr.mxu0 0.0
    %6382 = vmatpush2.msra.mxu0 0.0
    %6383 = vmatprep.mubr.f32.mxu0 0.0
    %6384 = vmatmul.mubr.f32.gmra.mxu0 %v6289
    %v6385 = vpop.f32.mrf.mxu0
    %v6386 = vadd.f32 0.0, %v6385
    %v6387 = vpop.f32.mrf.mxu0
    %6388 = vmatprep.mubr.f32.mxu0 0.0
    %6389 = vmatmul.mubr.f32.gmra.mxu0 %v6292
    %v6390 = vpop.f32.mrf.mxu0
    %v6391 = vadd.f32 0.0, %v6390
    %v6392 = vpop.f32.mrf.mxu0
    %6393 = vmatprep.mubr.f32.mxu0 0.0
    %6394 = vmatmul.mubr.f32.gmra.mxu0 %v6295
    %v6395 = vpop.f32.mrf.mxu0
    %v6396 = vadd.f32 0.0, %v6395
    %v6397 = vpop.f32.mrf.mxu0
    %6398 = vmatprep.mubr.f32.mxu0 0.0
    %6399 = vmatmul.mubr.f32.gmra.mxu0 %v6298
    %v6400 = vpop.f32.mrf.mxu0
    %v6401 = vadd.f32 0.0, %v6400
    %v6402 = vpop.f32.mrf.mxu0
    %6403 = vmatprep.mubr.f32.mxu0 0.0
    %6404 = vmatmul.mubr.f32.gmra.mxu0 %v6301
    %v6405 = vpop.f32.mrf.mxu0
    %v6406 = vadd.f32 0.0, %v6405
    %v6407 = vpop.f32.mrf.mxu0
    %6408 = vmatprep.mubr.f32.mxu0 0.0
    %6409 = vmatmul.mubr.f32.gmra.mxu0 %v6304
    %v6410 = vpop.f32.mrf.mxu0
    %v6411 = vadd.f32 0.0, %v6410
    %v6412 = vpop.f32.mrf.mxu0
    %6413 = vmatprep.mubr.f32.mxu0 0.0
    %6414 = vmatmul.mubr.f32.gmra.mxu0 %v6307
    %v6415 = vpop.f32.mrf.mxu0
    %v6416 = vadd.f32 0.0, %v6415
    %v6417 = vpop.f32.mrf.mxu0
    %6418 = vmatprep.mubr.f32.mxu0 0.0
    %6419 = vmatmul.mubr.f32.gmra.mxu0 %v6310
    %v6420 = vpop.f32.mrf.mxu0
    %v6421 = vadd.f32 0.0, %v6420
    %v6422 = vpop.f32.mrf.mxu0
    %6423 = vdwg.mxu0
    %v6424 = vadd.f32 %v6278, %v6386
    %v6425 = vadd.f32 %v6279, %v6391
    %v6426 = vadd.f32 %v6280, %v6396
    %v6427 = vadd.f32 %v6281, %v6401
    %v6428 = vadd.f32 %v6282, %v6406
    %v6429 = vadd.f32 %v6283, %v6411
    %v6430 = vadd.f32 %v6284, %v6416
    %v6431 = vadd.f32 %v6285, %v6421
    %v6433 = vlaneseq
    %v6434 = vshrl.u32 %v6433, 7
    %v6435 = vsub.s32 0, %v6434
    %v6436 = vrot.slane %v5750, %v6435
    %v6438 = vadd.f32 %v6424, %v6436
    %v6439 = vadd.f32 %v6425, %v6436
    %v6440 = vadd.f32 %v6426, %v6436
    %v6441 = vadd.f32 %v6427, %v6436
    %v6442 = vadd.f32 %v6428, %v6436
    %v6443 = vadd.f32 %v6429, %v6436
    %v6444 = vadd.f32 %v6430, %v6436
    %v6445 = vadd.f32 %v6431, %v6436
    %v6446 = vmax.f32 %v6438, 0.0
    %v6447 = vmax.f32 %v6439, 0.0
    %v6448 = vmax.f32 %v6440, 0.0
    %v6449 = vmax.f32 %v6441, 0.0
    %v6450 = vmax.f32 %v6442, 0.0
    %v6451 = vmax.f32 %v6443, 0.0
    %v6452 = vmax.f32 %v6444, 0.0
    %v6453 = vmax.f32 %v6445, 0.0
    %v6454 = vrot.slane %v6446, 4
    %v6455 = vmax.f32 %v6446, %v6454
    %v6456 = vrot.slane %v6455, 2
    %v6457 = vmax.f32 %v6455, %v6456
    %v6458 = vrot.slane %v6457, 1
    %v6459 = vmax.f32 %v6457, %v6458
    %v6460 = vrot.slane %v6447, 4
    %v6461 = vmax.f32 %v6447, %v6460
    %v6462 = vrot.slane %v6461, 2
    %v6463 = vmax.f32 %v6461, %v6462
    %v6464 = vrot.slane %v6463, 1
    %v6465 = vmax.f32 %v6463, %v6464
    %v6466 = vrot.slane %v6448, 4
    %v6467 = vmax.f32 %v6448, %v6466
    %v6468 = vrot.slane %v6467, 2
    %v6469 = vmax.f32 %v6467, %v6468
    %v6470 = vrot.slane %v6469, 1
    %v6471 = vmax.f32 %v6469, %v6470
    %v6472 = vrot.slane %v6449, 4
    %v6473 = vmax.f32 %v6449, %v6472
    %v6474 = vrot.slane %v6473, 2
    %v6475 = vmax.f32 %v6473, %v6474
    %v6476 = vrot.slane %v6475, 1
    %v6477 = vmax.f32 %v6475, %v6476
    %v6478 = vrot.slane %v6450, 4
    %v6479 = vmax.f32 %v6450, %v6478
    %v6480 = vrot.slane %v6479, 2
    %v6481 = vmax.f32 %v6479, %v6480
    %v6482 = vrot.slane %v6481, 1
    %v6483 = vmax.f32 %v6481, %v6482
    %v6484 = vrot.slane %v6451, 4
    %v6485 = vmax.f32 %v6451, %v6484
    %v6486 = vrot.slane %v6485, 2
    %v6487 = vmax.f32 %v6485, %v6486
    %v6488 = vrot.slane %v6487, 1
    %v6489 = vmax.f32 %v6487, %v6488
    %v6490 = vrot.slane %v6452, 4
    %v6491 = vmax.f32 %v6452, %v6490
    %v6492 = vrot.slane %v6491, 2
    %v6493 = vmax.f32 %v6491, %v6492
    %v6494 = vrot.slane %v6493, 1
    %v6495 = vmax.f32 %v6493, %v6494
    %v6496 = vrot.slane %v6453, 4
    %v6497 = vmax.f32 %v6453, %v6496
    %v6498 = vrot.slane %v6497, 2
    %v6499 = vmax.f32 %v6497, %v6498
    %v6500 = vrot.slane %v6499, 1
    %v6501 = vmax.f32 %v6499, %v6500
    %vm6510 = vcmask 1041409
    %v6511 = vsel %vm6510, %v2048, %v2040
    %v6512 = vsel %vm590, %v2056, %v6511
    %vm6513 = vcmask 1043459
    %v6514 = vsel %vm6513, %v2064, %v6512
    %v6515 = vsel %vm592, %v2072, %v6514
    %vm6516 = vcmask 1045509
    %v6517 = vsel %vm6516, %v2080, %v6515
    %v6518 = vsel %vm594, %v2088, %v6517
    %vm6519 = vcmask 1047559
    %v6520 = vsel %vm6519, %v2096, %v6518
    %v6530 = vsel %vm6510, %v5621, %v5613
    %v6531 = vsel %vm590, %v5629, %v6530
    %v6532 = vsel %vm6513, %v5637, %v6531
    %v6533 = vsel %vm592, %v5645, %v6532
    %v6534 = vsel %vm6516, %v5653, %v6533
    %v6535 = vsel %vm594, %v5661, %v6534
    %v6536 = vsel %vm6519, %v5669, %v6535
    %v6546 = vsel %vm6510, %v6465, %v6459
    %v6547 = vsel %vm590, %v6471, %v6546
    %v6548 = vsel %vm6513, %v6477, %v6547
    %v6549 = vsel %vm592, %v6483, %v6548
    %v6550 = vsel %vm6516, %v6489, %v6549
    %v6551 = vsel %vm594, %v6495, %v6550
    %v6552 = vsel %vm6519, %v6501, %v6551
    %v6554 = vld [vmem:[#allocation10] sm:$0xff]
    %v6555 = vld [vmem:[#allocation10 + $0x8] sm:$0xff]
    %v6556 = vld [vmem:[#allocation10 + $0x10] sm:$0xff]
    %v6557 = vld [vmem:[#allocation10 + $0x18] sm:$0xff]
    %v6558 = vld [vmem:[#allocation10 + $0x20] sm:$0xff]
    %v6559 = vld [vmem:[#allocation10 + $0x28] sm:$0xff]
    %v6560 = vld [vmem:[#allocation10 + $0x30] sm:$0xff]
    %v6561 = vld [vmem:[#allocation10 + $0x38] sm:$0xff]
    %v6562 = vld [vmem:[#allocation10 + $0x40] sm:$0xff]
    %v6563 = vld [vmem:[#allocation10 + $0x48] sm:$0xff]
    %v6564 = vld [vmem:[#allocation10 + $0x50] sm:$0xff]
    %v6565 = vld [vmem:[#allocation10 + $0x58] sm:$0xff]
    %v6566 = vld [vmem:[#allocation10 + $0x60] sm:$0xff]
    %v6567 = vld [vmem:[#allocation10 + $0x68] sm:$0xff]
    %v6568 = vld [vmem:[#allocation10 + $0x70] sm:$0xff]
    %v6569 = vld [vmem:[#allocation10 + $0x78] sm:$0xff]
    %v6570 = vld [vmem:[#allocation10 + $0x80] sm:$0xff]
    %v6571 = vld [vmem:[#allocation10 + $0x88] sm:$0xff]
    %v6572 = vld [vmem:[#allocation10 + $0x90] sm:$0xff]
    %v6573 = vld [vmem:[#allocation10 + $0x98] sm:$0xff]
    %v6574 = vld [vmem:[#allocation10 + $0xa0] sm:$0xff]
    %v6575 = vld [vmem:[#allocation10 + $0xa8] sm:$0xff]
    %v6576 = vld [vmem:[#allocation10 + $0xb0] sm:$0xff]
    %v6577 = vld [vmem:[#allocation10 + $0xb8] sm:$0xff]
    %v6578 = vld [vmem:[#allocation10 + $0xc0] sm:$0xff]
    %v6579 = vld [vmem:[#allocation10 + $0xc8] sm:$0xff]
    %v6580 = vld [vmem:[#allocation10 + $0xd0] sm:$0xff]
    %v6581 = vld [vmem:[#allocation10 + $0xd8] sm:$0xff]
    %v6582 = vld [vmem:[#allocation10 + $0xe0] sm:$0xff]
    %v6583 = vld [vmem:[#allocation10 + $0xe8] sm:$0xff]
    %v6584 = vld [vmem:[#allocation10 + $0xf0] sm:$0xff]
    %v6585 = vld [vmem:[#allocation10 + $0xf8] sm:$0xff]
    %v6586 = vld [vmem:[#allocation10 + $0x100] sm:$0xff]
    %v6587 = vld [vmem:[#allocation10 + $0x108] sm:$0xff]
    %v6588 = vld [vmem:[#allocation10 + $0x110] sm:$0xff]
    %v6589 = vld [vmem:[#allocation10 + $0x118] sm:$0xff]
    %v6590 = vld [vmem:[#allocation10 + $0x120] sm:$0xff]
    %v6591 = vld [vmem:[#allocation10 + $0x128] sm:$0xff]
    %v6592 = vld [vmem:[#allocation10 + $0x130] sm:$0xff]
    %v6593 = vld [vmem:[#allocation10 + $0x138] sm:$0xff]
    %v6594 = vld [vmem:[#allocation10 + $0x140] sm:$0xff]
    %v6595 = vld [vmem:[#allocation10 + $0x148] sm:$0xff]
    %v6596 = vld [vmem:[#allocation10 + $0x150] sm:$0xff]
    %v6597 = vld [vmem:[#allocation10 + $0x158] sm:$0xff]
    %v6598 = vld [vmem:[#allocation10 + $0x160] sm:$0xff]
    %v6599 = vld [vmem:[#allocation10 + $0x168] sm:$0xff]
    %v6600 = vld [vmem:[#allocation10 + $0x170] sm:$0xff]
    %v6601 = vld [vmem:[#allocation10 + $0x178] sm:$0xff]
    %v6602 = vld [vmem:[%s9] sm:$0x1]
    %v6604 = vlaneseq
    %v6605 = vshrl.u32 %v6604, 7
    %v6606 = vsub.s32 0, %v6605
    %v6607 = vrot.slane %v6602, %v6606
    %6609 = vmatprep.subr.mxu0 0.0
    %6610 = vmatpush1.msra.mxu0 %v6569
    %6611 = vmatprep.subr.mxu0 0.0
    %6612 = vmatpush1.msra.mxu0 %v6568
    %6613 = vmatprep.subr.mxu0 0.0
    %6614 = vmatpush1.msra.mxu0 %v6567
    %6615 = vmatprep.subr.mxu0 0.0
    %6616 = vmatpush1.msra.mxu0 %v6566
    %6617 = vmatprep.subr.mxu0 0.0
    %6618 = vmatpush1.msra.mxu0 %v6565
    %6619 = vmatprep.subr.mxu0 0.0
    %6620 = vmatpush1.msra.mxu0 %v6564
    %6621 = vmatprep.subr.mxu0 0.0
    %6622 = vmatpush1.msra.mxu0 %v6563
    %6623 = vmatprep.subr.mxu0 0.0
    %6624 = vmatpush1.msra.mxu0 %v6562
    %6625 = vmatprep.subr.mxu0 0.0
    %6626 = vmatpush1.msra.mxu0 %v6561
    %6627 = vmatprep.subr.mxu0 0.0
    %6628 = vmatpush1.msra.mxu0 %v6560
    %6629 = vmatprep.subr.mxu0 0.0
    %6630 = vmatpush1.msra.mxu0 %v6559
    %6631 = vmatprep.subr.mxu0 0.0
    %6632 = vmatpush1.msra.mxu0 %v6558
    %6633 = vmatprep.subr.mxu0 0.0
    %6634 = vmatpush1.msra.mxu0 %v6557
    %6635 = vmatprep.subr.mxu0 0.0
    %6636 = vmatpush1.msra.mxu0 %v6556
    %6637 = vmatprep.subr.mxu0 0.0
    %6638 = vmatpush1.msra.mxu0 %v6555
    %6639 = vmatprep.subr.mxu0 0.0
    %6640 = vmatpush1.msra.mxu0 %v6554
    %6641 = vmatprep.subr.mxu0 0.0
    %6642 = vmatpush2.msra.mxu0 %v6585
    %6643 = vmatprep.subr.mxu0 0.0
    %6644 = vmatpush2.msra.mxu0 %v6584
    %6645 = vmatprep.subr.mxu0 0.0
    %6646 = vmatpush2.msra.mxu0 %v6583
    %6647 = vmatprep.subr.mxu0 0.0
    %6648 = vmatpush2.msra.mxu0 %v6582
    %6649 = vmatprep.subr.mxu0 0.0
    %6650 = vmatpush2.msra.mxu0 %v6581
    %6651 = vmatprep.subr.mxu0 0.0
    %6652 = vmatpush2.msra.mxu0 %v6580
    %6653 = vmatprep.subr.mxu0 0.0
    %6654 = vmatpush2.msra.mxu0 %v6579
    %6655 = vmatprep.subr.mxu0 0.0
    %6656 = vmatpush2.msra.mxu0 %v6578
    %6657 = vmatprep.subr.mxu0 0.0
    %6658 = vmatpush2.msra.mxu0 %v6577
    %6659 = vmatprep.subr.mxu0 0.0
    %6660 = vmatpush2.msra.mxu0 %v6576
    %6661 = vmatprep.subr.mxu0 0.0
    %6662 = vmatpush2.msra.mxu0 %v6575
    %6663 = vmatprep.subr.mxu0 0.0
    %6664 = vmatpush2.msra.mxu0 %v6574
    %6665 = vmatprep.subr.mxu0 0.0
    %6666 = vmatpush2.msra.mxu0 %v6573
    %6667 = vmatprep.subr.mxu0 0.0
    %6668 = vmatpush2.msra.mxu0 %v6572
    %6669 = vmatprep.subr.mxu0 0.0
    %6670 = vmatpush2.msra.mxu0 %v6571
    %6671 = vmatprep.subr.mxu0 0.0
    %6672 = vmatpush2.msra.mxu0 %v6570
    %6673 = vmatprep.mubr.f32.mxu0 %v6536
    %6674 = vmatmul.mubr.f32.gmra.mxu0 %v6520
    %v6675 = vpop.f32.mrf.mxu0
    %v6676 = vadd.f32 %v6607, %v6675
    %v6677 = vpop.f32.mrf.mxu0
    %6678 = vdwg.mxu0
    %6679 = vmatprep.subr.mxu0 0.0
    %6680 = vmatpush1.msra.mxu0 %v6601
    %6681 = vmatprep.subr.mxu0 0.0
    %6682 = vmatpush1.msra.mxu0 %v6600
    %6683 = vmatprep.subr.mxu0 0.0
    %6684 = vmatpush1.msra.mxu0 %v6599
    %6685 = vmatprep.subr.mxu0 0.0
    %6686 = vmatpush1.msra.mxu0 %v6598
    %6687 = vmatprep.subr.mxu0 0.0
    %6688 = vmatpush1.msra.mxu0 %v6597
    %6689 = vmatprep.subr.mxu0 0.0
    %6690 = vmatpush1.msra.mxu0 %v6596
    %6691 = vmatprep.subr.mxu0 0.0
    %6692 = vmatpush1.msra.mxu0 %v6595
    %6693 = vmatprep.subr.mxu0 0.0
    %6694 = vmatpush1.msra.mxu0 %v6594
    %6695 = vmatprep.subr.mxu0 0.0
    %6696 = vmatpush1.msra.mxu0 %v6593
    %6697 = vmatprep.subr.mxu0 0.0
    %6698 = vmatpush1.msra.mxu0 %v6592
    %6699 = vmatprep.subr.mxu0 0.0
    %6700 = vmatpush1.msra.mxu0 %v6591
    %6701 = vmatprep.subr.mxu0 0.0
    %6702 = vmatpush1.msra.mxu0 %v6590
    %6703 = vmatprep.subr.mxu0 0.0
    %6704 = vmatpush1.msra.mxu0 %v6589
    %6705 = vmatprep.subr.mxu0 0.0
    %6706 = vmatpush1.msra.mxu0 %v6588
    %6707 = vmatprep.subr.mxu0 0.0
    %6708 = vmatpush1.msra.mxu0 %v6587
    %6709 = vmatprep.subr.mxu0 0.0
    %6710 = vmatpush1.msra.mxu0 %v6586
    %6711 = vmatprep.subr.mxu0 0.0
    %6712 = vmatpush2.msra.mxu0 0.0
    %6713 = vmatprep.subr.mxu0 0.0
    %6714 = vmatpush2.msra.mxu0 0.0
    %6715 = vmatprep.subr.mxu0 0.0
    %6716 = vmatpush2.msra.mxu0 0.0
    %6717 = vmatprep.subr.mxu0 0.0
    %6718 = vmatpush2.msra.mxu0 0.0
    %6719 = vmatprep.subr.mxu0 0.0
    %6720 = vmatpush2.msra.mxu0 0.0
    %6721 = vmatprep.subr.mxu0 0.0
    %6722 = vmatpush2.msra.mxu0 0.0
    %6723 = vmatprep.subr.mxu0 0.0
    %6724 = vmatpush2.msra.mxu0 0.0
    %6725 = vmatprep.subr.mxu0 0.0
    %6726 = vmatpush2.msra.mxu0 0.0
    %6727 = vmatprep.subr.mxu0 0.0
    %6728 = vmatpush2.msra.mxu0 0.0
    %6729 = vmatprep.subr.mxu0 0.0
    %6730 = vmatpush2.msra.mxu0 0.0
    %6731 = vmatprep.subr.mxu0 0.0
    %6732 = vmatpush2.msra.mxu0 0.0
    %6733 = vmatprep.subr.mxu0 0.0
    %6734 = vmatpush2.msra.mxu0 0.0
    %6735 = vmatprep.subr.mxu0 0.0
    %6736 = vmatpush2.msra.mxu0 0.0
    %6737 = vmatprep.subr.mxu0 0.0
    %6738 = vmatpush2.msra.mxu0 0.0
    %6739 = vmatprep.subr.mxu0 0.0
    %6740 = vmatpush2.msra.mxu0 0.0
    %6741 = vmatprep.subr.mxu0 0.0
    %6742 = vmatpush2.msra.mxu0 0.0
    %6743 = vmatprep.mubr.f32.mxu0 0.0
    %6744 = vmatmul.mubr.f32.gmra.mxu0 %v6552
    %v6745 = vpop.f32.mrf.mxu0
    %v6746 = vadd.f32 %v6676, %v6745
    %v6747 = vpop.f32.mrf.mxu0
    %6748 = vdwg.mxu0
    %6749 = vst [vmem:[#allocation11] sm:$0xff] %v6746
    // Predicated region
    $region62: #{tpu_custom_call.1} parent=1 // pred_check
      _
    $region63: #{tpu_custom_call.1} parent=1 // pred_check_branch
      %6751 = sbr.rel (0) target = $region65
    $region64: #{tpu_custom_call.1} parent=1 // pred_region
      %s6753 = ssub.s32 128, 128
      %6754 = vsyncadd [#allocation4], %s6753
      %s6756 = sshll.u32 [#allocation11], 4
      %s6757 = int_to_ptr.vmem [resolvable:$true] %s6756
      %6759 = dma.vmem_to_hbm [thread:$0]  %s6757, 128, %s10, [#allocation4]
    $region65: #{tpu_custom_call.1} parent=1 // pred_fallthru
      _
    // Predicated region
    $region66: #{tpu_custom_call.1} parent=1 // pred_check
      _
    $region67: #{tpu_custom_call.1} parent=1 // pred_check_branch
      %6761 = sbr.rel (0) target = $region69
    $region68: #{tpu_custom_call.1} parent=1 // pred_region
      %6762 = dma.done [#allocation4], 128
    $region69: #{tpu_custom_call.1} parent=1 // pred_fallthru
      _
    %6763 = vsyncpa [#allocation3], 1
    %6764 = vsyncpa [#allocation6], 1
    %6765 = vsyncpa [#allocation9], 1
    %6766 = vsyncpa [#allocation4], 1

</llo_original>
